<compile_context>
chip_gen: v7x
topology: tpu7x:2x2x1
jax: 0.10.0
libtpu: 0.0.40
codegen_flags: <defaults>
</compile_context>

<pallas_src>
import functools

import jax
import jax.numpy as jnp
from jax import lax
from jax.experimental import pallas as pl
from jax.experimental.pallas import tpu as pltpu


# ----------------------------------------------------------------------------
# Fused Pallas kernel
# ----------------------------------------------------------------------------
def _temporal_kernel(x_ref, w_ih1_ref, w_hh1f_ref, w_hh1b_ref, b1_ref,
                     w_ih2f_ref, w_ih2b_ref, b2f_ref, b2b_ref, w_hh2f_ref,
                     fc_w_ref, fc_b_ref, out_ref, *, T, B, H):
    """Whole TemporalAnalysis forward in one kernel.

    All gate axes use the re-packed column order [i, f, o, g].

    x_ref:      (T*B, D)   time-major input, batch padded to B (= 8k)
    w_ih1_ref:  (D, 8H)    [W_ih_fwd | W_ih_bwd] of layer 1
    w_hh1f_ref: (H, 4H)    layer-1 forward recurrent weights
    w_hh1b_ref: (H, 4H)    layer-1 backward recurrent weights
    b1_ref:     (1, 8H)    [b_fwd | b_bwd] (b_ih + b_hh) of layer 1
    w_ih2f_ref: (2H, 4H)   layer-2 forward input weights
    w_ih2b_ref: (2H, 4H)   layer-2 backward input weights (used for 1 step only)
    b2f_ref:    (1, 4H),  b2b_ref: (1, 4H)
    w_hh2f_ref: (H, 4H)    layer-2 forward recurrent weights (bwd unused: h0=0)
    fc_w_ref:   (2H, H),  fc_b_ref: (1, H)
    out_ref:    (B, H)
    """
    G = 4 * H

    def cell(gates, c):
        # Re-packed gate order [i, f, o, g]: one wide sigmoid covers i, f, o.
        ifo = jax.nn.sigmoid(gates[:, :3 * H])
        g_g = jnp.tanh(gates[:, 3 * H:])
        i_g = ifo[:, 0 * H:1 * H]
        f_g = ifo[:, 1 * H:2 * H]
        o_g = ifo[:, 2 * H:3 * H]
        c_new = f_g * c + i_g * g_g
        h_new = o_g * jnp.tanh(c_new)
        return h_new, c_new

    # ---- Layer 1: hoisted time-parallel input projection (both directions) --
    xp1 = (jnp.dot(x_ref[...], w_ih1_ref[...],
                   preferred_element_type=jnp.float32)
           + b1_ref[...])                                   # (T*B, 8H)
    w_hh1f = w_hh1f_ref[...]
    w_hh1b = w_hh1b_ref[...]

    zero = jnp.zeros((B, H), jnp.float32)
    h_f, c_f, h_b, c_b = zero, zero, zero, zero
    h_fwd, h_bwd = [], []                                   # value-resident L1 output
    for s in range(T):                                      # unrolled (T static)
        gate_f = xp1[s * B:(s + 1) * B, :G] + jnp.dot(
            h_f, w_hh1f, preferred_element_type=jnp.float32)
        gate_b = xp1[(T - 1 - s) * B:(T - s) * B, G:] + jnp.dot(
            h_b, w_hh1b, preferred_element_type=jnp.float32)
        h_f, c_f = cell(gate_f, c_f)
        h_b, c_b = cell(gate_b, c_b)
        h_fwd.append(h_f)                                   # position s
        h_bwd.append(h_b)                                   # position T-1-s

    # Assemble layer-1 bidirectional output time-major: (T*B, 2H).
    l1 = jnp.concatenate(
        [jnp.concatenate(h_fwd, axis=0),
         jnp.concatenate(h_bwd[::-1], axis=0)], axis=-1)

    # ---- Layer 2 -------------------------------------------------------------
    # Forward direction: needs every timestep's projection.
    xp2f = (jnp.dot(l1, w_ih2f_ref[...],
                    preferred_element_type=jnp.float32)
            + b2f_ref[...])                                 # (T*B, 4H)
    # Backward direction: the head only consumes its state at position T-1,
    # i.e. its first recurrence step from zero state -> project ONE row block,
    # and no h @ W_hh term.
    xp2b = (jnp.dot(l1[(T - 1) * B:T * B, :], w_ih2b_ref[...],
                    preferred_element_type=jnp.float32)
            + b2b_ref[...])                                 # (B, 4H)

    w_hh2f = w_hh2f_ref[...]
    h2, c2 = zero, zero
    for t in range(T):                                      # forward direction only
        gates = xp2f[t * B:(t + 1) * B, :] + jnp.dot(
            h2, w_hh2f, preferred_element_type=jnp.float32)
        h2, c2 = cell(gates, c2)

    h2b, _ = cell(xp2b, zero)

    # ---- FC head epilogue ----------------------------------------------------
    last = jnp.concatenate([h2, h2b], axis=-1)              # (B, 2H)
    out_ref[...] = (jnp.dot(last, fc_w_ref[...],
                            preferred_element_type=jnp.float32)
                    + fc_b_ref[...]).astype(out_ref.dtype)


# ----------------------------------------------------------------------------
# Wrapper
# ----------------------------------------------------------------------------
@jax.jit
def temporal_analysis_forward(x_btd, packed):
    """Reproduces TemporalAnalysis.forward: bi-LSTM (2 layers) -> fc(last step)."""
    H = packed["fc_w"].shape[1]
    B, T, D = x_btd.shape
    Bp = ((B + 7) // 8) * 8                                 # pad batch to sublane tile

    # Time-major + batch pad (fuses into one cheap relayout at these shapes).
    x_tbd = jnp.transpose(x_btd, (1, 0, 2))                 # (T, B, D)
    x_pad = jnp.pad(x_tbd, ((0, 0), (0, Bp - B), (0, 0)))   # (T, Bp, D)
    x_flat = x_pad.reshape(T * Bp, D)

    vmem = pl.BlockSpec(memory_space=pltpu.MemorySpace.VMEM)
    kernel = functools.partial(_temporal_kernel, T=T, B=Bp, H=H)
    out = pl.pallas_call(
        kernel,
        out_shape=jax.ShapeDtypeStruct((Bp, H), jnp.float32),
        in_specs=[vmem] * 12,
        out_specs=vmem,
    )(x_flat,
      packed["w_ih1"], packed["w_hh1_f"], packed["w_hh1_b"], packed["b1"],
      packed["w_ih2_f"], packed["w_ih2_b"], packed["b2_f"], packed["b2_b"],
      packed["w_hh2_f"], packed["fc_w"], packed["fc_b"])
    return out[:B]                                          # drop padded batch rows


# ----------------------------------------------------------------------------
# Parameter init (PyTorch-style uniform) and one-time packing for the kernel
# ----------------------------------------------------------------------------
def init_params(key, input_dim, hidden):
    params = {"hidden": hidden}
    k = 1.0 / float(hidden) ** 0.5

    def u(kk, shape, scale):
        return jax.random.uniform(kk, shape, jnp.float32, -scale, scale)

    keys = iter(jax.random.split(key, 20))
    for l in range(2):
        d_in = input_dim if l == 0 else 2 * hidden
        for suf in ("", "_rev"):
            w_ih = u(next(keys), (4 * hidden, d_in), k)
            w_hh = u(next(keys), (4 * hidden, hidden), k)
            b_ih = u(next(keys), (4 * hidden,), k)
            b_hh = u(next(keys), (4 * hidden,), k)
            params[f"w_ih_l{l}{suf}"] = jnp.transpose(w_ih)          # (D_in, 4H)
            params[f"w_hh_l{l}{suf}"] = jnp.transpose(w_hh)          # (H, 4H)
            params[f"b_l{l}{suf}"] = (b_ih + b_hh)[None, :]          # (1, 4H)
    kfc = 1.0 / float(2 * hidden) ** 0.5
    params["fc_w"] = jnp.transpose(u(next(keys), (hidden, 2 * hidden), kfc))  # (2H, H)
    params["fc_b"] = u(next(keys), (hidden,), kfc)[None, :]                   # (1, H)
    return params


def _reorder_gates(w, H):
    """PyTorch gate columns [i, f, g, o] -> kernel order [i, f, o, g]."""
    return jnp.concatenate([w[..., :2 * H], w[..., 3 * H:], w[..., 2 * H:3 * H]],
                           axis=-1)


def pack_params(params):
    """One-time re-layout of weights into the fused-kernel format (arrays only)."""
    H = params["hidden"]
    r = functools.partial(_reorder_gates, H=H)
    packed = {
        # layer 1: stacked input weights, separate fwd/bwd recurrent weights
        "w_ih1": jnp.concatenate([r(params["w_ih_l0"]), r(params["w_ih_l0_rev"])],
                                 axis=1),                                   # (D, 8H)
        "w_hh1_f": r(params["w_hh_l0"]),                                    # (H, 4H)
        "w_hh1_b": r(params["w_hh_l0_rev"]),                                # (H, 4H)
        "b1": jnp.concatenate([r(params["b_l0"]), r(params["b_l0_rev"])],
                              axis=1),                                      # (1, 8H)
        # layer 2: backward direction is a single step from zero state
        "w_ih2_f": r(params["w_ih_l1"]),                                    # (2H, 4H)
        "w_ih2_b": r(params["w_ih_l1_rev"]),                                # (2H, 4H)
        "b2_f": r(params["b_l1"]),                                          # (1, 4H)
        "b2_b": r(params["b_l1_rev"]),                                      # (1, 4H)
        "w_hh2_f": r(params["w_hh_l1"]),                                    # (H, 4H)
        "fc_w": params["fc_w"],                                             # (2H, H)
        "fc_b": params["fc_b"],                                             # (1, H)
    }
    return packed


# ----------------------------------------------------------------------------
# Pure-JAX reference (unpacked params) for sanity check of the Pallas kernel
# ----------------------------------------------------------------------------
def _lstm_dir_ref(x_tbd, w_ih, w_hh, b, hidden):
    B = x_tbd.shape[1]
    h0 = jnp.zeros((B, hidden), jnp.float32)
    c0 = jnp.zeros((B, hidden), jnp.float32)

    def step(carry, x_t):
        h, c = carry
        gates = x_t @ w_ih + h @ w_hh + b
        i_g = jax.nn.sigmoid(gates[:, :hidden])
        f_g = jax.nn.sigmoid(gates[:, hidden:2 * hidden])
        g_g = jnp.tanh(gates[:, 2 * hidden:3 * hidden])
        o_g = jax.nn.sigmoid(gates[:, 3 * hidden:])
        c2 = f_g * c + i_g * g_g
        h2 = o_g * jnp.tanh(c2)
        return (h2, c2), h2

    _, out = lax.scan(step, (h0, c0), x_tbd)
    return out


def temporal_analysis_ref(x_btd, params):
    H = params["hidden"]
    layer_in = jnp.transpose(x_btd, (1, 0, 2))
    for l in range(2):
        fwd = _lstm_dir_ref(layer_in, params[f"w_ih_l{l}"], params[f"w_hh_l{l}"],
                            params[f"b_l{l}"], H)
        bwd = jnp.flip(
            _lstm_dir_ref(jnp.flip(layer_in, axis=0),
                          params[f"w_ih_l{l}_rev"], params[f"w_hh_l{l}_rev"],
                          params[f"b_l{l}_rev"], H),
            axis=0)
        layer_in = jnp.concatenate([fwd, bwd], axis=-1)
    return layer_in[-1] @ params["fc_w"] + params["fc_b"]


# ----------------------------------------------------------------------------
if __name__ == "__main__":
    # Small shapes consistent with the module (input_dim == hidden_dim).
    B, T, D, H = 2, 8, 32, 32

    root = jax.random.PRNGKey(0)
    kx, kp = jax.random.split(root)
    x = jax.random.normal(kx, (B, T, D), jnp.float32)           # (batch, seq, feat)
    params = init_params(kp, D, H)
    packed = pack_params(params)

    out = temporal_analysis_forward(x, packed)
    out = jax.block_until_ready(out)
    assert out.shape == (B, H), out.shape

    ref = jax.block_until_ready(temporal_analysis_ref(x, params))
    assert jnp.allclose(out, ref, atol=1e-4, rtol=1e-4), \
        float(jnp.max(jnp.abs(out - ref)))

    print("KERNEL_OK")
</pallas_src>

<mosaic_0001>
module attributes {stable_mosaic.version = 11 : i64} {
  func.func @_temporal_kernel(%arg0: memref<64x32xf32, #tpu.memory_space<vmem>>, %arg1: memref<32x256xf32, #tpu.memory_space<vmem>>, %arg2: memref<32x128xf32, #tpu.memory_space<vmem>>, %arg3: memref<32x128xf32, #tpu.memory_space<vmem>>, %arg4: memref<1x256xf32, #tpu.memory_space<vmem>>, %arg5: memref<64x128xf32, #tpu.memory_space<vmem>>, %arg6: memref<64x128xf32, #tpu.memory_space<vmem>>, %arg7: memref<1x128xf32, #tpu.memory_space<vmem>>, %arg8: memref<1x128xf32, #tpu.memory_space<vmem>>, %arg9: memref<32x128xf32, #tpu.memory_space<vmem>>, %arg10: memref<64x32xf32, #tpu.memory_space<vmem>>, %arg11: memref<1x32xf32, #tpu.memory_space<vmem>>, %arg12: memref<8x32xf32, #tpu.memory_space<vmem>>) attributes {dimension_semantics = [], scalar_prefetch = 0 : i64, scratch_operands = 0 : i64, tpu.core_type = #tpu.core_type<tc>} {
    %c0 = arith.constant 0 : index
    %c0_0 = arith.constant 0 : index
    %0 = vector.load %arg0[%c0, %c0_0] : memref<64x32xf32, #tpu.memory_space<vmem>>, vector<64x32xf32>
    %c0_1 = arith.constant 0 : index
    %c0_2 = arith.constant 0 : index
    %1 = vector.load %arg1[%c0_1, %c0_2] : memref<32x256xf32, #tpu.memory_space<vmem>>, vector<32x256xf32>
    %cst = arith.constant dense<0.000000e+00> : vector<64x256xf32>
    %2 = tpu.matmul %0, %1, %cst {dimension_numbers = #tpu.dot_dimension_numbers<[1], [0], [0], [1], [0, 0, 1, 1], [], []>} : vector<64x32xf32>, vector<32x256xf32>, vector<64x256xf32> -> vector<64x256xf32>
    %c0_3 = arith.constant 0 : index
    %c0_4 = arith.constant 0 : index
    %3 = vector.load %arg4[%c0_3, %c0_4] : memref<1x256xf32, #tpu.memory_space<vmem>>, vector<1x256xf32>
    %4 = vector.broadcast %3 : vector<1x256xf32> to vector<64x256xf32>
    %5 = arith.addf %2, %4 : vector<64x256xf32>
    %c0_5 = arith.constant 0 : index
    %c0_6 = arith.constant 0 : index
    %6 = vector.load %arg2[%c0_5, %c0_6] : memref<32x128xf32, #tpu.memory_space<vmem>>, vector<32x128xf32>
    %c0_7 = arith.constant 0 : index
    %c0_8 = arith.constant 0 : index
    %7 = vector.load %arg3[%c0_7, %c0_8] : memref<32x128xf32, #tpu.memory_space<vmem>>, vector<32x128xf32>
    %cst_9 = arith.constant 0.000000e+00 : f32
    %8 = vector.broadcast %cst_9 : f32 to vector<8x32xf32>
    %9 = vector.extract_strided_slice %5 {offsets = [0, 0], sizes = [8, 128], strides = [1, 1]} : vector<64x256xf32> to vector<8x128xf32>
    %cst_10 = arith.constant dense<0.000000e+00> : vector<8x128xf32>
    %10 = tpu.matmul %8, %6, %cst_10 {dimension_numbers = #tpu.dot_dimension_numbers<[1], [0], [0], [1], [0, 0, 1, 1], [], []>} : vector<8x32xf32>, vector<32x128xf32>, vector<8x128xf32> -> vector<8x128xf32>
    %11 = arith.addf %9, %10 : vector<8x128xf32>
    %12 = vector.extract_strided_slice %5 {offsets = [56, 128], sizes = [8, 128], strides = [1, 1]} : vector<64x256xf32> to vector<8x128xf32>
    %cst_11 = arith.constant dense<0.000000e+00> : vector<8x128xf32>
    %13 = tpu.matmul %8, %7, %cst_11 {dimension_numbers = #tpu.dot_dimension_numbers<[1], [0], [0], [1], [0, 0, 1, 1], [], []>} : vector<8x32xf32>, vector<32x128xf32>, vector<8x128xf32> -> vector<8x128xf32>
    %14 = arith.addf %12, %13 : vector<8x128xf32>
    %15 = vector.extract_strided_slice %11 {offsets = [0, 0], sizes = [8, 96], strides = [1, 1]} : vector<8x128xf32> to vector<8x96xf32>
    %16 = arith.negf %15 : vector<8x96xf32>
    %17 = math.exp %16 : vector<8x96xf32>
    %cst_12 = arith.constant 1.000000e+00 : f32
    %18 = vector.broadcast %cst_12 : f32 to vector<8x96xf32>
    %19 = arith.addf %18, %17 : vector<8x96xf32>
    %20 = arith.divf %18, %19 : vector<8x96xf32>
    %21 = vector.extract_strided_slice %11 {offsets = [0, 96], sizes = [8, 32], strides = [1, 1]} : vector<8x128xf32> to vector<8x32xf32>
    %22 = math.tanh %21 : vector<8x32xf32>
    %23 = vector.extract_strided_slice %20 {offsets = [0, 0], sizes = [8, 32], strides = [1, 1]} : vector<8x96xf32> to vector<8x32xf32>
    %24 = vector.extract_strided_slice %20 {offsets = [0, 32], sizes = [8, 32], strides = [1, 1]} : vector<8x96xf32> to vector<8x32xf32>
    %25 = vector.extract_strided_slice %20 {offsets = [0, 64], sizes = [8, 32], strides = [1, 1]} : vector<8x96xf32> to vector<8x32xf32>
    %26 = arith.mulf %24, %8 : vector<8x32xf32>
    %27 = arith.mulf %23, %22 : vector<8x32xf32>
    %28 = arith.addf %26, %27 : vector<8x32xf32>
    %29 = math.tanh %28 : vector<8x32xf32>
    %30 = arith.mulf %25, %29 : vector<8x32xf32>
    %31 = vector.extract_strided_slice %14 {offsets = [0, 0], sizes = [8, 96], strides = [1, 1]} : vector<8x128xf32> to vector<8x96xf32>
    %32 = arith.negf %31 : vector<8x96xf32>
    %33 = math.exp %32 : vector<8x96xf32>
    %cst_13 = arith.constant 1.000000e+00 : f32
    %34 = vector.broadcast %cst_13 : f32 to vector<8x96xf32>
    %35 = arith.addf %34, %33 : vector<8x96xf32>
    %36 = arith.divf %34, %35 : vector<8x96xf32>
    %37 = vector.extract_strided_slice %14 {offsets = [0, 96], sizes = [8, 32], strides = [1, 1]} : vector<8x128xf32> to vector<8x32xf32>
    %38 = math.tanh %37 : vector<8x32xf32>
    %39 = vector.extract_strided_slice %36 {offsets = [0, 0], sizes = [8, 32], strides = [1, 1]} : vector<8x96xf32> to vector<8x32xf32>
    %40 = vector.extract_strided_slice %36 {offsets = [0, 32], sizes = [8, 32], strides = [1, 1]} : vector<8x96xf32> to vector<8x32xf32>
    %41 = vector.extract_strided_slice %36 {offsets = [0, 64], sizes = [8, 32], strides = [1, 1]} : vector<8x96xf32> to vector<8x32xf32>
    %42 = arith.mulf %40, %8 : vector<8x32xf32>
    %43 = arith.mulf %39, %38 : vector<8x32xf32>
    %44 = arith.addf %42, %43 : vector<8x32xf32>
    %45 = math.tanh %44 : vector<8x32xf32>
    %46 = arith.mulf %41, %45 : vector<8x32xf32>
    %47 = vector.extract_strided_slice %5 {offsets = [8, 0], sizes = [8, 128], strides = [1, 1]} : vector<64x256xf32> to vector<8x128xf32>
    %cst_14 = arith.constant dense<0.000000e+00> : vector<8x128xf32>
    %48 = tpu.matmul %30, %6, %cst_14 {dimension_numbers = #tpu.dot_dimension_numbers<[1], [0], [0], [1], [0, 0, 1, 1], [], []>} : vector<8x32xf32>, vector<32x128xf32>, vector<8x128xf32> -> vector<8x128xf32>
    %49 = arith.addf %47, %48 : vector<8x128xf32>
    %50 = vector.extract_strided_slice %5 {offsets = [48, 128], sizes = [8, 128], strides = [1, 1]} : vector<64x256xf32> to vector<8x128xf32>
    %cst_15 = arith.constant dense<0.000000e+00> : vector<8x128xf32>
    %51 = tpu.matmul %46, %7, %cst_15 {dimension_numbers = #tpu.dot_dimension_numbers<[1], [0], [0], [1], [0, 0, 1, 1], [], []>} : vector<8x32xf32>, vector<32x128xf32>, vector<8x128xf32> -> vector<8x128xf32>
    %52 = arith.addf %50, %51 : vector<8x128xf32>
    %53 = vector.extract_strided_slice %49 {offsets = [0, 0], sizes = [8, 96], strides = [1, 1]} : vector<8x128xf32> to vector<8x96xf32>
    %54 = arith.negf %53 : vector<8x96xf32>
    %55 = math.exp %54 : vector<8x96xf32>
    %cst_16 = arith.constant 1.000000e+00 : f32
    %56 = vector.broadcast %cst_16 : f32 to vector<8x96xf32>
    %57 = arith.addf %56, %55 : vector<8x96xf32>
    %58 = arith.divf %56, %57 : vector<8x96xf32>
    %59 = vector.extract_strided_slice %49 {offsets = [0, 96], sizes = [8, 32], strides = [1, 1]} : vector<8x128xf32> to vector<8x32xf32>
    %60 = math.tanh %59 : vector<8x32xf32>
    %61 = vector.extract_strided_slice %58 {offsets = [0, 0], sizes = [8, 32], strides = [1, 1]} : vector<8x96xf32> to vector<8x32xf32>
    %62 = vector.extract_strided_slice %58 {offsets = [0, 32], sizes = [8, 32], strides = [1, 1]} : vector<8x96xf32> to vector<8x32xf32>
    %63 = vector.extract_strided_slice %58 {offsets = [0, 64], sizes = [8, 32], strides = [1, 1]} : vector<8x96xf32> to vector<8x32xf32>
    %64 = arith.mulf %62, %28 : vector<8x32xf32>
    %65 = arith.mulf %61, %60 : vector<8x32xf32>
    %66 = arith.addf %64, %65 : vector<8x32xf32>
    %67 = math.tanh %66 : vector<8x32xf32>
    %68 = arith.mulf %63, %67 : vector<8x32xf32>
    %69 = vector.extract_strided_slice %52 {offsets = [0, 0], sizes = [8, 96], strides = [1, 1]} : vector<8x128xf32> to vector<8x96xf32>
    %70 = arith.negf %69 : vector<8x96xf32>
    %71 = math.exp %70 : vector<8x96xf32>
    %cst_17 = arith.constant 1.000000e+00 : f32
    %72 = vector.broadcast %cst_17 : f32 to vector<8x96xf32>
    %73 = arith.addf %72, %71 : vector<8x96xf32>
    %74 = arith.divf %72, %73 : vector<8x96xf32>
    %75 = vector.extract_strided_slice %52 {offsets = [0, 96], sizes = [8, 32], strides = [1, 1]} : vector<8x128xf32> to vector<8x32xf32>
    %76 = math.tanh %75 : vector<8x32xf32>
    %77 = vector.extract_strided_slice %74 {offsets = [0, 0], sizes = [8, 32], strides = [1, 1]} : vector<8x96xf32> to vector<8x32xf32>
    %78 = vector.extract_strided_slice %74 {offsets = [0, 32], sizes = [8, 32], strides = [1, 1]} : vector<8x96xf32> to vector<8x32xf32>
    %79 = vector.extract_strided_slice %74 {offsets = [0, 64], sizes = [8, 32], strides = [1, 1]} : vector<8x96xf32> to vector<8x32xf32>
    %80 = arith.mulf %78, %44 : vector<8x32xf32>
    %81 = arith.mulf %77, %76 : vector<8x32xf32>
    %82 = arith.addf %80, %81 : vector<8x32xf32>
    %83 = math.tanh %82 : vector<8x32xf32>
    %84 = arith.mulf %79, %83 : vector<8x32xf32>
    %85 = vector.extract_strided_slice %5 {offsets = [16, 0], sizes = [8, 128], strides = [1, 1]} : vector<64x256xf32> to vector<8x128xf32>
    %cst_18 = arith.constant dense<0.000000e+00> : vector<8x128xf32>
    %86 = tpu.matmul %68, %6, %cst_18 {dimension_numbers = #tpu.dot_dimension_numbers<[1], [0], [0], [1], [0, 0, 1, 1], [], []>} : vector<8x32xf32>, vector<32x128xf32>, vector<8x128xf32> -> vector<8x128xf32>
    %87 = arith.addf %85, %86 : vector<8x128xf32>
    %88 = vector.extract_strided_slice %5 {offsets = [40, 128], sizes = [8, 128], strides = [1, 1]} : vector<64x256xf32> to vector<8x128xf32>
    %cst_19 = arith.constant dense<0.000000e+00> : vector<8x128xf32>
    %89 = tpu.matmul %84, %7, %cst_19 {dimension_numbers = #tpu.dot_dimension_numbers<[1], [0], [0], [1], [0, 0, 1, 1], [], []>} : vector<8x32xf32>, vector<32x128xf32>, vector<8x128xf32> -> vector<8x128xf32>
    %90 = arith.addf %88, %89 : vector<8x128xf32>
    %91 = vector.extract_strided_slice %87 {offsets = [0, 0], sizes = [8, 96], strides = [1, 1]} : vector<8x128xf32> to vector<8x96xf32>
    %92 = arith.negf %91 : vector<8x96xf32>
    %93 = math.exp %92 : vector<8x96xf32>
    %cst_20 = arith.constant 1.000000e+00 : f32
    %94 = vector.broadcast %cst_20 : f32 to vector<8x96xf32>
    %95 = arith.addf %94, %93 : vector<8x96xf32>
    %96 = arith.divf %94, %95 : vector<8x96xf32>
    %97 = vector.extract_strided_slice %87 {offsets = [0, 96], sizes = [8, 32], strides = [1, 1]} : vector<8x128xf32> to vector<8x32xf32>
    %98 = math.tanh %97 : vector<8x32xf32>
    %99 = vector.extract_strided_slice %96 {offsets = [0, 0], sizes = [8, 32], strides = [1, 1]} : vector<8x96xf32> to vector<8x32xf32>
    %100 = vector.extract_strided_slice %96 {offsets = [0, 32], sizes = [8, 32], strides = [1, 1]} : vector<8x96xf32> to vector<8x32xf32>
    %101 = vector.extract_strided_slice %96 {offsets = [0, 64], sizes = [8, 32], strides = [1, 1]} : vector<8x96xf32> to vector<8x32xf32>
    %102 = arith.mulf %100, %66 : vector<8x32xf32>
    %103 = arith.mulf %99, %98 : vector<8x32xf32>
    %104 = arith.addf %102, %103 : vector<8x32xf32>
    %105 = math.tanh %104 : vector<8x32xf32>
    %106 = arith.mulf %101, %105 : vector<8x32xf32>
    %107 = vector.extract_strided_slice %90 {offsets = [0, 0], sizes = [8, 96], strides = [1, 1]} : vector<8x128xf32> to vector<8x96xf32>
    %108 = arith.negf %107 : vector<8x96xf32>
    %109 = math.exp %108 : vector<8x96xf32>
    %cst_21 = arith.constant 1.000000e+00 : f32
    %110 = vector.broadcast %cst_21 : f32 to vector<8x96xf32>
    %111 = arith.addf %110, %109 : vector<8x96xf32>
    %112 = arith.divf %110, %111 : vector<8x96xf32>
    %113 = vector.extract_strided_slice %90 {offsets = [0, 96], sizes = [8, 32], strides = [1, 1]} : vector<8x128xf32> to vector<8x32xf32>
    %114 = math.tanh %113 : vector<8x32xf32>
    %115 = vector.extract_strided_slice %112 {offsets = [0, 0], sizes = [8, 32], strides = [1, 1]} : vector<8x96xf32> to vector<8x32xf32>
    %116 = vector.extract_strided_slice %112 {offsets = [0, 32], sizes = [8, 32], strides = [1, 1]} : vector<8x96xf32> to vector<8x32xf32>
    %117 = vector.extract_strided_slice %112 {offsets = [0, 64], sizes = [8, 32], strides = [1, 1]} : vector<8x96xf32> to vector<8x32xf32>
    %118 = arith.mulf %116, %82 : vector<8x32xf32>
    %119 = arith.mulf %115, %114 : vector<8x32xf32>
    %120 = arith.addf %118, %119 : vector<8x32xf32>
    %121 = math.tanh %120 : vector<8x32xf32>
    %122 = arith.mulf %117, %121 : vector<8x32xf32>
    %123 = vector.extract_strided_slice %5 {offsets = [24, 0], sizes = [8, 128], strides = [1, 1]} : vector<64x256xf32> to vector<8x128xf32>
    %cst_22 = arith.constant dense<0.000000e+00> : vector<8x128xf32>
    %124 = tpu.matmul %106, %6, %cst_22 {dimension_numbers = #tpu.dot_dimension_numbers<[1], [0], [0], [1], [0, 0, 1, 1], [], []>} : vector<8x32xf32>, vector<32x128xf32>, vector<8x128xf32> -> vector<8x128xf32>
    %125 = arith.addf %123, %124 : vector<8x128xf32>
    %126 = vector.extract_strided_slice %5 {offsets = [32, 128], sizes = [8, 128], strides = [1, 1]} : vector<64x256xf32> to vector<8x128xf32>
    %cst_23 = arith.constant dense<0.000000e+00> : vector<8x128xf32>
    %127 = tpu.matmul %122, %7, %cst_23 {dimension_numbers = #tpu.dot_dimension_numbers<[1], [0], [0], [1], [0, 0, 1, 1], [], []>} : vector<8x32xf32>, vector<32x128xf32>, vector<8x128xf32> -> vector<8x128xf32>
    %128 = arith.addf %126, %127 : vector<8x128xf32>
    %129 = vector.extract_strided_slice %125 {offsets = [0, 0], sizes = [8, 96], strides = [1, 1]} : vector<8x128xf32> to vector<8x96xf32>
    %130 = arith.negf %129 : vector<8x96xf32>
    %131 = math.exp %130 : vector<8x96xf32>
    %cst_24 = arith.constant 1.000000e+00 : f32
    %132 = vector.broadcast %cst_24 : f32 to vector<8x96xf32>
    %133 = arith.addf %132, %131 : vector<8x96xf32>
    %134 = arith.divf %132, %133 : vector<8x96xf32>
    %135 = vector.extract_strided_slice %125 {offsets = [0, 96], sizes = [8, 32], strides = [1, 1]} : vector<8x128xf32> to vector<8x32xf32>
    %136 = math.tanh %135 : vector<8x32xf32>
    %137 = vector.extract_strided_slice %134 {offsets = [0, 0], sizes = [8, 32], strides = [1, 1]} : vector<8x96xf32> to vector<8x32xf32>
    %138 = vector.extract_strided_slice %134 {offsets = [0, 32], sizes = [8, 32], strides = [1, 1]} : vector<8x96xf32> to vector<8x32xf32>
    %139 = vector.extract_strided_slice %134 {offsets = [0, 64], sizes = [8, 32], strides = [1, 1]} : vector<8x96xf32> to vector<8x32xf32>
    %140 = arith.mulf %138, %104 : vector<8x32xf32>
    %141 = arith.mulf %137, %136 : vector<8x32xf32>
    %142 = arith.addf %140, %141 : vector<8x32xf32>
    %143 = math.tanh %142 : vector<8x32xf32>
    %144 = arith.mulf %139, %143 : vector<8x32xf32>
    %145 = vector.extract_strided_slice %128 {offsets = [0, 0], sizes = [8, 96], strides = [1, 1]} : vector<8x128xf32> to vector<8x96xf32>
    %146 = arith.negf %145 : vector<8x96xf32>
    %147 = math.exp %146 : vector<8x96xf32>
    %cst_25 = arith.constant 1.000000e+00 : f32
    %148 = vector.broadcast %cst_25 : f32 to vector<8x96xf32>
    %149 = arith.addf %148, %147 : vector<8x96xf32>
    %150 = arith.divf %148, %149 : vector<8x96xf32>
    %151 = vector.extract_strided_slice %128 {offsets = [0, 96], sizes = [8, 32], strides = [1, 1]} : vector<8x128xf32> to vector<8x32xf32>
    %152 = math.tanh %151 : vector<8x32xf32>
    %153 = vector.extract_strided_slice %150 {offsets = [0, 0], sizes = [8, 32], strides = [1, 1]} : vector<8x96xf32> to vector<8x32xf32>
    %154 = vector.extract_strided_slice %150 {offsets = [0, 32], sizes = [8, 32], strides = [1, 1]} : vector<8x96xf32> to vector<8x32xf32>
    %155 = vector.extract_strided_slice %150 {offsets = [0, 64], sizes = [8, 32], strides = [1, 1]} : vector<8x96xf32> to vector<8x32xf32>
    %156 = arith.mulf %154, %120 : vector<8x32xf32>
    %157 = arith.mulf %153, %152 : vector<8x32xf32>
    %158 = arith.addf %156, %157 : vector<8x32xf32>
    %159 = math.tanh %158 : vector<8x32xf32>
    %160 = arith.mulf %155, %159 : vector<8x32xf32>
    %161 = vector.extract_strided_slice %5 {offsets = [32, 0], sizes = [8, 128], strides = [1, 1]} : vector<64x256xf32> to vector<8x128xf32>
    %cst_26 = arith.constant dense<0.000000e+00> : vector<8x128xf32>
    %162 = tpu.matmul %144, %6, %cst_26 {dimension_numbers = #tpu.dot_dimension_numbers<[1], [0], [0], [1], [0, 0, 1, 1], [], []>} : vector<8x32xf32>, vector<32x128xf32>, vector<8x128xf32> -> vector<8x128xf32>
    %163 = arith.addf %161, %162 : vector<8x128xf32>
    %164 = vector.extract_strided_slice %5 {offsets = [24, 128], sizes = [8, 128], strides = [1, 1]} : vector<64x256xf32> to vector<8x128xf32>
    %cst_27 = arith.constant dense<0.000000e+00> : vector<8x128xf32>
    %165 = tpu.matmul %160, %7, %cst_27 {dimension_numbers = #tpu.dot_dimension_numbers<[1], [0], [0], [1], [0, 0, 1, 1], [], []>} : vector<8x32xf32>, vector<32x128xf32>, vector<8x128xf32> -> vector<8x128xf32>
    %166 = arith.addf %164, %165 : vector<8x128xf32>
    %167 = vector.extract_strided_slice %163 {offsets = [0, 0], sizes = [8, 96], strides = [1, 1]} : vector<8x128xf32> to vector<8x96xf32>
    %168 = arith.negf %167 : vector<8x96xf32>
    %169 = math.exp %168 : vector<8x96xf32>
    %cst_28 = arith.constant 1.000000e+00 : f32
    %170 = vector.broadcast %cst_28 : f32 to vector<8x96xf32>
    %171 = arith.addf %170, %169 : vector<8x96xf32>
    %172 = arith.divf %170, %171 : vector<8x96xf32>
    %173 = vector.extract_strided_slice %163 {offsets = [0, 96], sizes = [8, 32], strides = [1, 1]} : vector<8x128xf32> to vector<8x32xf32>
    %174 = math.tanh %173 : vector<8x32xf32>
    %175 = vector.extract_strided_slice %172 {offsets = [0, 0], sizes = [8, 32], strides = [1, 1]} : vector<8x96xf32> to vector<8x32xf32>
    %176 = vector.extract_strided_slice %172 {offsets = [0, 32], sizes = [8, 32], strides = [1, 1]} : vector<8x96xf32> to vector<8x32xf32>
    %177 = vector.extract_strided_slice %172 {offsets = [0, 64], sizes = [8, 32], strides = [1, 1]} : vector<8x96xf32> to vector<8x32xf32>
    %178 = arith.mulf %176, %142 : vector<8x32xf32>
    %179 = arith.mulf %175, %174 : vector<8x32xf32>
    %180 = arith.addf %178, %179 : vector<8x32xf32>
    %181 = math.tanh %180 : vector<8x32xf32>
    %182 = arith.mulf %177, %181 : vector<8x32xf32>
    %183 = vector.extract_strided_slice %166 {offsets = [0, 0], sizes = [8, 96], strides = [1, 1]} : vector<8x128xf32> to vector<8x96xf32>
    %184 = arith.negf %183 : vector<8x96xf32>
    %185 = math.exp %184 : vector<8x96xf32>
    %cst_29 = arith.constant 1.000000e+00 : f32
    %186 = vector.broadcast %cst_29 : f32 to vector<8x96xf32>
    %187 = arith.addf %186, %185 : vector<8x96xf32>
    %188 = arith.divf %186, %187 : vector<8x96xf32>
    %189 = vector.extract_strided_slice %166 {offsets = [0, 96], sizes = [8, 32], strides = [1, 1]} : vector<8x128xf32> to vector<8x32xf32>
    %190 = math.tanh %189 : vector<8x32xf32>
    %191 = vector.extract_strided_slice %188 {offsets = [0, 0], sizes = [8, 32], strides = [1, 1]} : vector<8x96xf32> to vector<8x32xf32>
    %192 = vector.extract_strided_slice %188 {offsets = [0, 32], sizes = [8, 32], strides = [1, 1]} : vector<8x96xf32> to vector<8x32xf32>
    %193 = vector.extract_strided_slice %188 {offsets = [0, 64], sizes = [8, 32], strides = [1, 1]} : vector<8x96xf32> to vector<8x32xf32>
    %194 = arith.mulf %192, %158 : vector<8x32xf32>
    %195 = arith.mulf %191, %190 : vector<8x32xf32>
    %196 = arith.addf %194, %195 : vector<8x32xf32>
    %197 = math.tanh %196 : vector<8x32xf32>
    %198 = arith.mulf %193, %197 : vector<8x32xf32>
    %199 = vector.extract_strided_slice %5 {offsets = [40, 0], sizes = [8, 128], strides = [1, 1]} : vector<64x256xf32> to vector<8x128xf32>
    %cst_30 = arith.constant dense<0.000000e+00> : vector<8x128xf32>
    %200 = tpu.matmul %182, %6, %cst_30 {dimension_numbers = #tpu.dot_dimension_numbers<[1], [0], [0], [1], [0, 0, 1, 1], [], []>} : vector<8x32xf32>, vector<32x128xf32>, vector<8x128xf32> -> vector<8x128xf32>
    %201 = arith.addf %199, %200 : vector<8x128xf32>
    %202 = vector.extract_strided_slice %5 {offsets = [16, 128], sizes = [8, 128], strides = [1, 1]} : vector<64x256xf32> to vector<8x128xf32>
    %cst_31 = arith.constant dense<0.000000e+00> : vector<8x128xf32>
    %203 = tpu.matmul %198, %7, %cst_31 {dimension_numbers = #tpu.dot_dimension_numbers<[1], [0], [0], [1], [0, 0, 1, 1], [], []>} : vector<8x32xf32>, vector<32x128xf32>, vector<8x128xf32> -> vector<8x128xf32>
    %204 = arith.addf %202, %203 : vector<8x128xf32>
    %205 = vector.extract_strided_slice %201 {offsets = [0, 0], sizes = [8, 96], strides = [1, 1]} : vector<8x128xf32> to vector<8x96xf32>
    %206 = arith.negf %205 : vector<8x96xf32>
    %207 = math.exp %206 : vector<8x96xf32>
    %cst_32 = arith.constant 1.000000e+00 : f32
    %208 = vector.broadcast %cst_32 : f32 to vector<8x96xf32>
    %209 = arith.addf %208, %207 : vector<8x96xf32>
    %210 = arith.divf %208, %209 : vector<8x96xf32>
    %211 = vector.extract_strided_slice %201 {offsets = [0, 96], sizes = [8, 32], strides = [1, 1]} : vector<8x128xf32> to vector<8x32xf32>
    %212 = math.tanh %211 : vector<8x32xf32>
    %213 = vector.extract_strided_slice %210 {offsets = [0, 0], sizes = [8, 32], strides = [1, 1]} : vector<8x96xf32> to vector<8x32xf32>
    %214 = vector.extract_strided_slice %210 {offsets = [0, 32], sizes = [8, 32], strides = [1, 1]} : vector<8x96xf32> to vector<8x32xf32>
    %215 = vector.extract_strided_slice %210 {offsets = [0, 64], sizes = [8, 32], strides = [1, 1]} : vector<8x96xf32> to vector<8x32xf32>
    %216 = arith.mulf %214, %180 : vector<8x32xf32>
    %217 = arith.mulf %213, %212 : vector<8x32xf32>
    %218 = arith.addf %216, %217 : vector<8x32xf32>
    %219 = math.tanh %218 : vector<8x32xf32>
    %220 = arith.mulf %215, %219 : vector<8x32xf32>
    %221 = vector.extract_strided_slice %204 {offsets = [0, 0], sizes = [8, 96], strides = [1, 1]} : vector<8x128xf32> to vector<8x96xf32>
    %222 = arith.negf %221 : vector<8x96xf32>
    %223 = math.exp %222 : vector<8x96xf32>
    %cst_33 = arith.constant 1.000000e+00 : f32
    %224 = vector.broadcast %cst_33 : f32 to vector<8x96xf32>
    %225 = arith.addf %224, %223 : vector<8x96xf32>
    %226 = arith.divf %224, %225 : vector<8x96xf32>
    %227 = vector.extract_strided_slice %204 {offsets = [0, 96], sizes = [8, 32], strides = [1, 1]} : vector<8x128xf32> to vector<8x32xf32>
    %228 = math.tanh %227 : vector<8x32xf32>
    %229 = vector.extract_strided_slice %226 {offsets = [0, 0], sizes = [8, 32], strides = [1, 1]} : vector<8x96xf32> to vector<8x32xf32>
    %230 = vector.extract_strided_slice %226 {offsets = [0, 32], sizes = [8, 32], strides = [1, 1]} : vector<8x96xf32> to vector<8x32xf32>
    %231 = vector.extract_strided_slice %226 {offsets = [0, 64], sizes = [8, 32], strides = [1, 1]} : vector<8x96xf32> to vector<8x32xf32>
    %232 = arith.mulf %230, %196 : vector<8x32xf32>
    %233 = arith.mulf %229, %228 : vector<8x32xf32>
    %234 = arith.addf %232, %233 : vector<8x32xf32>
    %235 = math.tanh %234 : vector<8x32xf32>
    %236 = arith.mulf %231, %235 : vector<8x32xf32>
    %237 = vector.extract_strided_slice %5 {offsets = [48, 0], sizes = [8, 128], strides = [1, 1]} : vector<64x256xf32> to vector<8x128xf32>
    %cst_34 = arith.constant dense<0.000000e+00> : vector<8x128xf32>
    %238 = tpu.matmul %220, %6, %cst_34 {dimension_numbers = #tpu.dot_dimension_numbers<[1], [0], [0], [1], [0, 0, 1, 1], [], []>} : vector<8x32xf32>, vector<32x128xf32>, vector<8x128xf32> -> vector<8x128xf32>
    %239 = arith.addf %237, %238 : vector<8x128xf32>
    %240 = vector.extract_strided_slice %5 {offsets = [8, 128], sizes = [8, 128], strides = [1, 1]} : vector<64x256xf32> to vector<8x128xf32>
    %cst_35 = arith.constant dense<0.000000e+00> : vector<8x128xf32>
    %241 = tpu.matmul %236, %7, %cst_35 {dimension_numbers = #tpu.dot_dimension_numbers<[1], [0], [0], [1], [0, 0, 1, 1], [], []>} : vector<8x32xf32>, vector<32x128xf32>, vector<8x128xf32> -> vector<8x128xf32>
    %242 = arith.addf %240, %241 : vector<8x128xf32>
    %243 = vector.extract_strided_slice %239 {offsets = [0, 0], sizes = [8, 96], strides = [1, 1]} : vector<8x128xf32> to vector<8x96xf32>
    %244 = arith.negf %243 : vector<8x96xf32>
    %245 = math.exp %244 : vector<8x96xf32>
    %cst_36 = arith.constant 1.000000e+00 : f32
    %246 = vector.broadcast %cst_36 : f32 to vector<8x96xf32>
    %247 = arith.addf %246, %245 : vector<8x96xf32>
    %248 = arith.divf %246, %247 : vector<8x96xf32>
    %249 = vector.extract_strided_slice %239 {offsets = [0, 96], sizes = [8, 32], strides = [1, 1]} : vector<8x128xf32> to vector<8x32xf32>
    %250 = math.tanh %249 : vector<8x32xf32>
    %251 = vector.extract_strided_slice %248 {offsets = [0, 0], sizes = [8, 32], strides = [1, 1]} : vector<8x96xf32> to vector<8x32xf32>
    %252 = vector.extract_strided_slice %248 {offsets = [0, 32], sizes = [8, 32], strides = [1, 1]} : vector<8x96xf32> to vector<8x32xf32>
    %253 = vector.extract_strided_slice %248 {offsets = [0, 64], sizes = [8, 32], strides = [1, 1]} : vector<8x96xf32> to vector<8x32xf32>
    %254 = arith.mulf %252, %218 : vector<8x32xf32>
    %255 = arith.mulf %251, %250 : vector<8x32xf32>
    %256 = arith.addf %254, %255 : vector<8x32xf32>
    %257 = math.tanh %256 : vector<8x32xf32>
    %258 = arith.mulf %253, %257 : vector<8x32xf32>
    %259 = vector.extract_strided_slice %242 {offsets = [0, 0], sizes = [8, 96], strides = [1, 1]} : vector<8x128xf32> to vector<8x96xf32>
    %260 = arith.negf %259 : vector<8x96xf32>
    %261 = math.exp %260 : vector<8x96xf32>
    %cst_37 = arith.constant 1.000000e+00 : f32
    %262 = vector.broadcast %cst_37 : f32 to vector<8x96xf32>
    %263 = arith.addf %262, %261 : vector<8x96xf32>
    %264 = arith.divf %262, %263 : vector<8x96xf32>
    %265 = vector.extract_strided_slice %242 {offsets = [0, 96], sizes = [8, 32], strides = [1, 1]} : vector<8x128xf32> to vector<8x32xf32>
    %266 = math.tanh %265 : vector<8x32xf32>
    %267 = vector.extract_strided_slice %264 {offsets = [0, 0], sizes = [8, 32], strides = [1, 1]} : vector<8x96xf32> to vector<8x32xf32>
    %268 = vector.extract_strided_slice %264 {offsets = [0, 32], sizes = [8, 32], strides = [1, 1]} : vector<8x96xf32> to vector<8x32xf32>
    %269 = vector.extract_strided_slice %264 {offsets = [0, 64], sizes = [8, 32], strides = [1, 1]} : vector<8x96xf32> to vector<8x32xf32>
    %270 = arith.mulf %268, %234 : vector<8x32xf32>
    %271 = arith.mulf %267, %266 : vector<8x32xf32>
    %272 = arith.addf %270, %271 : vector<8x32xf32>
    %273 = math.tanh %272 : vector<8x32xf32>
    %274 = arith.mulf %269, %273 : vector<8x32xf32>
    %275 = vector.extract_strided_slice %5 {offsets = [56, 0], sizes = [8, 128], strides = [1, 1]} : vector<64x256xf32> to vector<8x128xf32>
    %cst_38 = arith.constant dense<0.000000e+00> : vector<8x128xf32>
    %276 = tpu.matmul %258, %6, %cst_38 {dimension_numbers = #tpu.dot_dimension_numbers<[1], [0], [0], [1], [0, 0, 1, 1], [], []>} : vector<8x32xf32>, vector<32x128xf32>, vector<8x128xf32> -> vector<8x128xf32>
    %277 = arith.addf %275, %276 : vector<8x128xf32>
    %278 = vector.extract_strided_slice %5 {offsets = [0, 128], sizes = [8, 128], strides = [1, 1]} : vector<64x256xf32> to vector<8x128xf32>
    %cst_39 = arith.constant dense<0.000000e+00> : vector<8x128xf32>
    %279 = tpu.matmul %274, %7, %cst_39 {dimension_numbers = #tpu.dot_dimension_numbers<[1], [0], [0], [1], [0, 0, 1, 1], [], []>} : vector<8x32xf32>, vector<32x128xf32>, vector<8x128xf32> -> vector<8x128xf32>
    %280 = arith.addf %278, %279 : vector<8x128xf32>
    %281 = vector.extract_strided_slice %277 {offsets = [0, 0], sizes = [8, 96], strides = [1, 1]} : vector<8x128xf32> to vector<8x96xf32>
    %282 = arith.negf %281 : vector<8x96xf32>
    %283 = math.exp %282 : vector<8x96xf32>
    %cst_40 = arith.constant 1.000000e+00 : f32
    %284 = vector.broadcast %cst_40 : f32 to vector<8x96xf32>
    %285 = arith.addf %284, %283 : vector<8x96xf32>
    %286 = arith.divf %284, %285 : vector<8x96xf32>
    %287 = vector.extract_strided_slice %277 {offsets = [0, 96], sizes = [8, 32], strides = [1, 1]} : vector<8x128xf32> to vector<8x32xf32>
    %288 = math.tanh %287 : vector<8x32xf32>
    %289 = vector.extract_strided_slice %286 {offsets = [0, 0], sizes = [8, 32], strides = [1, 1]} : vector<8x96xf32> to vector<8x32xf32>
    %290 = vector.extract_strided_slice %286 {offsets = [0, 32], sizes = [8, 32], strides = [1, 1]} : vector<8x96xf32> to vector<8x32xf32>
    %291 = vector.extract_strided_slice %286 {offsets = [0, 64], sizes = [8, 32], strides = [1, 1]} : vector<8x96xf32> to vector<8x32xf32>
    %292 = arith.mulf %290, %256 : vector<8x32xf32>
    %293 = arith.mulf %289, %288 : vector<8x32xf32>
    %294 = arith.addf %292, %293 : vector<8x32xf32>
    %295 = math.tanh %294 : vector<8x32xf32>
    %296 = arith.mulf %291, %295 : vector<8x32xf32>
    %297 = vector.extract_strided_slice %280 {offsets = [0, 0], sizes = [8, 96], strides = [1, 1]} : vector<8x128xf32> to vector<8x96xf32>
    %298 = arith.negf %297 : vector<8x96xf32>
    %299 = math.exp %298 : vector<8x96xf32>
    %cst_41 = arith.constant 1.000000e+00 : f32
    %300 = vector.broadcast %cst_41 : f32 to vector<8x96xf32>
    %301 = arith.addf %300, %299 : vector<8x96xf32>
    %302 = arith.divf %300, %301 : vector<8x96xf32>
    %303 = vector.extract_strided_slice %280 {offsets = [0, 96], sizes = [8, 32], strides = [1, 1]} : vector<8x128xf32> to vector<8x32xf32>
    %304 = math.tanh %303 : vector<8x32xf32>
    %305 = vector.extract_strided_slice %302 {offsets = [0, 0], sizes = [8, 32], strides = [1, 1]} : vector<8x96xf32> to vector<8x32xf32>
    %306 = vector.extract_strided_slice %302 {offsets = [0, 32], sizes = [8, 32], strides = [1, 1]} : vector<8x96xf32> to vector<8x32xf32>
    %307 = vector.extract_strided_slice %302 {offsets = [0, 64], sizes = [8, 32], strides = [1, 1]} : vector<8x96xf32> to vector<8x32xf32>
    %308 = arith.mulf %306, %272 : vector<8x32xf32>
    %309 = arith.mulf %305, %304 : vector<8x32xf32>
    %310 = arith.addf %308, %309 : vector<8x32xf32>
    %311 = math.tanh %310 : vector<8x32xf32>
    %312 = arith.mulf %307, %311 : vector<8x32xf32>
    %313 = tpu.concatenate %30, %68, %106, %144, %182, %220, %258, %296 in 0 : vector<8x32xf32>, vector<8x32xf32>, vector<8x32xf32>, vector<8x32xf32>, vector<8x32xf32>, vector<8x32xf32>, vector<8x32xf32>, vector<8x32xf32> -> vector<64x32xf32>
    %314 = tpu.concatenate %312, %274, %236, %198, %160, %122, %84, %46 in 0 : vector<8x32xf32>, vector<8x32xf32>, vector<8x32xf32>, vector<8x32xf32>, vector<8x32xf32>, vector<8x32xf32>, vector<8x32xf32>, vector<8x32xf32> -> vector<64x32xf32>
    %315 = tpu.concatenate %313, %314 in 1 : vector<64x32xf32>, vector<64x32xf32> -> vector<64x64xf32>
    %c0_42 = arith.constant 0 : index
    %c0_43 = arith.constant 0 : index
    %316 = vector.load %arg5[%c0_42, %c0_43] : memref<64x128xf32, #tpu.memory_space<vmem>>, vector<64x128xf32>
    %cst_44 = arith.constant dense<0.000000e+00> : vector<64x128xf32>
    %317 = tpu.matmul %315, %316, %cst_44 {dimension_numbers = #tpu.dot_dimension_numbers<[1], [0], [0], [1], [0, 0, 1, 1], [], []>} : vector<64x64xf32>, vector<64x128xf32>, vector<64x128xf32> -> vector<64x128xf32>
    %c0_45 = arith.constant 0 : index
    %c0_46 = arith.constant 0 : index
    %318 = vector.load %arg7[%c0_45, %c0_46] : memref<1x128xf32, #tpu.memory_space<vmem>>, vector<1x128xf32>
    %319 = vector.broadcast %318 : vector<1x128xf32> to vector<64x128xf32>
    %320 = arith.addf %317, %319 : vector<64x128xf32>
    %321 = vector.extract_strided_slice %315 {offsets = [56, 0], sizes = [8, 64], strides = [1, 1]} : vector<64x64xf32> to vector<8x64xf32>
    %c0_47 = arith.constant 0 : index
    %c0_48 = arith.constant 0 : index
    %322 = vector.load %arg6[%c0_47, %c0_48] : memref<64x128xf32, #tpu.memory_space<vmem>>, vector<64x128xf32>
    %cst_49 = arith.constant dense<0.000000e+00> : vector<8x128xf32>
    %323 = tpu.matmul %321, %322, %cst_49 {dimension_numbers = #tpu.dot_dimension_numbers<[1], [0], [0], [1], [0, 0, 1, 1], [], []>} : vector<8x64xf32>, vector<64x128xf32>, vector<8x128xf32> -> vector<8x128xf32>
    %c0_50 = arith.constant 0 : index
    %c0_51 = arith.constant 0 : index
    %324 = vector.load %arg8[%c0_50, %c0_51] : memref<1x128xf32, #tpu.memory_space<vmem>>, vector<1x128xf32>
    %325 = vector.broadcast %324 : vector<1x128xf32> to vector<8x128xf32>
    %326 = arith.addf %323, %325 : vector<8x128xf32>
    %c0_52 = arith.constant 0 : index
    %c0_53 = arith.constant 0 : index
    %327 = vector.load %arg9[%c0_52, %c0_53] : memref<32x128xf32, #tpu.memory_space<vmem>>, vector<32x128xf32>
    %328 = vector.extract_strided_slice %320 {offsets = [0, 0], sizes = [8, 128], strides = [1, 1]} : vector<64x128xf32> to vector<8x128xf32>
    %cst_54 = arith.constant dense<0.000000e+00> : vector<8x128xf32>
    %329 = tpu.matmul %8, %327, %cst_54 {dimension_numbers = #tpu.dot_dimension_numbers<[1], [0], [0], [1], [0, 0, 1, 1], [], []>} : vector<8x32xf32>, vector<32x128xf32>, vector<8x128xf32> -> vector<8x128xf32>
    %330 = arith.addf %328, %329 : vector<8x128xf32>
    %331 = vector.extract_strided_slice %330 {offsets = [0, 0], sizes = [8, 96], strides = [1, 1]} : vector<8x128xf32> to vector<8x96xf32>
    %332 = arith.negf %331 : vector<8x96xf32>
    %333 = math.exp %332 : vector<8x96xf32>
    %cst_55 = arith.constant 1.000000e+00 : f32
    %334 = vector.broadcast %cst_55 : f32 to vector<8x96xf32>
    %335 = arith.addf %334, %333 : vector<8x96xf32>
    %336 = arith.divf %334, %335 : vector<8x96xf32>
    %337 = vector.extract_strided_slice %330 {offsets = [0, 96], sizes = [8, 32], strides = [1, 1]} : vector<8x128xf32> to vector<8x32xf32>
    %338 = math.tanh %337 : vector<8x32xf32>
    %339 = vector.extract_strided_slice %336 {offsets = [0, 0], sizes = [8, 32], strides = [1, 1]} : vector<8x96xf32> to vector<8x32xf32>
    %340 = vector.extract_strided_slice %336 {offsets = [0, 32], sizes = [8, 32], strides = [1, 1]} : vector<8x96xf32> to vector<8x32xf32>
    %341 = vector.extract_strided_slice %336 {offsets = [0, 64], sizes = [8, 32], strides = [1, 1]} : vector<8x96xf32> to vector<8x32xf32>
    %342 = arith.mulf %340, %8 : vector<8x32xf32>
    %343 = arith.mulf %339, %338 : vector<8x32xf32>
    %344 = arith.addf %342, %343 : vector<8x32xf32>
    %345 = math.tanh %344 : vector<8x32xf32>
    %346 = arith.mulf %341, %345 : vector<8x32xf32>
    %347 = vector.extract_strided_slice %320 {offsets = [8, 0], sizes = [8, 128], strides = [1, 1]} : vector<64x128xf32> to vector<8x128xf32>
    %cst_56 = arith.constant dense<0.000000e+00> : vector<8x128xf32>
    %348 = tpu.matmul %346, %327, %cst_56 {dimension_numbers = #tpu.dot_dimension_numbers<[1], [0], [0], [1], [0, 0, 1, 1], [], []>} : vector<8x32xf32>, vector<32x128xf32>, vector<8x128xf32> -> vector<8x128xf32>
    %349 = arith.addf %347, %348 : vector<8x128xf32>
    %350 = vector.extract_strided_slice %349 {offsets = [0, 0], sizes = [8, 96], strides = [1, 1]} : vector<8x128xf32> to vector<8x96xf32>
    %351 = arith.negf %350 : vector<8x96xf32>
    %352 = math.exp %351 : vector<8x96xf32>
    %cst_57 = arith.constant 1.000000e+00 : f32
    %353 = vector.broadcast %cst_57 : f32 to vector<8x96xf32>
    %354 = arith.addf %353, %352 : vector<8x96xf32>
    %355 = arith.divf %353, %354 : vector<8x96xf32>
    %356 = vector.extract_strided_slice %349 {offsets = [0, 96], sizes = [8, 32], strides = [1, 1]} : vector<8x128xf32> to vector<8x32xf32>
    %357 = math.tanh %356 : vector<8x32xf32>
    %358 = vector.extract_strided_slice %355 {offsets = [0, 0], sizes = [8, 32], strides = [1, 1]} : vector<8x96xf32> to vector<8x32xf32>
    %359 = vector.extract_strided_slice %355 {offsets = [0, 32], sizes = [8, 32], strides = [1, 1]} : vector<8x96xf32> to vector<8x32xf32>
    %360 = vector.extract_strided_slice %355 {offsets = [0, 64], sizes = [8, 32], strides = [1, 1]} : vector<8x96xf32> to vector<8x32xf32>
    %361 = arith.mulf %359, %344 : vector<8x32xf32>
    %362 = arith.mulf %358, %357 : vector<8x32xf32>
    %363 = arith.addf %361, %362 : vector<8x32xf32>
    %364 = math.tanh %363 : vector<8x32xf32>
    %365 = arith.mulf %360, %364 : vector<8x32xf32>
    %366 = vector.extract_strided_slice %320 {offsets = [16, 0], sizes = [8, 128], strides = [1, 1]} : vector<64x128xf32> to vector<8x128xf32>
    %cst_58 = arith.constant dense<0.000000e+00> : vector<8x128xf32>
    %367 = tpu.matmul %365, %327, %cst_58 {dimension_numbers = #tpu.dot_dimension_numbers<[1], [0], [0], [1], [0, 0, 1, 1], [], []>} : vector<8x32xf32>, vector<32x128xf32>, vector<8x128xf32> -> vector<8x128xf32>
    %368 = arith.addf %366, %367 : vector<8x128xf32>
    %369 = vector.extract_strided_slice %368 {offsets = [0, 0], sizes = [8, 96], strides = [1, 1]} : vector<8x128xf32> to vector<8x96xf32>
    %370 = arith.negf %369 : vector<8x96xf32>
    %371 = math.exp %370 : vector<8x96xf32>
    %cst_59 = arith.constant 1.000000e+00 : f32
    %372 = vector.broadcast %cst_59 : f32 to vector<8x96xf32>
    %373 = arith.addf %372, %371 : vector<8x96xf32>
    %374 = arith.divf %372, %373 : vector<8x96xf32>
    %375 = vector.extract_strided_slice %368 {offsets = [0, 96], sizes = [8, 32], strides = [1, 1]} : vector<8x128xf32> to vector<8x32xf32>
    %376 = math.tanh %375 : vector<8x32xf32>
    %377 = vector.extract_strided_slice %374 {offsets = [0, 0], sizes = [8, 32], strides = [1, 1]} : vector<8x96xf32> to vector<8x32xf32>
    %378 = vector.extract_strided_slice %374 {offsets = [0, 32], sizes = [8, 32], strides = [1, 1]} : vector<8x96xf32> to vector<8x32xf32>
    %379 = vector.extract_strided_slice %374 {offsets = [0, 64], sizes = [8, 32], strides = [1, 1]} : vector<8x96xf32> to vector<8x32xf32>
    %380 = arith.mulf %378, %363 : vector<8x32xf32>
    %381 = arith.mulf %377, %376 : vector<8x32xf32>
    %382 = arith.addf %380, %381 : vector<8x32xf32>
    %383 = math.tanh %382 : vector<8x32xf32>
    %384 = arith.mulf %379, %383 : vector<8x32xf32>
    %385 = vector.extract_strided_slice %320 {offsets = [24, 0], sizes = [8, 128], strides = [1, 1]} : vector<64x128xf32> to vector<8x128xf32>
    %cst_60 = arith.constant dense<0.000000e+00> : vector<8x128xf32>
    %386 = tpu.matmul %384, %327, %cst_60 {dimension_numbers = #tpu.dot_dimension_numbers<[1], [0], [0], [1], [0, 0, 1, 1], [], []>} : vector<8x32xf32>, vector<32x128xf32>, vector<8x128xf32> -> vector<8x128xf32>
    %387 = arith.addf %385, %386 : vector<8x128xf32>
    %388 = vector.extract_strided_slice %387 {offsets = [0, 0], sizes = [8, 96], strides = [1, 1]} : vector<8x128xf32> to vector<8x96xf32>
    %389 = arith.negf %388 : vector<8x96xf32>
    %390 = math.exp %389 : vector<8x96xf32>
    %cst_61 = arith.constant 1.000000e+00 : f32
    %391 = vector.broadcast %cst_61 : f32 to vector<8x96xf32>
    %392 = arith.addf %391, %390 : vector<8x96xf32>
    %393 = arith.divf %391, %392 : vector<8x96xf32>
    %394 = vector.extract_strided_slice %387 {offsets = [0, 96], sizes = [8, 32], strides = [1, 1]} : vector<8x128xf32> to vector<8x32xf32>
    %395 = math.tanh %394 : vector<8x32xf32>
    %396 = vector.extract_strided_slice %393 {offsets = [0, 0], sizes = [8, 32], strides = [1, 1]} : vector<8x96xf32> to vector<8x32xf32>
    %397 = vector.extract_strided_slice %393 {offsets = [0, 32], sizes = [8, 32], strides = [1, 1]} : vector<8x96xf32> to vector<8x32xf32>
    %398 = vector.extract_strided_slice %393 {offsets = [0, 64], sizes = [8, 32], strides = [1, 1]} : vector<8x96xf32> to vector<8x32xf32>
    %399 = arith.mulf %397, %382 : vector<8x32xf32>
    %400 = arith.mulf %396, %395 : vector<8x32xf32>
    %401 = arith.addf %399, %400 : vector<8x32xf32>
    %402 = math.tanh %401 : vector<8x32xf32>
    %403 = arith.mulf %398, %402 : vector<8x32xf32>
    %404 = vector.extract_strided_slice %320 {offsets = [32, 0], sizes = [8, 128], strides = [1, 1]} : vector<64x128xf32> to vector<8x128xf32>
    %cst_62 = arith.constant dense<0.000000e+00> : vector<8x128xf32>
    %405 = tpu.matmul %403, %327, %cst_62 {dimension_numbers = #tpu.dot_dimension_numbers<[1], [0], [0], [1], [0, 0, 1, 1], [], []>} : vector<8x32xf32>, vector<32x128xf32>, vector<8x128xf32> -> vector<8x128xf32>
    %406 = arith.addf %404, %405 : vector<8x128xf32>
    %407 = vector.extract_strided_slice %406 {offsets = [0, 0], sizes = [8, 96], strides = [1, 1]} : vector<8x128xf32> to vector<8x96xf32>
    %408 = arith.negf %407 : vector<8x96xf32>
    %409 = math.exp %408 : vector<8x96xf32>
    %cst_63 = arith.constant 1.000000e+00 : f32
    %410 = vector.broadcast %cst_63 : f32 to vector<8x96xf32>
    %411 = arith.addf %410, %409 : vector<8x96xf32>
    %412 = arith.divf %410, %411 : vector<8x96xf32>
    %413 = vector.extract_strided_slice %406 {offsets = [0, 96], sizes = [8, 32], strides = [1, 1]} : vector<8x128xf32> to vector<8x32xf32>
    %414 = math.tanh %413 : vector<8x32xf32>
    %415 = vector.extract_strided_slice %412 {offsets = [0, 0], sizes = [8, 32], strides = [1, 1]} : vector<8x96xf32> to vector<8x32xf32>
    %416 = vector.extract_strided_slice %412 {offsets = [0, 32], sizes = [8, 32], strides = [1, 1]} : vector<8x96xf32> to vector<8x32xf32>
    %417 = vector.extract_strided_slice %412 {offsets = [0, 64], sizes = [8, 32], strides = [1, 1]} : vector<8x96xf32> to vector<8x32xf32>
    %418 = arith.mulf %416, %401 : vector<8x32xf32>
    %419 = arith.mulf %415, %414 : vector<8x32xf32>
    %420 = arith.addf %418, %419 : vector<8x32xf32>
    %421 = math.tanh %420 : vector<8x32xf32>
    %422 = arith.mulf %417, %421 : vector<8x32xf32>
    %423 = vector.extract_strided_slice %320 {offsets = [40, 0], sizes = [8, 128], strides = [1, 1]} : vector<64x128xf32> to vector<8x128xf32>
    %cst_64 = arith.constant dense<0.000000e+00> : vector<8x128xf32>
    %424 = tpu.matmul %422, %327, %cst_64 {dimension_numbers = #tpu.dot_dimension_numbers<[1], [0], [0], [1], [0, 0, 1, 1], [], []>} : vector<8x32xf32>, vector<32x128xf32>, vector<8x128xf32> -> vector<8x128xf32>
    %425 = arith.addf %423, %424 : vector<8x128xf32>
    %426 = vector.extract_strided_slice %425 {offsets = [0, 0], sizes = [8, 96], strides = [1, 1]} : vector<8x128xf32> to vector<8x96xf32>
    %427 = arith.negf %426 : vector<8x96xf32>
    %428 = math.exp %427 : vector<8x96xf32>
    %cst_65 = arith.constant 1.000000e+00 : f32
    %429 = vector.broadcast %cst_65 : f32 to vector<8x96xf32>
    %430 = arith.addf %429, %428 : vector<8x96xf32>
    %431 = arith.divf %429, %430 : vector<8x96xf32>
    %432 = vector.extract_strided_slice %425 {offsets = [0, 96], sizes = [8, 32], strides = [1, 1]} : vector<8x128xf32> to vector<8x32xf32>
    %433 = math.tanh %432 : vector<8x32xf32>
    %434 = vector.extract_strided_slice %431 {offsets = [0, 0], sizes = [8, 32], strides = [1, 1]} : vector<8x96xf32> to vector<8x32xf32>
    %435 = vector.extract_strided_slice %431 {offsets = [0, 32], sizes = [8, 32], strides = [1, 1]} : vector<8x96xf32> to vector<8x32xf32>
    %436 = vector.extract_strided_slice %431 {offsets = [0, 64], sizes = [8, 32], strides = [1, 1]} : vector<8x96xf32> to vector<8x32xf32>
    %437 = arith.mulf %435, %420 : vector<8x32xf32>
    %438 = arith.mulf %434, %433 : vector<8x32xf32>
    %439 = arith.addf %437, %438 : vector<8x32xf32>
    %440 = math.tanh %439 : vector<8x32xf32>
    %441 = arith.mulf %436, %440 : vector<8x32xf32>
    %442 = vector.extract_strided_slice %320 {offsets = [48, 0], sizes = [8, 128], strides = [1, 1]} : vector<64x128xf32> to vector<8x128xf32>
    %cst_66 = arith.constant dense<0.000000e+00> : vector<8x128xf32>
    %443 = tpu.matmul %441, %327, %cst_66 {dimension_numbers = #tpu.dot_dimension_numbers<[1], [0], [0], [1], [0, 0, 1, 1], [], []>} : vector<8x32xf32>, vector<32x128xf32>, vector<8x128xf32> -> vector<8x128xf32>
    %444 = arith.addf %442, %443 : vector<8x128xf32>
    %445 = vector.extract_strided_slice %444 {offsets = [0, 0], sizes = [8, 96], strides = [1, 1]} : vector<8x128xf32> to vector<8x96xf32>
    %446 = arith.negf %445 : vector<8x96xf32>
    %447 = math.exp %446 : vector<8x96xf32>
    %cst_67 = arith.constant 1.000000e+00 : f32
    %448 = vector.broadcast %cst_67 : f32 to vector<8x96xf32>
    %449 = arith.addf %448, %447 : vector<8x96xf32>
    %450 = arith.divf %448, %449 : vector<8x96xf32>
    %451 = vector.extract_strided_slice %444 {offsets = [0, 96], sizes = [8, 32], strides = [1, 1]} : vector<8x128xf32> to vector<8x32xf32>
    %452 = math.tanh %451 : vector<8x32xf32>
    %453 = vector.extract_strided_slice %450 {offsets = [0, 0], sizes = [8, 32], strides = [1, 1]} : vector<8x96xf32> to vector<8x32xf32>
    %454 = vector.extract_strided_slice %450 {offsets = [0, 32], sizes = [8, 32], strides = [1, 1]} : vector<8x96xf32> to vector<8x32xf32>
    %455 = vector.extract_strided_slice %450 {offsets = [0, 64], sizes = [8, 32], strides = [1, 1]} : vector<8x96xf32> to vector<8x32xf32>
    %456 = arith.mulf %454, %439 : vector<8x32xf32>
    %457 = arith.mulf %453, %452 : vector<8x32xf32>
    %458 = arith.addf %456, %457 : vector<8x32xf32>
    %459 = math.tanh %458 : vector<8x32xf32>
    %460 = arith.mulf %455, %459 : vector<8x32xf32>
    %461 = vector.extract_strided_slice %320 {offsets = [56, 0], sizes = [8, 128], strides = [1, 1]} : vector<64x128xf32> to vector<8x128xf32>
    %cst_68 = arith.constant dense<0.000000e+00> : vector<8x128xf32>
    %462 = tpu.matmul %460, %327, %cst_68 {dimension_numbers = #tpu.dot_dimension_numbers<[1], [0], [0], [1], [0, 0, 1, 1], [], []>} : vector<8x32xf32>, vector<32x128xf32>, vector<8x128xf32> -> vector<8x128xf32>
    %463 = arith.addf %461, %462 : vector<8x128xf32>
    %464 = vector.extract_strided_slice %463 {offsets = [0, 0], sizes = [8, 96], strides = [1, 1]} : vector<8x128xf32> to vector<8x96xf32>
    %465 = arith.negf %464 : vector<8x96xf32>
    %466 = math.exp %465 : vector<8x96xf32>
    %cst_69 = arith.constant 1.000000e+00 : f32
    %467 = vector.broadcast %cst_69 : f32 to vector<8x96xf32>
    %468 = arith.addf %467, %466 : vector<8x96xf32>
    %469 = arith.divf %467, %468 : vector<8x96xf32>
    %470 = vector.extract_strided_slice %463 {offsets = [0, 96], sizes = [8, 32], strides = [1, 1]} : vector<8x128xf32> to vector<8x32xf32>
    %471 = math.tanh %470 : vector<8x32xf32>
    %472 = vector.extract_strided_slice %469 {offsets = [0, 0], sizes = [8, 32], strides = [1, 1]} : vector<8x96xf32> to vector<8x32xf32>
    %473 = vector.extract_strided_slice %469 {offsets = [0, 32], sizes = [8, 32], strides = [1, 1]} : vector<8x96xf32> to vector<8x32xf32>
    %474 = vector.extract_strided_slice %469 {offsets = [0, 64], sizes = [8, 32], strides = [1, 1]} : vector<8x96xf32> to vector<8x32xf32>
    %475 = arith.mulf %473, %458 : vector<8x32xf32>
    %476 = arith.mulf %472, %471 : vector<8x32xf32>
    %477 = arith.addf %475, %476 : vector<8x32xf32>
    %478 = math.tanh %477 : vector<8x32xf32>
    %479 = arith.mulf %474, %478 : vector<8x32xf32>
    %480 = vector.extract_strided_slice %326 {offsets = [0, 0], sizes = [8, 96], strides = [1, 1]} : vector<8x128xf32> to vector<8x96xf32>
    %481 = arith.negf %480 : vector<8x96xf32>
    %482 = math.exp %481 : vector<8x96xf32>
    %cst_70 = arith.constant 1.000000e+00 : f32
    %483 = vector.broadcast %cst_70 : f32 to vector<8x96xf32>
    %484 = arith.addf %483, %482 : vector<8x96xf32>
    %485 = arith.divf %483, %484 : vector<8x96xf32>
    %486 = vector.extract_strided_slice %326 {offsets = [0, 96], sizes = [8, 32], strides = [1, 1]} : vector<8x128xf32> to vector<8x32xf32>
    %487 = math.tanh %486 : vector<8x32xf32>
    %488 = vector.extract_strided_slice %485 {offsets = [0, 0], sizes = [8, 32], strides = [1, 1]} : vector<8x96xf32> to vector<8x32xf32>
    %489 = vector.extract_strided_slice %485 {offsets = [0, 32], sizes = [8, 32], strides = [1, 1]} : vector<8x96xf32> to vector<8x32xf32>
    %490 = vector.extract_strided_slice %485 {offsets = [0, 64], sizes = [8, 32], strides = [1, 1]} : vector<8x96xf32> to vector<8x32xf32>
    %491 = arith.mulf %489, %8 : vector<8x32xf32>
    %492 = arith.mulf %488, %487 : vector<8x32xf32>
    %493 = arith.addf %491, %492 : vector<8x32xf32>
    %494 = math.tanh %493 : vector<8x32xf32>
    %495 = arith.mulf %490, %494 : vector<8x32xf32>
    %496 = tpu.concatenate %479, %495 in 1 : vector<8x32xf32>, vector<8x32xf32> -> vector<8x64xf32>
    %c0_71 = arith.constant 0 : index
    %c0_72 = arith.constant 0 : index
    %497 = vector.load %arg10[%c0_71, %c0_72] : memref<64x32xf32, #tpu.memory_space<vmem>>, vector<64x32xf32>
    %cst_73 = arith.constant dense<0.000000e+00> : vector<8x32xf32>
    %498 = tpu.matmul %496, %497, %cst_73 {dimension_numbers = #tpu.dot_dimension_numbers<[1], [0], [0], [1], [0, 0, 1, 1], [], []>} : vector<8x64xf32>, vector<64x32xf32>, vector<8x32xf32> -> vector<8x32xf32>
    %c0_74 = arith.constant 0 : index
    %c0_75 = arith.constant 0 : index
    %499 = vector.load %arg11[%c0_74, %c0_75] : memref<1x32xf32, #tpu.memory_space<vmem>>, vector<1x32xf32>
    %500 = vector.broadcast %499 : vector<1x32xf32> to vector<8x32xf32>
    %501 = arith.addf %498, %500 : vector<8x32xf32>
    %c0_76 = arith.constant 0 : index
    %c0_77 = arith.constant 0 : index
    %502 = vector.load %arg12[%c0_76, %c0_77] : memref<8x32xf32, #tpu.memory_space<vmem>>, vector<8x32xf32>
    tpu.vector_store %arg12[%c0_76, %c0_77], %501 {strides = array<i32>} : memref<8x32xf32, #tpu.memory_space<vmem>>, vector<8x32xf32>,
    return
  }
}

</mosaic_0001>

<llo_original>
// kernel: temporal_analysis_forward.1
$region0: #{temporal_analysis_forward.1}
  #allocation0 [shape = 'u32[]', space=smem, size = 0x4, offset = 0x4, fixed_abs, tag = 'smem constant byte address 0x4 - core index']
  #allocation1 [shape = 'u32[144,128]{1,0:T(1,128)}', space=vmem, size = 0x12000, scoped, tag = 'internal scratch']
  %s0 = inlined_call_operand.vmem [shape: f32[64,32], index: 0, kind: input, shape index: {}]
  %s1 = inlined_call_operand.vmem [shape: f32[32,256], index: 1, kind: input, shape index: {}]
  %s2 = inlined_call_operand.hbm [shape: f32[32,128], index: 2, kind: input, shape index: {}]
  %s3 = inlined_call_operand.hbm [shape: f32[32,128], index: 3, kind: input, shape index: {}]
  %s4 = inlined_call_operand.vmem [shape: f32[1,256], index: 4, kind: input, shape index: {}]
  %s5 = inlined_call_operand.vmem [shape: f32[64,128], index: 5, kind: input, shape index: {}]
  %s6 = inlined_call_operand.vmem [shape: f32[64,128], index: 6, kind: input, shape index: {}]
  %s7 = inlined_call_operand.hbm [shape: f32[1,128], index: 7, kind: input, shape index: {}]
  %s8 = inlined_call_operand.hbm [shape: f32[1,128], index: 8, kind: input, shape index: {}]
  %s9 = inlined_call_operand.hbm [shape: f32[32,128], index: 9, kind: input, shape index: {}]
  %s10 = inlined_call_operand.vmem [shape: f32[64,32], index: 10, kind: input, shape index: {}]
  %s11 = inlined_call_operand.hbm [shape: f32[1,32], index: 11, kind: input, shape index: {}]
  %s12 = inlined_call_operand.vmem [shape: f32[8,32], index: 12, kind: output, shape index: {}]
  %s13 = sld [smem:[#allocation0]]
  $region82: #{temporal_analysis_forward.1} parent=0
    _
  %s15 = ssub.s32 1, %s13
  %s16 = scalar_select 0, %s15, %s13
  $region1: #{temporal_analysis_forward.1} parent=0
    #allocation2 [shape = 'u8[16384]{0}', space=vmem, size = 0x4000, scoped, tag = 'input window, operand 2, single buffered']
    #allocation3 [shape = 's32[1]{0}', space=sflag, size = 0x4, scoped, tag = 'scoped memory for temporal_analysis_forward.1']
    #allocation4 [shape = 'u8[16384]{0}', space=vmem, size = 0x4000, scoped, tag = 'input window, operand 3, single buffered']
    #allocation5 [shape = 's32[1]{0}', space=sflag, size = 0x4, scoped, tag = 'scoped memory for temporal_analysis_forward.1']
    #allocation6 [shape = 'u8[512]{0}', space=vmem, size = 0x400, scoped, tag = 'input window, operand 7, single buffered']
    #allocation7 [shape = 'u8[512]{0}', space=vmem, size = 0x400, scoped, tag = 'input window, operand 8, single buffered']
    #allocation8 [shape = 's32[1]{0}', space=sflag, size = 0x4, scoped, tag = 'scoped memory for temporal_analysis_forward.1']
    #allocation9 [shape = 'u8[16384]{0}', space=vmem, size = 0x4000, scoped, tag = 'input window, operand 9, single buffered']
    #allocation10 [shape = 'u8[512]{0}', space=vmem, size = 0x400, scoped, tag = 'input window, operand 11, single buffered']
    #allocation11 [shape = 's32[1]{0}', space=sflag, size = 0x4, scoped, tag = 'scoped memory for temporal_analysis_forward.1']
    %17 = vsyncpa [#allocation3], 0
    %18 = vsyncpa [#allocation5], 0
    %19 = vsyncpa [#allocation8], 0
    %20 = vsyncpa [#allocation11], 0
    // Predicated region
    $region2: #{temporal_analysis_forward.1} parent=1 // pred_check
      _
    $region3: #{temporal_analysis_forward.1} parent=1 // pred_check_branch
      %22 = sbr.rel (0) target = $region5
    $region4: #{temporal_analysis_forward.1} parent=1 // pred_region
      _
    $region5: #{temporal_analysis_forward.1} parent=1 // pred_fallthru
      _
    // Predicated region
    $region6: #{temporal_analysis_forward.1} parent=1 // pred_check
      _
    $region7: #{temporal_analysis_forward.1} parent=1 // pred_check_branch
      %24 = sbr.rel (0) target = $region9
    $region8: #{temporal_analysis_forward.1} parent=1 // pred_region
      _
    $region9: #{temporal_analysis_forward.1} parent=1 // pred_fallthru
      _
    // Predicated region
    $region10: #{temporal_analysis_forward.1} parent=1 // pred_check
      _
    $region11: #{temporal_analysis_forward.1} parent=1 // pred_check_branch
      %26 = sbr.rel (0) target = $region13
    $region12: #{temporal_analysis_forward.1} parent=1 // pred_region
      %s28 = ssub.s32 512, 512
      %29 = vsyncadd [#allocation3], %s28
      %s30 = sshll.u32 [#allocation2], 4
      %s31 = int_to_ptr.vmem [resolvable:$true] %s30
      %36 = dma.hbm_to_vmem [thread:$0]  %s2, 512, %s31, [#allocation3], 128, 128, 8
    $region13: #{temporal_analysis_forward.1} parent=1 // pred_fallthru
      _
    // Predicated region
    $region14: #{temporal_analysis_forward.1} parent=1 // pred_check
      _
    $region15: #{temporal_analysis_forward.1} parent=1 // pred_check_branch
      %38 = sbr.rel (0) target = $region17
    $region16: #{temporal_analysis_forward.1} parent=1 // pred_region
      %s40 = ssub.s32 512, 512
      %41 = vsyncadd [#allocation5], %s40
      %s42 = sshll.u32 [#allocation4], 4
      %s43 = int_to_ptr.vmem [resolvable:$true] %s42
      %48 = dma.hbm_to_vmem [thread:$0]  %s3, 512, %s43, [#allocation5], 128, 128, 8
    $region17: #{temporal_analysis_forward.1} parent=1 // pred_fallthru
      _
    // Predicated region
    $region18: #{temporal_analysis_forward.1} parent=1 // pred_check
      _
    $region19: #{temporal_analysis_forward.1} parent=1 // pred_check_branch
      %50 = sbr.rel (0) target = $region21
    $region20: #{temporal_analysis_forward.1} parent=1 // pred_region
      _
    $region21: #{temporal_analysis_forward.1} parent=1 // pred_fallthru
      _
    // Predicated region
    $region22: #{temporal_analysis_forward.1} parent=1 // pred_check
      _
    $region23: #{temporal_analysis_forward.1} parent=1 // pred_check_branch
      %52 = sbr.rel (0) target = $region25
    $region24: #{temporal_analysis_forward.1} parent=1 // pred_region
      _
    $region25: #{temporal_analysis_forward.1} parent=1 // pred_fallthru
      _
    // Predicated region
    $region26: #{temporal_analysis_forward.1} parent=1 // pred_check
      _
    $region27: #{temporal_analysis_forward.1} parent=1 // pred_check_branch
      %54 = sbr.rel (0) target = $region29
    $region28: #{temporal_analysis_forward.1} parent=1 // pred_region
      _
    $region29: #{temporal_analysis_forward.1} parent=1 // pred_fallthru
      _
    // Predicated region
    $region30: #{temporal_analysis_forward.1} parent=1 // pred_check
      _
    $region31: #{temporal_analysis_forward.1} parent=1 // pred_check_branch
      %56 = sbr.rel (0) target = $region33
    $region32: #{temporal_analysis_forward.1} parent=1 // pred_region
      %s58 = ssub.s32 16, 16
      %59 = vsyncadd [#allocation5], %s58
      %s61 = sshll.u32 [#allocation6], 4
      %s62 = int_to_ptr.vmem [resolvable:$true] %s61
      %64 = dma.hbm_to_vmem [thread:$0]  %s7, 16, %s62, [#allocation5]
    $region33: #{temporal_analysis_forward.1} parent=1 // pred_fallthru
      _
    // Predicated region
    $region34: #{temporal_analysis_forward.1} parent=1 // pred_check
      _
    $region35: #{temporal_analysis_forward.1} parent=1 // pred_check_branch
      %66 = sbr.rel (0) target = $region37
    $region36: #{temporal_analysis_forward.1} parent=1 // pred_region
      %s68 = ssub.s32 16, 16
      %69 = vsyncadd [#allocation8], %s68
      %s71 = sshll.u32 [#allocation7], 4
      %s72 = int_to_ptr.vmem [resolvable:$true] %s71
      %74 = dma.hbm_to_vmem [thread:$0]  %s8, 16, %s72, [#allocation8]
    $region37: #{temporal_analysis_forward.1} parent=1 // pred_fallthru
      _
    // Predicated region
    $region38: #{temporal_analysis_forward.1} parent=1 // pred_check
      _
    $region39: #{temporal_analysis_forward.1} parent=1 // pred_check_branch
      %76 = sbr.rel (0) target = $region41
    $region40: #{temporal_analysis_forward.1} parent=1 // pred_region
      %s78 = ssub.s32 512, 512
      %79 = vsyncadd [#allocation8], %s78
      %s80 = sshll.u32 [#allocation9], 4
      %s81 = int_to_ptr.vmem [resolvable:$true] %s80
      %86 = dma.hbm_to_vmem [thread:$0]  %s9, 512, %s81, [#allocation8], 128, 128, 8
    $region41: #{temporal_analysis_forward.1} parent=1 // pred_fallthru
      _
    // Predicated region
    $region42: #{temporal_analysis_forward.1} parent=1 // pred_check
      _
    $region43: #{temporal_analysis_forward.1} parent=1 // pred_check_branch
      %88 = sbr.rel (0) target = $region45
    $region44: #{temporal_analysis_forward.1} parent=1 // pred_region
      _
    $region45: #{temporal_analysis_forward.1} parent=1 // pred_fallthru
      _
    // Predicated region
    $region46: #{temporal_analysis_forward.1} parent=1 // pred_check
      _
    $region47: #{temporal_analysis_forward.1} parent=1 // pred_check_branch
      %90 = sbr.rel (0) target = $region49
    $region48: #{temporal_analysis_forward.1} parent=1 // pred_region
      %s92 = ssub.s32 16, 16
      %93 = vsyncadd [#allocation11], %s92
      %s95 = sshll.u32 [#allocation10], 4
      %s96 = int_to_ptr.vmem [resolvable:$true] %s95
      %98 = dma.hbm_to_vmem [thread:$0]  %s11, 16, %s96, [#allocation11]
    $region49: #{temporal_analysis_forward.1} parent=1 // pred_fallthru
      _
    // Predicated region
    $region50: #{temporal_analysis_forward.1} parent=1 // pred_check
      _
    $region51: #{temporal_analysis_forward.1} parent=1 // pred_check_branch
      %100 = sbr.rel (0) target = $region53
    $region52: #{temporal_analysis_forward.1} parent=1 // pred_region
      %101 = dma.done [#allocation3], 512
    $region53: #{temporal_analysis_forward.1} parent=1 // pred_fallthru
      _
    // Predicated region
    $region54: #{temporal_analysis_forward.1} parent=1 // pred_check
      _
    $region55: #{temporal_analysis_forward.1} parent=1 // pred_check_branch
      %103 = sbr.rel (0) target = $region57
    $region56: #{temporal_analysis_forward.1} parent=1 // pred_region
      %104 = dma.done [#allocation5], 512
    $region57: #{temporal_analysis_forward.1} parent=1 // pred_fallthru
      _
    // Predicated region
    $region58: #{temporal_analysis_forward.1} parent=1 // pred_check
      _
    $region59: #{temporal_analysis_forward.1} parent=1 // pred_check_branch
      %106 = sbr.rel (0) target = $region61
    $region60: #{temporal_analysis_forward.1} parent=1 // pred_region
      %107 = dma.done [#allocation5], 16
    $region61: #{temporal_analysis_forward.1} parent=1 // pred_fallthru
      _
    // Predicated region
    $region62: #{temporal_analysis_forward.1} parent=1 // pred_check
      _
    $region63: #{temporal_analysis_forward.1} parent=1 // pred_check_branch
      %109 = sbr.rel (0) target = $region65
    $region64: #{temporal_analysis_forward.1} parent=1 // pred_region
      %110 = dma.done [#allocation8], 16
    $region65: #{temporal_analysis_forward.1} parent=1 // pred_fallthru
      _
    // Predicated region
    $region66: #{temporal_analysis_forward.1} parent=1 // pred_check
      _
    $region67: #{temporal_analysis_forward.1} parent=1 // pred_check_branch
      %112 = sbr.rel (0) target = $region69
    $region68: #{temporal_analysis_forward.1} parent=1 // pred_region
      %113 = dma.done [#allocation8], 512
    $region69: #{temporal_analysis_forward.1} parent=1 // pred_fallthru
      _
    // Predicated region
    $region70: #{temporal_analysis_forward.1} parent=1 // pred_check
      _
    $region71: #{temporal_analysis_forward.1} parent=1 // pred_check_branch
      %115 = sbr.rel (0) target = $region73
    $region72: #{temporal_analysis_forward.1} parent=1 // pred_region
      %116 = dma.done [#allocation11], 16
    $region73: #{temporal_analysis_forward.1} parent=1 // pred_fallthru
      _
    %v117 = vld [vmem:[%s0] sm:$0xff]
    %v118 = vld [vmem:[%s0 + $0x8] sm:$0xff]
    %v119 = vld [vmem:[%s0 + $0x10] sm:$0xff]
    %v120 = vld [vmem:[%s0 + $0x18] sm:$0xff]
    %v121 = vld [vmem:[%s0 + $0x20] sm:$0xff]
    %v122 = vld [vmem:[%s0 + $0x28] sm:$0xff]
    %v123 = vld [vmem:[%s0 + $0x30] sm:$0xff]
    %v124 = vld [vmem:[%s0 + $0x38] sm:$0xff]
    %v125 = vld [vmem:[%s1] sm:$0xff]
    %v126 = vld [vmem:[%s1 + $0x8] sm:$0xff]
    %v127 = vld [vmem:[%s1 + $0x10] sm:$0xff]
    %v128 = vld [vmem:[%s1 + $0x18] sm:$0xff]
    %v129 = vld [vmem:[%s1 + $0x20] sm:$0xff]
    %v130 = vld [vmem:[%s1 + $0x28] sm:$0xff]
    %v131 = vld [vmem:[%s1 + $0x30] sm:$0xff]
    %v132 = vld [vmem:[%s1 + $0x38] sm:$0xff]
    %v133 = vld [vmem:[%s4] sm:$0x3]
    %v135 = vlaneseq
    %v136 = vshrl.u32 %v135, 7
    %v137 = vsub.s32 0, %v136
    %v138 = vrot.slane %v133, %v137
    %v139 = vlaneseq
    %v140 = vshrl.u32 %v139, 7
    %v141 = vsub.s32 1, %v140
    %v142 = vrot.slane %v133, %v141
    %vm145 = vcmask 261120
    %v147 = vsel %vm145, %v117, 0
    %v150 = vsel %vm145, %v118, 0
    %v153 = vsel %vm145, %v119, 0
    %v156 = vsel %vm145, %v120, 0
    %v159 = vsel %vm145, %v121, 0
    %v162 = vsel %vm145, %v122, 0
    %v165 = vsel %vm145, %v123, 0
    %v168 = vsel %vm145, %v124, 0
    %170 = vmatprep.subr.mxu0 %v126
    %171 = vmatpush1.msra.mxu0 %v125
    %172 = vmatprep.subr.mxu0 %v128
    %173 = vmatpush1.msra.mxu0 %v127
    %174 = vmatprep.subr.mxu0 %v130
    %175 = vmatpush1.msra.mxu0 %v129
    %176 = vmatprep.subr.mxu0 %v132
    %177 = vmatpush1.msra.mxu0 %v131
    %178 = vmatprep.subr.mxu0 0.0
    %179 = vmatpush1.msra.mxu0 0.0
    %180 = vmatprep.subr.mxu0 0.0
    %181 = vmatpush1.msra.mxu0 0.0
    %182 = vmatprep.subr.mxu0 0.0
    %183 = vmatpush1.msra.mxu0 0.0
    %184 = vmatprep.subr.mxu0 0.0
    %185 = vmatpush1.msra.mxu0 0.0
    %186 = vmatprep.subr.mxu0 0.0
    %187 = vmatpush1.msra.mxu0 0.0
    %188 = vmatprep.subr.mxu0 0.0
    %189 = vmatpush1.msra.mxu0 0.0
    %190 = vmatprep.subr.mxu0 0.0
    %191 = vmatpush1.msra.mxu0 0.0
    %192 = vmatprep.subr.mxu0 0.0
    %193 = vmatpush1.msra.mxu0 0.0
    %194 = vmatprep.subr.mxu0 0.0
    %195 = vmatpush1.msra.mxu0 0.0
    %196 = vmatprep.subr.mxu0 0.0
    %197 = vmatpush1.msra.mxu0 0.0
    %198 = vmatprep.subr.mxu0 0.0
    %199 = vmatpush1.msra.mxu0 0.0
    %200 = vmatprep.subr.mxu0 0.0
    %201 = vmatpush1.msra.mxu0 0.0
    %202 = vmatprep.subr.mxu0 0.0
    %203 = vmatpush1.msra.mxu0 0.0
    %204 = vmatprep.subr.mxu0 0.0
    %205 = vmatpush1.msra.mxu0 0.0
    %206 = vmatprep.subr.mxu0 0.0
    %207 = vmatpush1.msra.mxu0 0.0
    %208 = vmatprep.subr.mxu0 0.0
    %209 = vmatpush1.msra.mxu0 0.0
    %210 = vmatprep.subr.mxu0 0.0
    %211 = vmatpush1.msra.mxu0 0.0
    %212 = vmatprep.subr.mxu0 0.0
    %213 = vmatpush1.msra.mxu0 0.0
    %214 = vmatprep.subr.mxu0 0.0
    %215 = vmatpush1.msra.mxu0 0.0
    %216 = vmatprep.subr.mxu0 0.0
    %217 = vmatpush1.msra.mxu0 0.0
    %218 = vmatprep.subr.mxu0 0.0
    %219 = vmatpush1.msra.mxu0 0.0
    %220 = vmatprep.subr.mxu0 0.0
    %221 = vmatpush1.msra.mxu0 0.0
    %222 = vmatprep.subr.mxu0 0.0
    %223 = vmatpush1.msra.mxu0 0.0
    %224 = vmatprep.subr.mxu0 0.0
    %225 = vmatpush1.msra.mxu0 0.0
    %226 = vmatprep.subr.mxu0 0.0
    %227 = vmatpush1.msra.mxu0 0.0
    %228 = vmatprep.subr.mxu0 0.0
    %229 = vmatpush1.msra.mxu0 0.0
    %230 = vmatprep.subr.mxu0 0.0
    %231 = vmatpush1.msra.mxu0 0.0
    %232 = vmatprep.subr.mxu0 0.0
    %233 = vmatpush1.msra.mxu0 0.0
    %234 = vmatprep.mubr.f32.mxu0 0.0
    %235 = vmatmul.mubr.f32.gmra.mrb[0].mxu0 %v147
    %v236 = vpop.f32.mrb[0].mxu0
    %v237 = vadd.f32 %v138, %v236
    %v238 = vpop.f32.mrb[0].mxu0
    %v239 = vadd.f32 %v142, %v238
    %240 = vmatprep.mubr.f32.mxu0 0.0
    %241 = vmatmul.mubr.f32.gmra.mrb[0].mxu0 %v150
    %v242 = vpop.f32.mrb[0].mxu0
    %v243 = vadd.f32 %v138, %v242
    %v244 = vpop.f32.mrb[0].mxu0
    %v245 = vadd.f32 %v142, %v244
    %246 = vmatprep.mubr.f32.mxu0 0.0
    %247 = vmatmul.mubr.f32.gmra.mrb[0].mxu0 %v153
    %v248 = vpop.f32.mrb[0].mxu0
    %v249 = vadd.f32 %v138, %v248
    %v250 = vpop.f32.mrb[0].mxu0
    %v251 = vadd.f32 %v142, %v250
    %252 = vmatprep.mubr.f32.mxu0 0.0
    %253 = vmatmul.mubr.f32.gmra.mrb[0].mxu0 %v156
    %v254 = vpop.f32.mrb[0].mxu0
    %v255 = vadd.f32 %v138, %v254
    %v256 = vpop.f32.mrb[0].mxu0
    %v257 = vadd.f32 %v142, %v256
    %258 = vmatprep.mubr.f32.mxu0 0.0
    %259 = vmatmul.mubr.f32.gmra.mrb[0].mxu0 %v159
    %v260 = vpop.f32.mrb[0].mxu0
    %v261 = vadd.f32 %v138, %v260
    %v262 = vpop.f32.mrb[0].mxu0
    %v263 = vadd.f32 %v142, %v262
    %264 = vmatprep.mubr.f32.mxu0 0.0
    %265 = vmatmul.mubr.f32.gmra.mrb[0].mxu0 %v162
    %v266 = vpop.f32.mrb[0].mxu0
    %v267 = vadd.f32 %v138, %v266
    %v268 = vpop.f32.mrb[0].mxu0
    %v269 = vadd.f32 %v142, %v268
    %270 = vmatprep.mubr.f32.mxu0 0.0
    %271 = vmatmul.mubr.f32.gmra.mrb[0].mxu0 %v165
    %v272 = vpop.f32.mrb[0].mxu0
    %v273 = vadd.f32 %v138, %v272
    %v274 = vpop.f32.mrb[0].mxu0
    %v275 = vadd.f32 %v142, %v274
    %276 = vmatprep.mubr.f32.mxu0 0.0
    %277 = vmatmul.mubr.f32.gmra.mrb[0].mxu0 %v168
    %v278 = vpop.f32.mrb[0].mxu0
    %v279 = vadd.f32 %v138, %v278
    %v280 = vpop.f32.mrb[0].mxu0
    %v281 = vadd.f32 %v142, %v280
    %282 = vdwg.mxu0
    %v283 = vld [vmem:[#allocation2] sm:$0xff]
    %v284 = vld [vmem:[#allocation2 + $0x8] sm:$0xff]
    %v285 = vld [vmem:[#allocation2 + $0x10] sm:$0xff]
    %v286 = vld [vmem:[#allocation2 + $0x18] sm:$0xff]
    %v287 = vld [vmem:[#allocation4] sm:$0xff]
    %v288 = vld [vmem:[#allocation4 + $0x8] sm:$0xff]
    %v289 = vld [vmem:[#allocation4 + $0x10] sm:$0xff]
    %v290 = vld [vmem:[#allocation4 + $0x18] sm:$0xff]
    %v292 = vsel %vm145, 0.0, 0
    %294 = vmatprep.subr.mxu0 0.0
    %295 = vmatpush1.msra.mxu0 %v283
    %296 = vmatprep.subr.mxu0 0.0
    %297 = vmatpush1.msra.mxu0 %v284
    %298 = vmatprep.subr.mxu0 0.0
    %299 = vmatpush1.msra.mxu0 %v285
    %300 = vmatprep.subr.mxu0 0.0
    %301 = vmatpush1.msra.mxu0 %v286
    %302 = vmatprep.subr.mxu0 0.0
    %303 = vmatpush1.msra.mxu0 0.0
    %304 = vmatprep.subr.mxu0 0.0
    %305 = vmatpush1.msra.mxu0 0.0
    %306 = vmatprep.subr.mxu0 0.0
    %307 = vmatpush1.msra.mxu0 0.0
    %308 = vmatprep.subr.mxu0 0.0
    %309 = vmatpush1.msra.mxu0 0.0
    %310 = vmatprep.subr.mxu0 0.0
    %311 = vmatpush1.msra.mxu0 0.0
    %312 = vmatprep.subr.mxu0 0.0
    %313 = vmatpush1.msra.mxu0 0.0
    %314 = vmatprep.subr.mxu0 0.0
    %315 = vmatpush1.msra.mxu0 0.0
    %316 = vmatprep.subr.mxu0 0.0
    %317 = vmatpush1.msra.mxu0 0.0
    %318 = vmatprep.subr.mxu0 0.0
    %319 = vmatpush1.msra.mxu0 0.0
    %320 = vmatprep.subr.mxu0 0.0
    %321 = vmatpush1.msra.mxu0 0.0
    %322 = vmatprep.subr.mxu0 0.0
    %323 = vmatpush1.msra.mxu0 0.0
    %324 = vmatprep.subr.mxu0 0.0
    %325 = vmatpush1.msra.mxu0 0.0
    %326 = vmatprep.subr.mxu0 0.0
    %327 = vmatpush1.msra.mxu0 0.0
    %328 = vmatprep.subr.mxu0 0.0
    %329 = vmatpush1.msra.mxu0 0.0
    %330 = vmatprep.subr.mxu0 0.0
    %331 = vmatpush1.msra.mxu0 0.0
    %332 = vmatprep.subr.mxu0 0.0
    %333 = vmatpush1.msra.mxu0 0.0
    %334 = vmatprep.subr.mxu0 0.0
    %335 = vmatpush1.msra.mxu0 0.0
    %336 = vmatprep.subr.mxu0 0.0
    %337 = vmatpush1.msra.mxu0 0.0
    %338 = vmatprep.subr.mxu0 0.0
    %339 = vmatpush1.msra.mxu0 0.0
    %340 = vmatprep.subr.mxu0 0.0
    %341 = vmatpush1.msra.mxu0 0.0
    %342 = vmatprep.subr.mxu0 0.0
    %343 = vmatpush1.msra.mxu0 0.0
    %344 = vmatprep.subr.mxu0 0.0
    %345 = vmatpush1.msra.mxu0 0.0
    %346 = vmatprep.subr.mxu0 0.0
    %347 = vmatpush1.msra.mxu0 0.0
    %348 = vmatprep.subr.mxu0 0.0
    %349 = vmatpush1.msra.mxu0 0.0
    %350 = vmatprep.subr.mxu0 0.0
    %351 = vmatpush1.msra.mxu0 0.0
    %352 = vmatprep.subr.mxu0 0.0
    %353 = vmatpush1.msra.mxu0 0.0
    %354 = vmatprep.subr.mxu0 0.0
    %355 = vmatpush1.msra.mxu0 0.0
    %356 = vmatprep.subr.mxu0 0.0
    %357 = vmatpush1.msra.mxu0 0.0
    %358 = vmatprep.mubr.f32.mxu0 0.0
    %359 = vmatmul.mubr.f32.gmra.mrb[0].mxu0 %v292
    %v360 = vpop.f32.mrb[0].mxu0
    %v361 = vadd.f32 0.0, %v360
    %v362 = vpop.f32.mrb[0].mxu0
    %363 = vdwg.mxu0
    %v364 = vadd.f32 %v237, %v361
    %365 = vmatprep.subr.mxu0 0.0
    %366 = vmatpush1.msra.mxu0 %v287
    %367 = vmatprep.subr.mxu0 0.0
    %368 = vmatpush1.msra.mxu0 %v288
    %369 = vmatprep.subr.mxu0 0.0
    %370 = vmatpush1.msra.mxu0 %v289
    %371 = vmatprep.subr.mxu0 0.0
    %372 = vmatpush1.msra.mxu0 %v290
    %373 = vmatprep.subr.mxu0 0.0
    %374 = vmatpush1.msra.mxu0 0.0
    %375 = vmatprep.subr.mxu0 0.0
    %376 = vmatpush1.msra.mxu0 0.0
    %377 = vmatprep.subr.mxu0 0.0
    %378 = vmatpush1.msra.mxu0 0.0
    %379 = vmatprep.subr.mxu0 0.0
    %380 = vmatpush1.msra.mxu0 0.0
    %381 = vmatprep.subr.mxu0 0.0
    %382 = vmatpush1.msra.mxu0 0.0
    %383 = vmatprep.subr.mxu0 0.0
    %384 = vmatpush1.msra.mxu0 0.0
    %385 = vmatprep.subr.mxu0 0.0
    %386 = vmatpush1.msra.mxu0 0.0
    %387 = vmatprep.subr.mxu0 0.0
    %388 = vmatpush1.msra.mxu0 0.0
    %389 = vmatprep.subr.mxu0 0.0
    %390 = vmatpush1.msra.mxu0 0.0
    %391 = vmatprep.subr.mxu0 0.0
    %392 = vmatpush1.msra.mxu0 0.0
    %393 = vmatprep.subr.mxu0 0.0
    %394 = vmatpush1.msra.mxu0 0.0
    %395 = vmatprep.subr.mxu0 0.0
    %396 = vmatpush1.msra.mxu0 0.0
    %397 = vmatprep.subr.mxu0 0.0
    %398 = vmatpush1.msra.mxu0 0.0
    %399 = vmatprep.subr.mxu0 0.0
    %400 = vmatpush1.msra.mxu0 0.0
    %401 = vmatprep.subr.mxu0 0.0
    %402 = vmatpush1.msra.mxu0 0.0
    %403 = vmatprep.subr.mxu0 0.0
    %404 = vmatpush1.msra.mxu0 0.0
    %405 = vmatprep.subr.mxu0 0.0
    %406 = vmatpush1.msra.mxu0 0.0
    %407 = vmatprep.subr.mxu0 0.0
    %408 = vmatpush1.msra.mxu0 0.0
    %409 = vmatprep.subr.mxu0 0.0
    %410 = vmatpush1.msra.mxu0 0.0
    %411 = vmatprep.subr.mxu0 0.0
    %412 = vmatpush1.msra.mxu0 0.0
    %413 = vmatprep.subr.mxu0 0.0
    %414 = vmatpush1.msra.mxu0 0.0
    %415 = vmatprep.subr.mxu0 0.0
    %416 = vmatpush1.msra.mxu0 0.0
    %417 = vmatprep.subr.mxu0 0.0
    %418 = vmatpush1.msra.mxu0 0.0
    %419 = vmatprep.subr.mxu0 0.0
    %420 = vmatpush1.msra.mxu0 0.0
    %421 = vmatprep.subr.mxu0 0.0
    %422 = vmatpush1.msra.mxu0 0.0
    %423 = vmatprep.subr.mxu0 0.0
    %424 = vmatpush1.msra.mxu0 0.0
    %425 = vmatprep.subr.mxu0 0.0
    %426 = vmatpush1.msra.mxu0 0.0
    %427 = vmatprep.subr.mxu0 0.0
    %428 = vmatpush1.msra.mxu0 0.0
    %429 = vmatprep.mubr.f32.mxu0 0.0
    %430 = vmatmul.mubr.f32.gmra.mrb[0].mxu0 %v292
    %v431 = vpop.f32.mrb[0].mxu0
    %v432 = vadd.f32 0.0, %v431
    %v433 = vpop.f32.mrb[0].mxu0
    %434 = vdwg.mxu0
    %v435 = vadd.f32 %v281, %v432
    %v436 = vxor.u32 %v364, 2147483648
    %v437 = vmul.f32 %v436, 1.442695
    %v438 = vpow.pop %v437
    %v439 = vadd.f32 %v438, 1.0
    %v440 = vrcp.pop %v439
    %v441 = vmul.f32 1.0, %v440
    %v442 = vtanh.pop %v364
    %v443 = vmul.f32 %v441, 0.0
    %445 = vrot.lane.b32.xlu0 %v442, 32
    %v446 = vpop.permute.xlu0 %445
    %v448 = vmul.f32 %v441, %v446
    %450 = vrot.lane.b32.xlu0 %v448, 32
    %v451 = vpop.permute.xlu0 %450
    %v453 = vadd.f32 %v443, %v451
    %v454 = vtanh.pop %v453
    %456 = vrot.lane.b32.xlu0 %v454, 32
    %v457 = vpop.permute.xlu0 %456
    %v459 = vmul.f32 %v441, %v457
    %v460 = vxor.u32 %v435, 2147483648
    %v461 = vmul.f32 %v460, 1.442695
    %v462 = vpow.pop %v461
    %v463 = vadd.f32 %v462, 1.0
    %v464 = vrcp.pop %v463
    %v465 = vmul.f32 1.0, %v464
    %v466 = vtanh.pop %v435
    %v467 = vmul.f32 %v465, 0.0
    %469 = vrot.lane.b32.xlu0 %v466, 32
    %v470 = vpop.permute.xlu0 %469
    %v472 = vmul.f32 %v465, %v470
    %474 = vrot.lane.b32.xlu0 %v472, 32
    %v475 = vpop.permute.xlu0 %474
    %v477 = vadd.f32 %v467, %v475
    %v478 = vtanh.pop %v477
    %480 = vrot.lane.b32.xlu0 %v478, 32
    %v481 = vpop.permute.xlu0 %480
    %v483 = vmul.f32 %v465, %v481
    %485 = vrot.lane.b32.xlu0 %v459, 64
    %v486 = vpop.permute.xlu0 %485
    %v487 = vsel %vm145, %v486, 0
    %489 = vmatprep.subr.mxu0 0.0
    %490 = vmatpush1.msra.mxu0 %v283
    %491 = vmatprep.subr.mxu0 0.0
    %492 = vmatpush1.msra.mxu0 %v284
    %493 = vmatprep.subr.mxu0 0.0
    %494 = vmatpush1.msra.mxu0 %v285
    %495 = vmatprep.subr.mxu0 0.0
    %496 = vmatpush1.msra.mxu0 %v286
    %497 = vmatprep.subr.mxu0 0.0
    %498 = vmatpush1.msra.mxu0 0.0
    %499 = vmatprep.subr.mxu0 0.0
    %500 = vmatpush1.msra.mxu0 0.0
    %501 = vmatprep.subr.mxu0 0.0
    %502 = vmatpush1.msra.mxu0 0.0
    %503 = vmatprep.subr.mxu0 0.0
    %504 = vmatpush1.msra.mxu0 0.0
    %505 = vmatprep.subr.mxu0 0.0
    %506 = vmatpush1.msra.mxu0 0.0
    %507 = vmatprep.subr.mxu0 0.0
    %508 = vmatpush1.msra.mxu0 0.0
    %509 = vmatprep.subr.mxu0 0.0
    %510 = vmatpush1.msra.mxu0 0.0
    %511 = vmatprep.subr.mxu0 0.0
    %512 = vmatpush1.msra.mxu0 0.0
    %513 = vmatprep.subr.mxu0 0.0
    %514 = vmatpush1.msra.mxu0 0.0
    %515 = vmatprep.subr.mxu0 0.0
    %516 = vmatpush1.msra.mxu0 0.0
    %517 = vmatprep.subr.mxu0 0.0
    %518 = vmatpush1.msra.mxu0 0.0
    %519 = vmatprep.subr.mxu0 0.0
    %520 = vmatpush1.msra.mxu0 0.0
    %521 = vmatprep.subr.mxu0 0.0
    %522 = vmatpush1.msra.mxu0 0.0
    %523 = vmatprep.subr.mxu0 0.0
    %524 = vmatpush1.msra.mxu0 0.0
    %525 = vmatprep.subr.mxu0 0.0
    %526 = vmatpush1.msra.mxu0 0.0
    %527 = vmatprep.subr.mxu0 0.0
    %528 = vmatpush1.msra.mxu0 0.0
    %529 = vmatprep.subr.mxu0 0.0
    %530 = vmatpush1.msra.mxu0 0.0
    %531 = vmatprep.subr.mxu0 0.0
    %532 = vmatpush1.msra.mxu0 0.0
    %533 = vmatprep.subr.mxu0 0.0
    %534 = vmatpush1.msra.mxu0 0.0
    %535 = vmatprep.subr.mxu0 0.0
    %536 = vmatpush1.msra.mxu0 0.0
    %537 = vmatprep.subr.mxu0 0.0
    %538 = vmatpush1.msra.mxu0 0.0
    %539 = vmatprep.subr.mxu0 0.0
    %540 = vmatpush1.msra.mxu0 0.0
    %541 = vmatprep.subr.mxu0 0.0
    %542 = vmatpush1.msra.mxu0 0.0
    %543 = vmatprep.subr.mxu0 0.0
    %544 = vmatpush1.msra.mxu0 0.0
    %545 = vmatprep.subr.mxu0 0.0
    %546 = vmatpush1.msra.mxu0 0.0
    %547 = vmatprep.subr.mxu0 0.0
    %548 = vmatpush1.msra.mxu0 0.0
    %549 = vmatprep.subr.mxu0 0.0
    %550 = vmatpush1.msra.mxu0 0.0
    %551 = vmatprep.subr.mxu0 0.0
    %552 = vmatpush1.msra.mxu0 0.0
    %553 = vmatprep.mubr.f32.mxu0 0.0
    %554 = vmatmul.mubr.f32.gmra.mrb[0].mxu0 %v487
    %v555 = vpop.f32.mrb[0].mxu0
    %v556 = vadd.f32 0.0, %v555
    %v557 = vpop.f32.mrb[0].mxu0
    %558 = vdwg.mxu0
    %v559 = vadd.f32 %v243, %v556
    %561 = vrot.lane.b32.xlu0 %v483, 64
    %v562 = vpop.permute.xlu0 %561
    %v563 = vsel %vm145, %v562, 0
    %565 = vmatprep.subr.mxu0 0.0
    %566 = vmatpush1.msra.mxu0 %v287
    %567 = vmatprep.subr.mxu0 0.0
    %568 = vmatpush1.msra.mxu0 %v288
    %569 = vmatprep.subr.mxu0 0.0
    %570 = vmatpush1.msra.mxu0 %v289
    %571 = vmatprep.subr.mxu0 0.0
    %572 = vmatpush1.msra.mxu0 %v290
    %573 = vmatprep.subr.mxu0 0.0
    %574 = vmatpush1.msra.mxu0 0.0
    %575 = vmatprep.subr.mxu0 0.0
    %576 = vmatpush1.msra.mxu0 0.0
    %577 = vmatprep.subr.mxu0 0.0
    %578 = vmatpush1.msra.mxu0 0.0
    %579 = vmatprep.subr.mxu0 0.0
    %580 = vmatpush1.msra.mxu0 0.0
    %581 = vmatprep.subr.mxu0 0.0
    %582 = vmatpush1.msra.mxu0 0.0
    %583 = vmatprep.subr.mxu0 0.0
    %584 = vmatpush1.msra.mxu0 0.0
    %585 = vmatprep.subr.mxu0 0.0
    %586 = vmatpush1.msra.mxu0 0.0
    %587 = vmatprep.subr.mxu0 0.0
    %588 = vmatpush1.msra.mxu0 0.0
    %589 = vmatprep.subr.mxu0 0.0
    %590 = vmatpush1.msra.mxu0 0.0
    %591 = vmatprep.subr.mxu0 0.0
    %592 = vmatpush1.msra.mxu0 0.0
    %593 = vmatprep.subr.mxu0 0.0
    %594 = vmatpush1.msra.mxu0 0.0
    %595 = vmatprep.subr.mxu0 0.0
    %596 = vmatpush1.msra.mxu0 0.0
    %597 = vmatprep.subr.mxu0 0.0
    %598 = vmatpush1.msra.mxu0 0.0
    %599 = vmatprep.subr.mxu0 0.0
    %600 = vmatpush1.msra.mxu0 0.0
    %601 = vmatprep.subr.mxu0 0.0
    %602 = vmatpush1.msra.mxu0 0.0
    %603 = vmatprep.subr.mxu0 0.0
    %604 = vmatpush1.msra.mxu0 0.0
    %605 = vmatprep.subr.mxu0 0.0
    %606 = vmatpush1.msra.mxu0 0.0
    %607 = vmatprep.subr.mxu0 0.0
    %608 = vmatpush1.msra.mxu0 0.0
    %609 = vmatprep.subr.mxu0 0.0
    %610 = vmatpush1.msra.mxu0 0.0
    %611 = vmatprep.subr.mxu0 0.0
    %612 = vmatpush1.msra.mxu0 0.0
    %613 = vmatprep.subr.mxu0 0.0
    %614 = vmatpush1.msra.mxu0 0.0
    %615 = vmatprep.subr.mxu0 0.0
    %616 = vmatpush1.msra.mxu0 0.0
    %617 = vmatprep.subr.mxu0 0.0
    %618 = vmatpush1.msra.mxu0 0.0
    %619 = vmatprep.subr.mxu0 0.0
    %620 = vmatpush1.msra.mxu0 0.0
    %621 = vmatprep.subr.mxu0 0.0
    %622 = vmatpush1.msra.mxu0 0.0
    %623 = vmatprep.subr.mxu0 0.0
    %624 = vmatpush1.msra.mxu0 0.0
    %625 = vmatprep.subr.mxu0 0.0
    %626 = vmatpush1.msra.mxu0 0.0
    %627 = vmatprep.subr.mxu0 0.0
    %628 = vmatpush1.msra.mxu0 0.0
    %629 = vmatprep.mubr.f32.mxu0 0.0
    %630 = vmatmul.mubr.f32.gmra.mrb[0].mxu0 %v563
    %v631 = vpop.f32.mrb[0].mxu0
    %v632 = vadd.f32 0.0, %v631
    %v633 = vpop.f32.mrb[0].mxu0
    %634 = vdwg.mxu0
    %v635 = vadd.f32 %v275, %v632
    %v636 = vxor.u32 %v559, 2147483648
    %v637 = vmul.f32 %v636, 1.442695
    %v638 = vpow.pop %v637
    %v639 = vadd.f32 %v638, 1.0
    %v640 = vrcp.pop %v639
    %v641 = vmul.f32 1.0, %v640
    %v642 = vtanh.pop %v559
    %v643 = vmul.f32 %v641, %v453
    %645 = vrot.lane.b32.xlu0 %v642, 32
    %v646 = vpop.permute.xlu0 %645
    %v648 = vmul.f32 %v641, %v646
    %650 = vrot.lane.b32.xlu0 %v648, 32
    %v651 = vpop.permute.xlu0 %650
    %v653 = vadd.f32 %v643, %v651
    %v654 = vtanh.pop %v653
    %656 = vrot.lane.b32.xlu0 %v654, 32
    %v657 = vpop.permute.xlu0 %656
    %v659 = vmul.f32 %v641, %v657
    %v660 = vxor.u32 %v635, 2147483648
    %v661 = vmul.f32 %v660, 1.442695
    %v662 = vpow.pop %v661
    %v663 = vadd.f32 %v662, 1.0
    %v664 = vrcp.pop %v663
    %v665 = vmul.f32 1.0, %v664
    %v666 = vtanh.pop %v635
    %v667 = vmul.f32 %v665, %v477
    %669 = vrot.lane.b32.xlu0 %v666, 32
    %v670 = vpop.permute.xlu0 %669
    %v672 = vmul.f32 %v665, %v670
    %674 = vrot.lane.b32.xlu0 %v672, 32
    %v675 = vpop.permute.xlu0 %674
    %v677 = vadd.f32 %v667, %v675
    %v678 = vtanh.pop %v677
    %680 = vrot.lane.b32.xlu0 %v678, 32
    %v681 = vpop.permute.xlu0 %680
    %v683 = vmul.f32 %v665, %v681
    %685 = vrot.lane.b32.xlu0 %v659, 64
    %v686 = vpop.permute.xlu0 %685
    %v687 = vsel %vm145, %v686, 0
    %689 = vmatprep.subr.mxu0 0.0
    %690 = vmatpush1.msra.mxu0 %v283
    %691 = vmatprep.subr.mxu0 0.0
    %692 = vmatpush1.msra.mxu0 %v284
    %693 = vmatprep.subr.mxu0 0.0
    %694 = vmatpush1.msra.mxu0 %v285
    %695 = vmatprep.subr.mxu0 0.0
    %696 = vmatpush1.msra.mxu0 %v286
    %697 = vmatprep.subr.mxu0 0.0
    %698 = vmatpush1.msra.mxu0 0.0
    %699 = vmatprep.subr.mxu0 0.0
    %700 = vmatpush1.msra.mxu0 0.0
    %701 = vmatprep.subr.mxu0 0.0
    %702 = vmatpush1.msra.mxu0 0.0
    %703 = vmatprep.subr.mxu0 0.0
    %704 = vmatpush1.msra.mxu0 0.0
    %705 = vmatprep.subr.mxu0 0.0
    %706 = vmatpush1.msra.mxu0 0.0
    %707 = vmatprep.subr.mxu0 0.0
    %708 = vmatpush1.msra.mxu0 0.0
    %709 = vmatprep.subr.mxu0 0.0
    %710 = vmatpush1.msra.mxu0 0.0
    %711 = vmatprep.subr.mxu0 0.0
    %712 = vmatpush1.msra.mxu0 0.0
    %713 = vmatprep.subr.mxu0 0.0
    %714 = vmatpush1.msra.mxu0 0.0
    %715 = vmatprep.subr.mxu0 0.0
    %716 = vmatpush1.msra.mxu0 0.0
    %717 = vmatprep.subr.mxu0 0.0
    %718 = vmatpush1.msra.mxu0 0.0
    %719 = vmatprep.subr.mxu0 0.0
    %720 = vmatpush1.msra.mxu0 0.0
    %721 = vmatprep.subr.mxu0 0.0
    %722 = vmatpush1.msra.mxu0 0.0
    %723 = vmatprep.subr.mxu0 0.0
    %724 = vmatpush1.msra.mxu0 0.0
    %725 = vmatprep.subr.mxu0 0.0
    %726 = vmatpush1.msra.mxu0 0.0
    %727 = vmatprep.subr.mxu0 0.0
    %728 = vmatpush1.msra.mxu0 0.0
    %729 = vmatprep.subr.mxu0 0.0
    %730 = vmatpush1.msra.mxu0 0.0
    %731 = vmatprep.subr.mxu0 0.0
    %732 = vmatpush1.msra.mxu0 0.0
    %733 = vmatprep.subr.mxu0 0.0
    %734 = vmatpush1.msra.mxu0 0.0
    %735 = vmatprep.subr.mxu0 0.0
    %736 = vmatpush1.msra.mxu0 0.0
    %737 = vmatprep.subr.mxu0 0.0
    %738 = vmatpush1.msra.mxu0 0.0
    %739 = vmatprep.subr.mxu0 0.0
    %740 = vmatpush1.msra.mxu0 0.0
    %741 = vmatprep.subr.mxu0 0.0
    %742 = vmatpush1.msra.mxu0 0.0
    %743 = vmatprep.subr.mxu0 0.0
    %744 = vmatpush1.msra.mxu0 0.0
    %745 = vmatprep.subr.mxu0 0.0
    %746 = vmatpush1.msra.mxu0 0.0
    %747 = vmatprep.subr.mxu0 0.0
    %748 = vmatpush1.msra.mxu0 0.0
    %749 = vmatprep.subr.mxu0 0.0
    %750 = vmatpush1.msra.mxu0 0.0
    %751 = vmatprep.subr.mxu0 0.0
    %752 = vmatpush1.msra.mxu0 0.0
    %753 = vmatprep.mubr.f32.mxu0 0.0
    %754 = vmatmul.mubr.f32.gmra.mrb[0].mxu0 %v687
    %v755 = vpop.f32.mrb[0].mxu0
    %v756 = vadd.f32 0.0, %v755
    %v757 = vpop.f32.mrb[0].mxu0
    %758 = vdwg.mxu0
    %v759 = vadd.f32 %v249, %v756
    %761 = vrot.lane.b32.xlu0 %v683, 64
    %v762 = vpop.permute.xlu0 %761
    %v763 = vsel %vm145, %v762, 0
    %765 = vmatprep.subr.mxu0 0.0
    %766 = vmatpush1.msra.mxu0 %v287
    %767 = vmatprep.subr.mxu0 0.0
    %768 = vmatpush1.msra.mxu0 %v288
    %769 = vmatprep.subr.mxu0 0.0
    %770 = vmatpush1.msra.mxu0 %v289
    %771 = vmatprep.subr.mxu0 0.0
    %772 = vmatpush1.msra.mxu0 %v290
    %773 = vmatprep.subr.mxu0 0.0
    %774 = vmatpush1.msra.mxu0 0.0
    %775 = vmatprep.subr.mxu0 0.0
    %776 = vmatpush1.msra.mxu0 0.0
    %777 = vmatprep.subr.mxu0 0.0
    %778 = vmatpush1.msra.mxu0 0.0
    %779 = vmatprep.subr.mxu0 0.0
    %780 = vmatpush1.msra.mxu0 0.0
    %781 = vmatprep.subr.mxu0 0.0
    %782 = vmatpush1.msra.mxu0 0.0
    %783 = vmatprep.subr.mxu0 0.0
    %784 = vmatpush1.msra.mxu0 0.0
    %785 = vmatprep.subr.mxu0 0.0
    %786 = vmatpush1.msra.mxu0 0.0
    %787 = vmatprep.subr.mxu0 0.0
    %788 = vmatpush1.msra.mxu0 0.0
    %789 = vmatprep.subr.mxu0 0.0
    %790 = vmatpush1.msra.mxu0 0.0
    %791 = vmatprep.subr.mxu0 0.0
    %792 = vmatpush1.msra.mxu0 0.0
    %793 = vmatprep.subr.mxu0 0.0
    %794 = vmatpush1.msra.mxu0 0.0
    %795 = vmatprep.subr.mxu0 0.0
    %796 = vmatpush1.msra.mxu0 0.0
    %797 = vmatprep.subr.mxu0 0.0
    %798 = vmatpush1.msra.mxu0 0.0
    %799 = vmatprep.subr.mxu0 0.0
    %800 = vmatpush1.msra.mxu0 0.0
    %801 = vmatprep.subr.mxu0 0.0
    %802 = vmatpush1.msra.mxu0 0.0
    %803 = vmatprep.subr.mxu0 0.0
    %804 = vmatpush1.msra.mxu0 0.0
    %805 = vmatprep.subr.mxu0 0.0
    %806 = vmatpush1.msra.mxu0 0.0
    %807 = vmatprep.subr.mxu0 0.0
    %808 = vmatpush1.msra.mxu0 0.0
    %809 = vmatprep.subr.mxu0 0.0
    %810 = vmatpush1.msra.mxu0 0.0
    %811 = vmatprep.subr.mxu0 0.0
    %812 = vmatpush1.msra.mxu0 0.0
    %813 = vmatprep.subr.mxu0 0.0
    %814 = vmatpush1.msra.mxu0 0.0
    %815 = vmatprep.subr.mxu0 0.0
    %816 = vmatpush1.msra.mxu0 0.0
    %817 = vmatprep.subr.mxu0 0.0
    %818 = vmatpush1.msra.mxu0 0.0
    %819 = vmatprep.subr.mxu0 0.0
    %820 = vmatpush1.msra.mxu0 0.0
    %821 = vmatprep.subr.mxu0 0.0
    %822 = vmatpush1.msra.mxu0 0.0
    %823 = vmatprep.subr.mxu0 0.0
    %824 = vmatpush1.msra.mxu0 0.0
    %825 = vmatprep.subr.mxu0 0.0
    %826 = vmatpush1.msra.mxu0 0.0
    %827 = vmatprep.subr.mxu0 0.0
    %828 = vmatpush1.msra.mxu0 0.0
    %829 = vmatprep.mubr.f32.mxu0 0.0
    %830 = vmatmul.mubr.f32.gmra.mrb[0].mxu0 %v763
    %v831 = vpop.f32.mrb[0].mxu0
    %v832 = vadd.f32 0.0, %v831
    %v833 = vpop.f32.mrb[0].mxu0
    %834 = vdwg.mxu0
    %v835 = vadd.f32 %v269, %v832
    %v836 = vxor.u32 %v759, 2147483648
    %v837 = vmul.f32 %v836, 1.442695
    %v838 = vpow.pop %v837
    %v839 = vadd.f32 %v838, 1.0
    %v840 = vrcp.pop %v839
    %v841 = vmul.f32 1.0, %v840
    %v842 = vtanh.pop %v759
    %v843 = vmul.f32 %v841, %v653
    %845 = vrot.lane.b32.xlu0 %v842, 32
    %v846 = vpop.permute.xlu0 %845
    %v848 = vmul.f32 %v841, %v846
    %850 = vrot.lane.b32.xlu0 %v848, 32
    %v851 = vpop.permute.xlu0 %850
    %v853 = vadd.f32 %v843, %v851
    %v854 = vtanh.pop %v853
    %856 = vrot.lane.b32.xlu0 %v854, 32
    %v857 = vpop.permute.xlu0 %856
    %v859 = vmul.f32 %v841, %v857
    %v860 = vxor.u32 %v835, 2147483648
    %v861 = vmul.f32 %v860, 1.442695
    %v862 = vpow.pop %v861
    %v863 = vadd.f32 %v862, 1.0
    %v864 = vrcp.pop %v863
    %v865 = vmul.f32 1.0, %v864
    %v866 = vtanh.pop %v835
    %v867 = vmul.f32 %v865, %v677
    %869 = vrot.lane.b32.xlu0 %v866, 32
    %v870 = vpop.permute.xlu0 %869
    %v872 = vmul.f32 %v865, %v870
    %874 = vrot.lane.b32.xlu0 %v872, 32
    %v875 = vpop.permute.xlu0 %874
    %v877 = vadd.f32 %v867, %v875
    %v878 = vtanh.pop %v877
    %880 = vrot.lane.b32.xlu0 %v878, 32
    %v881 = vpop.permute.xlu0 %880
    %v883 = vmul.f32 %v865, %v881
    %885 = vrot.lane.b32.xlu0 %v859, 64
    %v886 = vpop.permute.xlu0 %885
    %v887 = vsel %vm145, %v886, 0
    %889 = vmatprep.subr.mxu0 0.0
    %890 = vmatpush1.msra.mxu0 %v283
    %891 = vmatprep.subr.mxu0 0.0
    %892 = vmatpush1.msra.mxu0 %v284
    %893 = vmatprep.subr.mxu0 0.0
    %894 = vmatpush1.msra.mxu0 %v285
    %895 = vmatprep.subr.mxu0 0.0
    %896 = vmatpush1.msra.mxu0 %v286
    %897 = vmatprep.subr.mxu0 0.0
    %898 = vmatpush1.msra.mxu0 0.0
    %899 = vmatprep.subr.mxu0 0.0
    %900 = vmatpush1.msra.mxu0 0.0
    %901 = vmatprep.subr.mxu0 0.0
    %902 = vmatpush1.msra.mxu0 0.0
    %903 = vmatprep.subr.mxu0 0.0
    %904 = vmatpush1.msra.mxu0 0.0
    %905 = vmatprep.subr.mxu0 0.0
    %906 = vmatpush1.msra.mxu0 0.0
    %907 = vmatprep.subr.mxu0 0.0
    %908 = vmatpush1.msra.mxu0 0.0
    %909 = vmatprep.subr.mxu0 0.0
    %910 = vmatpush1.msra.mxu0 0.0
    %911 = vmatprep.subr.mxu0 0.0
    %912 = vmatpush1.msra.mxu0 0.0
    %913 = vmatprep.subr.mxu0 0.0
    %914 = vmatpush1.msra.mxu0 0.0
    %915 = vmatprep.subr.mxu0 0.0
    %916 = vmatpush1.msra.mxu0 0.0
    %917 = vmatprep.subr.mxu0 0.0
    %918 = vmatpush1.msra.mxu0 0.0
    %919 = vmatprep.subr.mxu0 0.0
    %920 = vmatpush1.msra.mxu0 0.0
    %921 = vmatprep.subr.mxu0 0.0
    %922 = vmatpush1.msra.mxu0 0.0
    %923 = vmatprep.subr.mxu0 0.0
    %924 = vmatpush1.msra.mxu0 0.0
    %925 = vmatprep.subr.mxu0 0.0
    %926 = vmatpush1.msra.mxu0 0.0
    %927 = vmatprep.subr.mxu0 0.0
    %928 = vmatpush1.msra.mxu0 0.0
    %929 = vmatprep.subr.mxu0 0.0
    %930 = vmatpush1.msra.mxu0 0.0
    %931 = vmatprep.subr.mxu0 0.0
    %932 = vmatpush1.msra.mxu0 0.0
    %933 = vmatprep.subr.mxu0 0.0
    %934 = vmatpush1.msra.mxu0 0.0
    %935 = vmatprep.subr.mxu0 0.0
    %936 = vmatpush1.msra.mxu0 0.0
    %937 = vmatprep.subr.mxu0 0.0
    %938 = vmatpush1.msra.mxu0 0.0
    %939 = vmatprep.subr.mxu0 0.0
    %940 = vmatpush1.msra.mxu0 0.0
    %941 = vmatprep.subr.mxu0 0.0
    %942 = vmatpush1.msra.mxu0 0.0
    %943 = vmatprep.subr.mxu0 0.0
    %944 = vmatpush1.msra.mxu0 0.0
    %945 = vmatprep.subr.mxu0 0.0
    %946 = vmatpush1.msra.mxu0 0.0
    %947 = vmatprep.subr.mxu0 0.0
    %948 = vmatpush1.msra.mxu0 0.0
    %949 = vmatprep.subr.mxu0 0.0
    %950 = vmatpush1.msra.mxu0 0.0
    %951 = vmatprep.subr.mxu0 0.0
    %952 = vmatpush1.msra.mxu0 0.0
    %953 = vmatprep.mubr.f32.mxu0 0.0
    %954 = vmatmul.mubr.f32.gmra.mrb[0].mxu0 %v887
    %v955 = vpop.f32.mrb[0].mxu0
    %v956 = vadd.f32 0.0, %v955
    %v957 = vpop.f32.mrb[0].mxu0
    %958 = vdwg.mxu0
    %v959 = vadd.f32 %v255, %v956
    %961 = vrot.lane.b32.xlu0 %v883, 64
    %v962 = vpop.permute.xlu0 %961
    %v963 = vsel %vm145, %v962, 0
    %965 = vmatprep.subr.mxu0 0.0
    %966 = vmatpush1.msra.mxu0 %v287
    %967 = vmatprep.subr.mxu0 0.0
    %968 = vmatpush1.msra.mxu0 %v288
    %969 = vmatprep.subr.mxu0 0.0
    %970 = vmatpush1.msra.mxu0 %v289
    %971 = vmatprep.subr.mxu0 0.0
    %972 = vmatpush1.msra.mxu0 %v290
    %973 = vmatprep.subr.mxu0 0.0
    %974 = vmatpush1.msra.mxu0 0.0
    %975 = vmatprep.subr.mxu0 0.0
    %976 = vmatpush1.msra.mxu0 0.0
    %977 = vmatprep.subr.mxu0 0.0
    %978 = vmatpush1.msra.mxu0 0.0
    %979 = vmatprep.subr.mxu0 0.0
    %980 = vmatpush1.msra.mxu0 0.0
    %981 = vmatprep.subr.mxu0 0.0
    %982 = vmatpush1.msra.mxu0 0.0
    %983 = vmatprep.subr.mxu0 0.0
    %984 = vmatpush1.msra.mxu0 0.0
    %985 = vmatprep.subr.mxu0 0.0
    %986 = vmatpush1.msra.mxu0 0.0
    %987 = vmatprep.subr.mxu0 0.0
    %988 = vmatpush1.msra.mxu0 0.0
    %989 = vmatprep.subr.mxu0 0.0
    %990 = vmatpush1.msra.mxu0 0.0
    %991 = vmatprep.subr.mxu0 0.0
    %992 = vmatpush1.msra.mxu0 0.0
    %993 = vmatprep.subr.mxu0 0.0
    %994 = vmatpush1.msra.mxu0 0.0
    %995 = vmatprep.subr.mxu0 0.0
    %996 = vmatpush1.msra.mxu0 0.0
    %997 = vmatprep.subr.mxu0 0.0
    %998 = vmatpush1.msra.mxu0 0.0
    %999 = vmatprep.subr.mxu0 0.0
    %1000 = vmatpush1.msra.mxu0 0.0
    %1001 = vmatprep.subr.mxu0 0.0
    %1002 = vmatpush1.msra.mxu0 0.0
    %1003 = vmatprep.subr.mxu0 0.0
    %1004 = vmatpush1.msra.mxu0 0.0
    %1005 = vmatprep.subr.mxu0 0.0
    %1006 = vmatpush1.msra.mxu0 0.0
    %1007 = vmatprep.subr.mxu0 0.0
    %1008 = vmatpush1.msra.mxu0 0.0
    %1009 = vmatprep.subr.mxu0 0.0
    %1010 = vmatpush1.msra.mxu0 0.0
    %1011 = vmatprep.subr.mxu0 0.0
    %1012 = vmatpush1.msra.mxu0 0.0
    %1013 = vmatprep.subr.mxu0 0.0
    %1014 = vmatpush1.msra.mxu0 0.0
    %1015 = vmatprep.subr.mxu0 0.0
    %1016 = vmatpush1.msra.mxu0 0.0
    %1017 = vmatprep.subr.mxu0 0.0
    %1018 = vmatpush1.msra.mxu0 0.0
    %1019 = vmatprep.subr.mxu0 0.0
    %1020 = vmatpush1.msra.mxu0 0.0
    %1021 = vmatprep.subr.mxu0 0.0
    %1022 = vmatpush1.msra.mxu0 0.0
    %1023 = vmatprep.subr.mxu0 0.0
    %1024 = vmatpush1.msra.mxu0 0.0
    %1025 = vmatprep.subr.mxu0 0.0
    %1026 = vmatpush1.msra.mxu0 0.0
    %1027 = vmatprep.subr.mxu0 0.0
    %1028 = vmatpush1.msra.mxu0 0.0
    %1029 = vmatprep.mubr.f32.mxu0 0.0
    %1030 = vmatmul.mubr.f32.gmra.mrb[0].mxu0 %v963
    %v1031 = vpop.f32.mrb[0].mxu0
    %v1032 = vadd.f32 0.0, %v1031
    %v1033 = vpop.f32.mrb[0].mxu0
    %1034 = vdwg.mxu0
    %v1035 = vadd.f32 %v263, %v1032
    %v1036 = vxor.u32 %v959, 2147483648
    %v1037 = vmul.f32 %v1036, 1.442695
    %v1038 = vpow.pop %v1037
    %v1039 = vadd.f32 %v1038, 1.0
    %v1040 = vrcp.pop %v1039
    %v1041 = vmul.f32 1.0, %v1040
    %v1042 = vtanh.pop %v959
    %v1043 = vmul.f32 %v1041, %v853
    %1045 = vrot.lane.b32.xlu0 %v1042, 32
    %v1046 = vpop.permute.xlu0 %1045
    %v1048 = vmul.f32 %v1041, %v1046
    %1050 = vrot.lane.b32.xlu0 %v1048, 32
    %v1051 = vpop.permute.xlu0 %1050
    %v1053 = vadd.f32 %v1043, %v1051
    %v1054 = vtanh.pop %v1053
    %1056 = vrot.lane.b32.xlu0 %v1054, 32
    %v1057 = vpop.permute.xlu0 %1056
    %v1059 = vmul.f32 %v1041, %v1057
    %v1060 = vxor.u32 %v1035, 2147483648
    %v1061 = vmul.f32 %v1060, 1.442695
    %v1062 = vpow.pop %v1061
    %v1063 = vadd.f32 %v1062, 1.0
    %v1064 = vrcp.pop %v1063
    %v1065 = vmul.f32 1.0, %v1064
    %v1066 = vtanh.pop %v1035
    %v1067 = vmul.f32 %v1065, %v877
    %1069 = vrot.lane.b32.xlu0 %v1066, 32
    %v1070 = vpop.permute.xlu0 %1069
    %v1072 = vmul.f32 %v1065, %v1070
    %1074 = vrot.lane.b32.xlu0 %v1072, 32
    %v1075 = vpop.permute.xlu0 %1074
    %v1077 = vadd.f32 %v1067, %v1075
    %v1078 = vtanh.pop %v1077
    %1080 = vrot.lane.b32.xlu0 %v1078, 32
    %v1081 = vpop.permute.xlu0 %1080
    %v1083 = vmul.f32 %v1065, %v1081
    %1085 = vrot.lane.b32.xlu0 %v1059, 64
    %v1086 = vpop.permute.xlu0 %1085
    %v1087 = vsel %vm145, %v1086, 0
    %1089 = vmatprep.subr.mxu0 0.0
    %1090 = vmatpush1.msra.mxu0 %v283
    %1091 = vmatprep.subr.mxu0 0.0
    %1092 = vmatpush1.msra.mxu0 %v284
    %1093 = vmatprep.subr.mxu0 0.0
    %1094 = vmatpush1.msra.mxu0 %v285
    %1095 = vmatprep.subr.mxu0 0.0
    %1096 = vmatpush1.msra.mxu0 %v286
    %1097 = vmatprep.subr.mxu0 0.0
    %1098 = vmatpush1.msra.mxu0 0.0
    %1099 = vmatprep.subr.mxu0 0.0
    %1100 = vmatpush1.msra.mxu0 0.0
    %1101 = vmatprep.subr.mxu0 0.0
    %1102 = vmatpush1.msra.mxu0 0.0
    %1103 = vmatprep.subr.mxu0 0.0
    %1104 = vmatpush1.msra.mxu0 0.0
    %1105 = vmatprep.subr.mxu0 0.0
    %1106 = vmatpush1.msra.mxu0 0.0
    %1107 = vmatprep.subr.mxu0 0.0
    %1108 = vmatpush1.msra.mxu0 0.0
    %1109 = vmatprep.subr.mxu0 0.0
    %1110 = vmatpush1.msra.mxu0 0.0
    %1111 = vmatprep.subr.mxu0 0.0
    %1112 = vmatpush1.msra.mxu0 0.0
    %1113 = vmatprep.subr.mxu0 0.0
    %1114 = vmatpush1.msra.mxu0 0.0
    %1115 = vmatprep.subr.mxu0 0.0
    %1116 = vmatpush1.msra.mxu0 0.0
    %1117 = vmatprep.subr.mxu0 0.0
    %1118 = vmatpush1.msra.mxu0 0.0
    %1119 = vmatprep.subr.mxu0 0.0
    %1120 = vmatpush1.msra.mxu0 0.0
    %1121 = vmatprep.subr.mxu0 0.0
    %1122 = vmatpush1.msra.mxu0 0.0
    %1123 = vmatprep.subr.mxu0 0.0
    %1124 = vmatpush1.msra.mxu0 0.0
    %1125 = vmatprep.subr.mxu0 0.0
    %1126 = vmatpush1.msra.mxu0 0.0
    %1127 = vmatprep.subr.mxu0 0.0
    %1128 = vmatpush1.msra.mxu0 0.0
    %1129 = vmatprep.subr.mxu0 0.0
    %1130 = vmatpush1.msra.mxu0 0.0
    %1131 = vmatprep.subr.mxu0 0.0
    %1132 = vmatpush1.msra.mxu0 0.0
    %1133 = vmatprep.subr.mxu0 0.0
    %1134 = vmatpush1.msra.mxu0 0.0
    %1135 = vmatprep.subr.mxu0 0.0
    %1136 = vmatpush1.msra.mxu0 0.0
    %1137 = vmatprep.subr.mxu0 0.0
    %1138 = vmatpush1.msra.mxu0 0.0
    %1139 = vmatprep.subr.mxu0 0.0
    %1140 = vmatpush1.msra.mxu0 0.0
    %1141 = vmatprep.subr.mxu0 0.0
    %1142 = vmatpush1.msra.mxu0 0.0
    %1143 = vmatprep.subr.mxu0 0.0
    %1144 = vmatpush1.msra.mxu0 0.0
    %1145 = vmatprep.subr.mxu0 0.0
    %1146 = vmatpush1.msra.mxu0 0.0
    %1147 = vmatprep.subr.mxu0 0.0
    %1148 = vmatpush1.msra.mxu0 0.0
    %1149 = vmatprep.subr.mxu0 0.0
    %1150 = vmatpush1.msra.mxu0 0.0
    %1151 = vmatprep.subr.mxu0 0.0
    %1152 = vmatpush1.msra.mxu0 0.0
    %1153 = vmatprep.mubr.f32.mxu0 0.0
    %1154 = vmatmul.mubr.f32.gmra.mrb[0].mxu0 %v1087
    %v1155 = vpop.f32.mrb[0].mxu0
    %v1156 = vadd.f32 0.0, %v1155
    %v1157 = vpop.f32.mrb[0].mxu0
    %1158 = vdwg.mxu0
    %v1159 = vadd.f32 %v261, %v1156
    %1161 = vrot.lane.b32.xlu0 %v1083, 64
    %v1162 = vpop.permute.xlu0 %1161
    %v1163 = vsel %vm145, %v1162, 0
    %1165 = vmatprep.subr.mxu0 0.0
    %1166 = vmatpush1.msra.mxu0 %v287
    %1167 = vmatprep.subr.mxu0 0.0
    %1168 = vmatpush1.msra.mxu0 %v288
    %1169 = vmatprep.subr.mxu0 0.0
    %1170 = vmatpush1.msra.mxu0 %v289
    %1171 = vmatprep.subr.mxu0 0.0
    %1172 = vmatpush1.msra.mxu0 %v290
    %1173 = vmatprep.subr.mxu0 0.0
    %1174 = vmatpush1.msra.mxu0 0.0
    %1175 = vmatprep.subr.mxu0 0.0
    %1176 = vmatpush1.msra.mxu0 0.0
    %1177 = vmatprep.subr.mxu0 0.0
    %1178 = vmatpush1.msra.mxu0 0.0
    %1179 = vmatprep.subr.mxu0 0.0
    %1180 = vmatpush1.msra.mxu0 0.0
    %1181 = vmatprep.subr.mxu0 0.0
    %1182 = vmatpush1.msra.mxu0 0.0
    %1183 = vmatprep.subr.mxu0 0.0
    %1184 = vmatpush1.msra.mxu0 0.0
    %1185 = vmatprep.subr.mxu0 0.0
    %1186 = vmatpush1.msra.mxu0 0.0
    %1187 = vmatprep.subr.mxu0 0.0
    %1188 = vmatpush1.msra.mxu0 0.0
    %1189 = vmatprep.subr.mxu0 0.0
    %1190 = vmatpush1.msra.mxu0 0.0
    %1191 = vmatprep.subr.mxu0 0.0
    %1192 = vmatpush1.msra.mxu0 0.0
    %1193 = vmatprep.subr.mxu0 0.0
    %1194 = vmatpush1.msra.mxu0 0.0
    %1195 = vmatprep.subr.mxu0 0.0
    %1196 = vmatpush1.msra.mxu0 0.0
    %1197 = vmatprep.subr.mxu0 0.0
    %1198 = vmatpush1.msra.mxu0 0.0
    %1199 = vmatprep.subr.mxu0 0.0
    %1200 = vmatpush1.msra.mxu0 0.0
    %1201 = vmatprep.subr.mxu0 0.0
    %1202 = vmatpush1.msra.mxu0 0.0
    %1203 = vmatprep.subr.mxu0 0.0
    %1204 = vmatpush1.msra.mxu0 0.0
    %1205 = vmatprep.subr.mxu0 0.0
    %1206 = vmatpush1.msra.mxu0 0.0
    %1207 = vmatprep.subr.mxu0 0.0
    %1208 = vmatpush1.msra.mxu0 0.0
    %1209 = vmatprep.subr.mxu0 0.0
    %1210 = vmatpush1.msra.mxu0 0.0
    %1211 = vmatprep.subr.mxu0 0.0
    %1212 = vmatpush1.msra.mxu0 0.0
    %1213 = vmatprep.subr.mxu0 0.0
    %1214 = vmatpush1.msra.mxu0 0.0
    %1215 = vmatprep.subr.mxu0 0.0
    %1216 = vmatpush1.msra.mxu0 0.0
    %1217 = vmatprep.subr.mxu0 0.0
    %1218 = vmatpush1.msra.mxu0 0.0
    %1219 = vmatprep.subr.mxu0 0.0
    %1220 = vmatpush1.msra.mxu0 0.0
    %1221 = vmatprep.subr.mxu0 0.0
    %1222 = vmatpush1.msra.mxu0 0.0
    %1223 = vmatprep.subr.mxu0 0.0
    %1224 = vmatpush1.msra.mxu0 0.0
    %1225 = vmatprep.subr.mxu0 0.0
    %1226 = vmatpush1.msra.mxu0 0.0
    %1227 = vmatprep.subr.mxu0 0.0
    %1228 = vmatpush1.msra.mxu0 0.0
    %1229 = vmatprep.mubr.f32.mxu0 0.0
    %1230 = vmatmul.mubr.f32.gmra.mrb[0].mxu0 %v1163
    %v1231 = vpop.f32.mrb[0].mxu0
    %v1232 = vadd.f32 0.0, %v1231
    %v1233 = vpop.f32.mrb[0].mxu0
    %1234 = vdwg.mxu0
    %v1235 = vadd.f32 %v257, %v1232
    %v1236 = vxor.u32 %v1159, 2147483648
    %v1237 = vmul.f32 %v1236, 1.442695
    %v1238 = vpow.pop %v1237
    %v1239 = vadd.f32 %v1238, 1.0
    %v1240 = vrcp.pop %v1239
    %v1241 = vmul.f32 1.0, %v1240
    %v1242 = vtanh.pop %v1159
    %v1243 = vmul.f32 %v1241, %v1053
    %1245 = vrot.lane.b32.xlu0 %v1242, 32
    %v1246 = vpop.permute.xlu0 %1245
    %v1248 = vmul.f32 %v1241, %v1246
    %1250 = vrot.lane.b32.xlu0 %v1248, 32
    %v1251 = vpop.permute.xlu0 %1250
    %v1253 = vadd.f32 %v1243, %v1251
    %v1254 = vtanh.pop %v1253
    %1256 = vrot.lane.b32.xlu0 %v1254, 32
    %v1257 = vpop.permute.xlu0 %1256
    %v1259 = vmul.f32 %v1241, %v1257
    %v1260 = vxor.u32 %v1235, 2147483648
    %v1261 = vmul.f32 %v1260, 1.442695
    %v1262 = vpow.pop %v1261
    %v1263 = vadd.f32 %v1262, 1.0
    %v1264 = vrcp.pop %v1263
    %v1265 = vmul.f32 1.0, %v1264
    %v1266 = vtanh.pop %v1235
    %v1267 = vmul.f32 %v1265, %v1077
    %1269 = vrot.lane.b32.xlu0 %v1266, 32
    %v1270 = vpop.permute.xlu0 %1269
    %v1272 = vmul.f32 %v1265, %v1270
    %1274 = vrot.lane.b32.xlu0 %v1272, 32
    %v1275 = vpop.permute.xlu0 %1274
    %v1277 = vadd.f32 %v1267, %v1275
    %v1278 = vtanh.pop %v1277
    %1280 = vrot.lane.b32.xlu0 %v1278, 32
    %v1281 = vpop.permute.xlu0 %1280
    %v1283 = vmul.f32 %v1265, %v1281
    %1285 = vrot.lane.b32.xlu0 %v1259, 64
    %v1286 = vpop.permute.xlu0 %1285
    %v1287 = vsel %vm145, %v1286, 0
    %1289 = vmatprep.subr.mxu0 0.0
    %1290 = vmatpush1.msra.mxu0 %v283
    %1291 = vmatprep.subr.mxu0 0.0
    %1292 = vmatpush1.msra.mxu0 %v284
    %1293 = vmatprep.subr.mxu0 0.0
    %1294 = vmatpush1.msra.mxu0 %v285
    %1295 = vmatprep.subr.mxu0 0.0
    %1296 = vmatpush1.msra.mxu0 %v286
    %1297 = vmatprep.subr.mxu0 0.0
    %1298 = vmatpush1.msra.mxu0 0.0
    %1299 = vmatprep.subr.mxu0 0.0
    %1300 = vmatpush1.msra.mxu0 0.0
    %1301 = vmatprep.subr.mxu0 0.0
    %1302 = vmatpush1.msra.mxu0 0.0
    %1303 = vmatprep.subr.mxu0 0.0
    %1304 = vmatpush1.msra.mxu0 0.0
    %1305 = vmatprep.subr.mxu0 0.0
    %1306 = vmatpush1.msra.mxu0 0.0
    %1307 = vmatprep.subr.mxu0 0.0
    %1308 = vmatpush1.msra.mxu0 0.0
    %1309 = vmatprep.subr.mxu0 0.0
    %1310 = vmatpush1.msra.mxu0 0.0
    %1311 = vmatprep.subr.mxu0 0.0
    %1312 = vmatpush1.msra.mxu0 0.0
    %1313 = vmatprep.subr.mxu0 0.0
    %1314 = vmatpush1.msra.mxu0 0.0
    %1315 = vmatprep.subr.mxu0 0.0
    %1316 = vmatpush1.msra.mxu0 0.0
    %1317 = vmatprep.subr.mxu0 0.0
    %1318 = vmatpush1.msra.mxu0 0.0
    %1319 = vmatprep.subr.mxu0 0.0
    %1320 = vmatpush1.msra.mxu0 0.0
    %1321 = vmatprep.subr.mxu0 0.0
    %1322 = vmatpush1.msra.mxu0 0.0
    %1323 = vmatprep.subr.mxu0 0.0
    %1324 = vmatpush1.msra.mxu0 0.0
    %1325 = vmatprep.subr.mxu0 0.0
    %1326 = vmatpush1.msra.mxu0 0.0
    %1327 = vmatprep.subr.mxu0 0.0
    %1328 = vmatpush1.msra.mxu0 0.0
    %1329 = vmatprep.subr.mxu0 0.0
    %1330 = vmatpush1.msra.mxu0 0.0
    %1331 = vmatprep.subr.mxu0 0.0
    %1332 = vmatpush1.msra.mxu0 0.0
    %1333 = vmatprep.subr.mxu0 0.0
    %1334 = vmatpush1.msra.mxu0 0.0
    %1335 = vmatprep.subr.mxu0 0.0
    %1336 = vmatpush1.msra.mxu0 0.0
    %1337 = vmatprep.subr.mxu0 0.0
    %1338 = vmatpush1.msra.mxu0 0.0
    %1339 = vmatprep.subr.mxu0 0.0
    %1340 = vmatpush1.msra.mxu0 0.0
    %1341 = vmatprep.subr.mxu0 0.0
    %1342 = vmatpush1.msra.mxu0 0.0
    %1343 = vmatprep.subr.mxu0 0.0
    %1344 = vmatpush1.msra.mxu0 0.0
    %1345 = vmatprep.subr.mxu0 0.0
    %1346 = vmatpush1.msra.mxu0 0.0
    %1347 = vmatprep.subr.mxu0 0.0
    %1348 = vmatpush1.msra.mxu0 0.0
    %1349 = vmatprep.subr.mxu0 0.0
    %1350 = vmatpush1.msra.mxu0 0.0
    %1351 = vmatprep.subr.mxu0 0.0
    %1352 = vmatpush1.msra.mxu0 0.0
    %1353 = vmatprep.mubr.f32.mxu0 0.0
    %1354 = vmatmul.mubr.f32.gmra.mrb[0].mxu0 %v1287
    %v1355 = vpop.f32.mrb[0].mxu0
    %v1356 = vadd.f32 0.0, %v1355
    %v1357 = vpop.f32.mrb[0].mxu0
    %1358 = vdwg.mxu0
    %v1359 = vadd.f32 %v267, %v1356
    %1361 = vrot.lane.b32.xlu0 %v1283, 64
    %v1362 = vpop.permute.xlu0 %1361
    %v1363 = vsel %vm145, %v1362, 0
    %1365 = vmatprep.subr.mxu0 0.0
    %1366 = vmatpush1.msra.mxu0 %v287
    %1367 = vmatprep.subr.mxu0 0.0
    %1368 = vmatpush1.msra.mxu0 %v288
    %1369 = vmatprep.subr.mxu0 0.0
    %1370 = vmatpush1.msra.mxu0 %v289
    %1371 = vmatprep.subr.mxu0 0.0
    %1372 = vmatpush1.msra.mxu0 %v290
    %1373 = vmatprep.subr.mxu0 0.0
    %1374 = vmatpush1.msra.mxu0 0.0
    %1375 = vmatprep.subr.mxu0 0.0
    %1376 = vmatpush1.msra.mxu0 0.0
    %1377 = vmatprep.subr.mxu0 0.0
    %1378 = vmatpush1.msra.mxu0 0.0
    %1379 = vmatprep.subr.mxu0 0.0
    %1380 = vmatpush1.msra.mxu0 0.0
    %1381 = vmatprep.subr.mxu0 0.0
    %1382 = vmatpush1.msra.mxu0 0.0
    %1383 = vmatprep.subr.mxu0 0.0
    %1384 = vmatpush1.msra.mxu0 0.0
    %1385 = vmatprep.subr.mxu0 0.0
    %1386 = vmatpush1.msra.mxu0 0.0
    %1387 = vmatprep.subr.mxu0 0.0
    %1388 = vmatpush1.msra.mxu0 0.0
    %1389 = vmatprep.subr.mxu0 0.0
    %1390 = vmatpush1.msra.mxu0 0.0
    %1391 = vmatprep.subr.mxu0 0.0
    %1392 = vmatpush1.msra.mxu0 0.0
    %1393 = vmatprep.subr.mxu0 0.0
    %1394 = vmatpush1.msra.mxu0 0.0
    %1395 = vmatprep.subr.mxu0 0.0
    %1396 = vmatpush1.msra.mxu0 0.0
    %1397 = vmatprep.subr.mxu0 0.0
    %1398 = vmatpush1.msra.mxu0 0.0
    %1399 = vmatprep.subr.mxu0 0.0
    %1400 = vmatpush1.msra.mxu0 0.0
    %1401 = vmatprep.subr.mxu0 0.0
    %1402 = vmatpush1.msra.mxu0 0.0
    %1403 = vmatprep.subr.mxu0 0.0
    %1404 = vmatpush1.msra.mxu0 0.0
    %1405 = vmatprep.subr.mxu0 0.0
    %1406 = vmatpush1.msra.mxu0 0.0
    %1407 = vmatprep.subr.mxu0 0.0
    %1408 = vmatpush1.msra.mxu0 0.0
    %1409 = vmatprep.subr.mxu0 0.0
    %1410 = vmatpush1.msra.mxu0 0.0
    %1411 = vmatprep.subr.mxu0 0.0
    %1412 = vmatpush1.msra.mxu0 0.0
    %1413 = vmatprep.subr.mxu0 0.0
    %1414 = vmatpush1.msra.mxu0 0.0
    %1415 = vmatprep.subr.mxu0 0.0
    %1416 = vmatpush1.msra.mxu0 0.0
    %1417 = vmatprep.subr.mxu0 0.0
    %1418 = vmatpush1.msra.mxu0 0.0
    %1419 = vmatprep.subr.mxu0 0.0
    %1420 = vmatpush1.msra.mxu0 0.0
    %1421 = vmatprep.subr.mxu0 0.0
    %1422 = vmatpush1.msra.mxu0 0.0
    %1423 = vmatprep.subr.mxu0 0.0
    %1424 = vmatpush1.msra.mxu0 0.0
    %1425 = vmatprep.subr.mxu0 0.0
    %1426 = vmatpush1.msra.mxu0 0.0
    %1427 = vmatprep.subr.mxu0 0.0
    %1428 = vmatpush1.msra.mxu0 0.0
    %1429 = vmatprep.mubr.f32.mxu0 0.0
    %1430 = vmatmul.mubr.f32.gmra.mrb[0].mxu0 %v1363
    %v1431 = vpop.f32.mrb[0].mxu0
    %v1432 = vadd.f32 0.0, %v1431
    %v1433 = vpop.f32.mrb[0].mxu0
    %1434 = vdwg.mxu0
    %v1435 = vadd.f32 %v251, %v1432
    %v1436 = vxor.u32 %v1359, 2147483648
    %v1437 = vmul.f32 %v1436, 1.442695
    %v1438 = vpow.pop %v1437
    %v1439 = vadd.f32 %v1438, 1.0
    %v1440 = vrcp.pop %v1439
    %v1441 = vmul.f32 1.0, %v1440
    %v1442 = vtanh.pop %v1359
    %v1443 = vmul.f32 %v1441, %v1253
    %1445 = vrot.lane.b32.xlu0 %v1442, 32
    %v1446 = vpop.permute.xlu0 %1445
    %v1448 = vmul.f32 %v1441, %v1446
    %1450 = vrot.lane.b32.xlu0 %v1448, 32
    %v1451 = vpop.permute.xlu0 %1450
    %v1453 = vadd.f32 %v1443, %v1451
    %v1454 = vtanh.pop %v1453
    %1456 = vrot.lane.b32.xlu0 %v1454, 32
    %v1457 = vpop.permute.xlu0 %1456
    %v1459 = vmul.f32 %v1441, %v1457
    %v1460 = vxor.u32 %v1435, 2147483648
    %v1461 = vmul.f32 %v1460, 1.442695
    %v1462 = vpow.pop %v1461
    %v1463 = vadd.f32 %v1462, 1.0
    %v1464 = vrcp.pop %v1463
    %v1465 = vmul.f32 1.0, %v1464
    %v1466 = vtanh.pop %v1435
    %v1467 = vmul.f32 %v1465, %v1277
    %1469 = vrot.lane.b32.xlu0 %v1466, 32
    %v1470 = vpop.permute.xlu0 %1469
    %v1472 = vmul.f32 %v1465, %v1470
    %1474 = vrot.lane.b32.xlu0 %v1472, 32
    %v1475 = vpop.permute.xlu0 %1474
    %v1477 = vadd.f32 %v1467, %v1475
    %v1478 = vtanh.pop %v1477
    %1480 = vrot.lane.b32.xlu0 %v1478, 32
    %v1481 = vpop.permute.xlu0 %1480
    %v1483 = vmul.f32 %v1465, %v1481
    %1485 = vrot.lane.b32.xlu0 %v1459, 64
    %v1486 = vpop.permute.xlu0 %1485
    %v1487 = vsel %vm145, %v1486, 0
    %1489 = vmatprep.subr.mxu0 0.0
    %1490 = vmatpush1.msra.mxu0 %v283
    %1491 = vmatprep.subr.mxu0 0.0
    %1492 = vmatpush1.msra.mxu0 %v284
    %1493 = vmatprep.subr.mxu0 0.0
    %1494 = vmatpush1.msra.mxu0 %v285
    %1495 = vmatprep.subr.mxu0 0.0
    %1496 = vmatpush1.msra.mxu0 %v286
    %1497 = vmatprep.subr.mxu0 0.0
    %1498 = vmatpush1.msra.mxu0 0.0
    %1499 = vmatprep.subr.mxu0 0.0
    %1500 = vmatpush1.msra.mxu0 0.0
    %1501 = vmatprep.subr.mxu0 0.0
    %1502 = vmatpush1.msra.mxu0 0.0
    %1503 = vmatprep.subr.mxu0 0.0
    %1504 = vmatpush1.msra.mxu0 0.0
    %1505 = vmatprep.subr.mxu0 0.0
    %1506 = vmatpush1.msra.mxu0 0.0
    %1507 = vmatprep.subr.mxu0 0.0
    %1508 = vmatpush1.msra.mxu0 0.0
    %1509 = vmatprep.subr.mxu0 0.0
    %1510 = vmatpush1.msra.mxu0 0.0
    %1511 = vmatprep.subr.mxu0 0.0
    %1512 = vmatpush1.msra.mxu0 0.0
    %1513 = vmatprep.subr.mxu0 0.0
    %1514 = vmatpush1.msra.mxu0 0.0
    %1515 = vmatprep.subr.mxu0 0.0
    %1516 = vmatpush1.msra.mxu0 0.0
    %1517 = vmatprep.subr.mxu0 0.0
    %1518 = vmatpush1.msra.mxu0 0.0
    %1519 = vmatprep.subr.mxu0 0.0
    %1520 = vmatpush1.msra.mxu0 0.0
    %1521 = vmatprep.subr.mxu0 0.0
    %1522 = vmatpush1.msra.mxu0 0.0
    %1523 = vmatprep.subr.mxu0 0.0
    %1524 = vmatpush1.msra.mxu0 0.0
    %1525 = vmatprep.subr.mxu0 0.0
    %1526 = vmatpush1.msra.mxu0 0.0
    %1527 = vmatprep.subr.mxu0 0.0
    %1528 = vmatpush1.msra.mxu0 0.0
    %1529 = vmatprep.subr.mxu0 0.0
    %1530 = vmatpush1.msra.mxu0 0.0
    %1531 = vmatprep.subr.mxu0 0.0
    %1532 = vmatpush1.msra.mxu0 0.0
    %1533 = vmatprep.subr.mxu0 0.0
    %1534 = vmatpush1.msra.mxu0 0.0
    %1535 = vmatprep.subr.mxu0 0.0
    %1536 = vmatpush1.msra.mxu0 0.0
    %1537 = vmatprep.subr.mxu0 0.0
    %1538 = vmatpush1.msra.mxu0 0.0
    %1539 = vmatprep.subr.mxu0 0.0
    %1540 = vmatpush1.msra.mxu0 0.0
    %1541 = vmatprep.subr.mxu0 0.0
    %1542 = vmatpush1.msra.mxu0 0.0
    %1543 = vmatprep.subr.mxu0 0.0
    %1544 = vmatpush1.msra.mxu0 0.0
    %1545 = vmatprep.subr.mxu0 0.0
    %1546 = vmatpush1.msra.mxu0 0.0
    %1547 = vmatprep.subr.mxu0 0.0
    %1548 = vmatpush1.msra.mxu0 0.0
    %1549 = vmatprep.subr.mxu0 0.0
    %1550 = vmatpush1.msra.mxu0 0.0
    %1551 = vmatprep.subr.mxu0 0.0
    %1552 = vmatpush1.msra.mxu0 0.0
    %1553 = vmatprep.mubr.f32.mxu0 0.0
    %1554 = vmatmul.mubr.f32.gmra.mrb[0].mxu0 %v1487
    %v1555 = vpop.f32.mrb[0].mxu0
    %v1556 = vadd.f32 0.0, %v1555
    %v1557 = vpop.f32.mrb[0].mxu0
    %1558 = vdwg.mxu0
    %v1559 = vadd.f32 %v273, %v1556
    %1561 = vrot.lane.b32.xlu0 %v1483, 64
    %v1562 = vpop.permute.xlu0 %1561
    %v1563 = vsel %vm145, %v1562, 0
    %1565 = vmatprep.subr.mxu0 0.0
    %1566 = vmatpush1.msra.mxu0 %v287
    %1567 = vmatprep.subr.mxu0 0.0
    %1568 = vmatpush1.msra.mxu0 %v288
    %1569 = vmatprep.subr.mxu0 0.0
    %1570 = vmatpush1.msra.mxu0 %v289
    %1571 = vmatprep.subr.mxu0 0.0
    %1572 = vmatpush1.msra.mxu0 %v290
    %1573 = vmatprep.subr.mxu0 0.0
    %1574 = vmatpush1.msra.mxu0 0.0
    %1575 = vmatprep.subr.mxu0 0.0
    %1576 = vmatpush1.msra.mxu0 0.0
    %1577 = vmatprep.subr.mxu0 0.0
    %1578 = vmatpush1.msra.mxu0 0.0
    %1579 = vmatprep.subr.mxu0 0.0
    %1580 = vmatpush1.msra.mxu0 0.0
    %1581 = vmatprep.subr.mxu0 0.0
    %1582 = vmatpush1.msra.mxu0 0.0
    %1583 = vmatprep.subr.mxu0 0.0
    %1584 = vmatpush1.msra.mxu0 0.0
    %1585 = vmatprep.subr.mxu0 0.0
    %1586 = vmatpush1.msra.mxu0 0.0
    %1587 = vmatprep.subr.mxu0 0.0
    %1588 = vmatpush1.msra.mxu0 0.0
    %1589 = vmatprep.subr.mxu0 0.0
    %1590 = vmatpush1.msra.mxu0 0.0
    %1591 = vmatprep.subr.mxu0 0.0
    %1592 = vmatpush1.msra.mxu0 0.0
    %1593 = vmatprep.subr.mxu0 0.0
    %1594 = vmatpush1.msra.mxu0 0.0
    %1595 = vmatprep.subr.mxu0 0.0
    %1596 = vmatpush1.msra.mxu0 0.0
    %1597 = vmatprep.subr.mxu0 0.0
    %1598 = vmatpush1.msra.mxu0 0.0
    %1599 = vmatprep.subr.mxu0 0.0
    %1600 = vmatpush1.msra.mxu0 0.0
    %1601 = vmatprep.subr.mxu0 0.0
    %1602 = vmatpush1.msra.mxu0 0.0
    %1603 = vmatprep.subr.mxu0 0.0
    %1604 = vmatpush1.msra.mxu0 0.0
    %1605 = vmatprep.subr.mxu0 0.0
    %1606 = vmatpush1.msra.mxu0 0.0
    %1607 = vmatprep.subr.mxu0 0.0
    %1608 = vmatpush1.msra.mxu0 0.0
    %1609 = vmatprep.subr.mxu0 0.0
    %1610 = vmatpush1.msra.mxu0 0.0
    %1611 = vmatprep.subr.mxu0 0.0
    %1612 = vmatpush1.msra.mxu0 0.0
    %1613 = vmatprep.subr.mxu0 0.0
    %1614 = vmatpush1.msra.mxu0 0.0
    %1615 = vmatprep.subr.mxu0 0.0
    %1616 = vmatpush1.msra.mxu0 0.0
    %1617 = vmatprep.subr.mxu0 0.0
    %1618 = vmatpush1.msra.mxu0 0.0
    %1619 = vmatprep.subr.mxu0 0.0
    %1620 = vmatpush1.msra.mxu0 0.0
    %1621 = vmatprep.subr.mxu0 0.0
    %1622 = vmatpush1.msra.mxu0 0.0
    %1623 = vmatprep.subr.mxu0 0.0
    %1624 = vmatpush1.msra.mxu0 0.0
    %1625 = vmatprep.subr.mxu0 0.0
    %1626 = vmatpush1.msra.mxu0 0.0
    %1627 = vmatprep.subr.mxu0 0.0
    %1628 = vmatpush1.msra.mxu0 0.0
    %1629 = vmatprep.mubr.f32.mxu0 0.0
    %1630 = vmatmul.mubr.f32.gmra.mrb[0].mxu0 %v1563
    %v1631 = vpop.f32.mrb[0].mxu0
    %v1632 = vadd.f32 0.0, %v1631
    %v1633 = vpop.f32.mrb[0].mxu0
    %1634 = vdwg.mxu0
    %v1635 = vadd.f32 %v245, %v1632
    %v1636 = vxor.u32 %v1559, 2147483648
    %v1637 = vmul.f32 %v1636, 1.442695
    %v1638 = vpow.pop %v1637
    %v1639 = vadd.f32 %v1638, 1.0
    %v1640 = vrcp.pop %v1639
    %v1641 = vmul.f32 1.0, %v1640
    %v1642 = vtanh.pop %v1559
    %v1643 = vmul.f32 %v1641, %v1453
    %1645 = vrot.lane.b32.xlu0 %v1642, 32
    %v1646 = vpop.permute.xlu0 %1645
    %v1648 = vmul.f32 %v1641, %v1646
    %1650 = vrot.lane.b32.xlu0 %v1648, 32
    %v1651 = vpop.permute.xlu0 %1650
    %v1653 = vadd.f32 %v1643, %v1651
    %v1654 = vtanh.pop %v1653
    %1656 = vrot.lane.b32.xlu0 %v1654, 32
    %v1657 = vpop.permute.xlu0 %1656
    %v1659 = vmul.f32 %v1641, %v1657
    %v1660 = vxor.u32 %v1635, 2147483648
    %v1661 = vmul.f32 %v1660, 1.442695
    %v1662 = vpow.pop %v1661
    %v1663 = vadd.f32 %v1662, 1.0
    %v1664 = vrcp.pop %v1663
    %v1665 = vmul.f32 1.0, %v1664
    %v1666 = vtanh.pop %v1635
    %v1667 = vmul.f32 %v1665, %v1477
    %1669 = vrot.lane.b32.xlu0 %v1666, 32
    %v1670 = vpop.permute.xlu0 %1669
    %v1672 = vmul.f32 %v1665, %v1670
    %1674 = vrot.lane.b32.xlu0 %v1672, 32
    %v1675 = vpop.permute.xlu0 %1674
    %v1677 = vadd.f32 %v1667, %v1675
    %v1678 = vtanh.pop %v1677
    %1680 = vrot.lane.b32.xlu0 %v1678, 32
    %v1681 = vpop.permute.xlu0 %1680
    %v1683 = vmul.f32 %v1665, %v1681
    %1685 = vrot.lane.b32.xlu0 %v1659, 64
    %v1686 = vpop.permute.xlu0 %1685
    %v1687 = vsel %vm145, %v1686, 0
    %1689 = vmatprep.subr.mxu0 0.0
    %1690 = vmatpush1.msra.mxu0 %v283
    %1691 = vmatprep.subr.mxu0 0.0
    %1692 = vmatpush1.msra.mxu0 %v284
    %1693 = vmatprep.subr.mxu0 0.0
    %1694 = vmatpush1.msra.mxu0 %v285
    %1695 = vmatprep.subr.mxu0 0.0
    %1696 = vmatpush1.msra.mxu0 %v286
    %1697 = vmatprep.subr.mxu0 0.0
    %1698 = vmatpush1.msra.mxu0 0.0
    %1699 = vmatprep.subr.mxu0 0.0
    %1700 = vmatpush1.msra.mxu0 0.0
    %1701 = vmatprep.subr.mxu0 0.0
    %1702 = vmatpush1.msra.mxu0 0.0
    %1703 = vmatprep.subr.mxu0 0.0
    %1704 = vmatpush1.msra.mxu0 0.0
    %1705 = vmatprep.subr.mxu0 0.0
    %1706 = vmatpush1.msra.mxu0 0.0
    %1707 = vmatprep.subr.mxu0 0.0
    %1708 = vmatpush1.msra.mxu0 0.0
    %1709 = vmatprep.subr.mxu0 0.0
    %1710 = vmatpush1.msra.mxu0 0.0
    %1711 = vmatprep.subr.mxu0 0.0
    %1712 = vmatpush1.msra.mxu0 0.0
    %1713 = vmatprep.subr.mxu0 0.0
    %1714 = vmatpush1.msra.mxu0 0.0
    %1715 = vmatprep.subr.mxu0 0.0
    %1716 = vmatpush1.msra.mxu0 0.0
    %1717 = vmatprep.subr.mxu0 0.0
    %1718 = vmatpush1.msra.mxu0 0.0
    %1719 = vmatprep.subr.mxu0 0.0
    %1720 = vmatpush1.msra.mxu0 0.0
    %1721 = vmatprep.subr.mxu0 0.0
    %1722 = vmatpush1.msra.mxu0 0.0
    %1723 = vmatprep.subr.mxu0 0.0
    %1724 = vmatpush1.msra.mxu0 0.0
    %1725 = vmatprep.subr.mxu0 0.0
    %1726 = vmatpush1.msra.mxu0 0.0
    %1727 = vmatprep.subr.mxu0 0.0
    %1728 = vmatpush1.msra.mxu0 0.0
    %1729 = vmatprep.subr.mxu0 0.0
    %1730 = vmatpush1.msra.mxu0 0.0
    %1731 = vmatprep.subr.mxu0 0.0
    %1732 = vmatpush1.msra.mxu0 0.0
    %1733 = vmatprep.subr.mxu0 0.0
    %1734 = vmatpush1.msra.mxu0 0.0
    %1735 = vmatprep.subr.mxu0 0.0
    %1736 = vmatpush1.msra.mxu0 0.0
    %1737 = vmatprep.subr.mxu0 0.0
    %1738 = vmatpush1.msra.mxu0 0.0
    %1739 = vmatprep.subr.mxu0 0.0
    %1740 = vmatpush1.msra.mxu0 0.0
    %1741 = vmatprep.subr.mxu0 0.0
    %1742 = vmatpush1.msra.mxu0 0.0
    %1743 = vmatprep.subr.mxu0 0.0
    %1744 = vmatpush1.msra.mxu0 0.0
    %1745 = vmatprep.subr.mxu0 0.0
    %1746 = vmatpush1.msra.mxu0 0.0
    %1747 = vmatprep.subr.mxu0 0.0
    %1748 = vmatpush1.msra.mxu0 0.0
    %1749 = vmatprep.subr.mxu0 0.0
    %1750 = vmatpush1.msra.mxu0 0.0
    %1751 = vmatprep.subr.mxu0 0.0
    %1752 = vmatpush1.msra.mxu0 0.0
    %1753 = vmatprep.mubr.f32.mxu0 0.0
    %1754 = vmatmul.mubr.f32.gmra.mrb[0].mxu0 %v1687
    %v1755 = vpop.f32.mrb[0].mxu0
    %v1756 = vadd.f32 0.0, %v1755
    %v1757 = vpop.f32.mrb[0].mxu0
    %1758 = vdwg.mxu0
    %v1759 = vadd.f32 %v279, %v1756
    %1761 = vrot.lane.b32.xlu0 %v1683, 64
    %v1762 = vpop.permute.xlu0 %1761
    %v1763 = vsel %vm145, %v1762, 0
    %1765 = vmatprep.subr.mxu0 0.0
    %1766 = vmatpush1.msra.mxu0 %v287
    %1767 = vmatprep.subr.mxu0 0.0
    %1768 = vmatpush1.msra.mxu0 %v288
    %1769 = vmatprep.subr.mxu0 0.0
    %1770 = vmatpush1.msra.mxu0 %v289
    %1771 = vmatprep.subr.mxu0 0.0
    %1772 = vmatpush1.msra.mxu0 %v290
    %1773 = vmatprep.subr.mxu0 0.0
    %1774 = vmatpush1.msra.mxu0 0.0
    %1775 = vmatprep.subr.mxu0 0.0
    %1776 = vmatpush1.msra.mxu0 0.0
    %1777 = vmatprep.subr.mxu0 0.0
    %1778 = vmatpush1.msra.mxu0 0.0
    %1779 = vmatprep.subr.mxu0 0.0
    %1780 = vmatpush1.msra.mxu0 0.0
    %1781 = vmatprep.subr.mxu0 0.0
    %1782 = vmatpush1.msra.mxu0 0.0
    %1783 = vmatprep.subr.mxu0 0.0
    %1784 = vmatpush1.msra.mxu0 0.0
    %1785 = vmatprep.subr.mxu0 0.0
    %1786 = vmatpush1.msra.mxu0 0.0
    %1787 = vmatprep.subr.mxu0 0.0
    %1788 = vmatpush1.msra.mxu0 0.0
    %1789 = vmatprep.subr.mxu0 0.0
    %1790 = vmatpush1.msra.mxu0 0.0
    %1791 = vmatprep.subr.mxu0 0.0
    %1792 = vmatpush1.msra.mxu0 0.0
    %1793 = vmatprep.subr.mxu0 0.0
    %1794 = vmatpush1.msra.mxu0 0.0
    %1795 = vmatprep.subr.mxu0 0.0
    %1796 = vmatpush1.msra.mxu0 0.0
    %1797 = vmatprep.subr.mxu0 0.0
    %1798 = vmatpush1.msra.mxu0 0.0
    %1799 = vmatprep.subr.mxu0 0.0
    %1800 = vmatpush1.msra.mxu0 0.0
    %1801 = vmatprep.subr.mxu0 0.0
    %1802 = vmatpush1.msra.mxu0 0.0
    %1803 = vmatprep.subr.mxu0 0.0
    %1804 = vmatpush1.msra.mxu0 0.0
    %1805 = vmatprep.subr.mxu0 0.0
    %1806 = vmatpush1.msra.mxu0 0.0
    %1807 = vmatprep.subr.mxu0 0.0
    %1808 = vmatpush1.msra.mxu0 0.0
    %1809 = vmatprep.subr.mxu0 0.0
    %1810 = vmatpush1.msra.mxu0 0.0
    %1811 = vmatprep.subr.mxu0 0.0
    %1812 = vmatpush1.msra.mxu0 0.0
    %1813 = vmatprep.subr.mxu0 0.0
    %1814 = vmatpush1.msra.mxu0 0.0
    %1815 = vmatprep.subr.mxu0 0.0
    %1816 = vmatpush1.msra.mxu0 0.0
    %1817 = vmatprep.subr.mxu0 0.0
    %1818 = vmatpush1.msra.mxu0 0.0
    %1819 = vmatprep.subr.mxu0 0.0
    %1820 = vmatpush1.msra.mxu0 0.0
    %1821 = vmatprep.subr.mxu0 0.0
    %1822 = vmatpush1.msra.mxu0 0.0
    %1823 = vmatprep.subr.mxu0 0.0
    %1824 = vmatpush1.msra.mxu0 0.0
    %1825 = vmatprep.subr.mxu0 0.0
    %1826 = vmatpush1.msra.mxu0 0.0
    %1827 = vmatprep.subr.mxu0 0.0
    %1828 = vmatpush1.msra.mxu0 0.0
    %1829 = vmatprep.mubr.f32.mxu0 0.0
    %1830 = vmatmul.mubr.f32.gmra.mrb[0].mxu0 %v1763
    %v1831 = vpop.f32.mrb[0].mxu0
    %v1832 = vadd.f32 0.0, %v1831
    %v1833 = vpop.f32.mrb[0].mxu0
    %1834 = vdwg.mxu0
    %v1835 = vadd.f32 %v239, %v1832
    %v1836 = vxor.u32 %v1759, 2147483648
    %v1837 = vmul.f32 %v1836, 1.442695
    %v1838 = vpow.pop %v1837
    %v1839 = vadd.f32 %v1838, 1.0
    %v1840 = vrcp.pop %v1839
    %v1841 = vmul.f32 1.0, %v1840
    %v1842 = vtanh.pop %v1759
    %v1843 = vmul.f32 %v1841, %v1653
    %1845 = vrot.lane.b32.xlu0 %v1842, 32
    %v1846 = vpop.permute.xlu0 %1845
    %v1848 = vmul.f32 %v1841, %v1846
    %1850 = vrot.lane.b32.xlu0 %v1848, 32
    %v1851 = vpop.permute.xlu0 %1850
    %v1853 = vadd.f32 %v1843, %v1851
    %v1854 = vtanh.pop %v1853
    %1856 = vrot.lane.b32.xlu0 %v1854, 32
    %v1857 = vpop.permute.xlu0 %1856
    %v1859 = vmul.f32 %v1841, %v1857
    %v1860 = vxor.u32 %v1835, 2147483648
    %v1861 = vmul.f32 %v1860, 1.442695
    %v1862 = vpow.pop %v1861
    %v1863 = vadd.f32 %v1862, 1.0
    %v1864 = vrcp.pop %v1863
    %v1865 = vmul.f32 1.0, %v1864
    %v1866 = vtanh.pop %v1835
    %v1867 = vmul.f32 %v1865, %v1677
    %1869 = vrot.lane.b32.xlu0 %v1866, 32
    %v1870 = vpop.permute.xlu0 %1869
    %v1872 = vmul.f32 %v1865, %v1870
    %1874 = vrot.lane.b32.xlu0 %v1872, 32
    %v1875 = vpop.permute.xlu0 %1874
    %v1877 = vadd.f32 %v1867, %v1875
    %v1878 = vtanh.pop %v1877
    %1880 = vrot.lane.b32.xlu0 %v1878, 32
    %v1881 = vpop.permute.xlu0 %1880
    %v1883 = vmul.f32 %v1865, %v1881
    %1885 = vrot.lane.b32.xlu0 %v1859, 64
    %v1886 = vpop.permute.xlu0 %1885
    %1896 = vrot.lane.b32.xlu0 %v1883, 96
    %v1897 = vpop.permute.xlu0 %1896
    %1898 = vrot.lane.b32.xlu0 %v1683, 96
    %v1899 = vpop.permute.xlu0 %1898
    %1900 = vrot.lane.b32.xlu0 %v1483, 96
    %v1901 = vpop.permute.xlu0 %1900
    %1902 = vrot.lane.b32.xlu0 %v1283, 96
    %v1903 = vpop.permute.xlu0 %1902
    %1904 = vrot.lane.b32.xlu0 %v1083, 96
    %v1905 = vpop.permute.xlu0 %1904
    %1906 = vrot.lane.b32.xlu0 %v883, 96
    %v1907 = vpop.permute.xlu0 %1906
    %1908 = vrot.lane.b32.xlu0 %v683, 96
    %v1909 = vpop.permute.xlu0 %1908
    %1910 = vrot.lane.b32.xlu0 %v483, 96
    %v1911 = vpop.permute.xlu0 %1910
    %v1920 = vsel %vm145, %v486, %v1897
    %v1921 = vsel %vm145, %v686, %v1899
    %v1922 = vsel %vm145, %v886, %v1901
    %v1923 = vsel %vm145, %v1086, %v1903
    %v1924 = vsel %vm145, %v1286, %v1905
    %v1925 = vsel %vm145, %v1486, %v1907
    %v1926 = vsel %vm145, %v1686, %v1909
    %v1927 = vsel %vm145, %v1886, %v1911
    %v1928 = vld [vmem:[%s5] sm:$0xff]
    %v1929 = vld [vmem:[%s5 + $0x8] sm:$0xff]
    %v1930 = vld [vmem:[%s5 + $0x10] sm:$0xff]
    %v1931 = vld [vmem:[%s5 + $0x18] sm:$0xff]
    %v1932 = vld [vmem:[%s5 + $0x20] sm:$0xff]
    %v1933 = vld [vmem:[%s5 + $0x28] sm:$0xff]
    %v1934 = vld [vmem:[%s5 + $0x30] sm:$0xff]
    %v1935 = vld [vmem:[%s5 + $0x38] sm:$0xff]
    %v1936 = vld [vmem:[#allocation6] sm:$0x1]
    %v1938 = vlaneseq
    %v1939 = vshrl.u32 %v1938, 7
    %v1940 = vsub.s32 0, %v1939
    %v1941 = vrot.slane %v1936, %v1940
    %vm1943 = vcmask 523264
    %v1945 = vsel %vm1943, %v1920, 0
    %v1948 = vsel %vm1943, %v1921, 0
    %v1951 = vsel %vm1943, %v1922, 0
    %v1954 = vsel %vm1943, %v1923, 0
    %v1957 = vsel %vm1943, %v1924, 0
    %v1960 = vsel %vm1943, %v1925, 0
    %v1963 = vsel %vm1943, %v1926, 0
    %v1966 = vsel %vm1943, %v1927, 0
    %1968 = vmatprep.subr.mxu0 0.0
    %1969 = vmatpush1.msra.mxu0 %v1928
    %1970 = vmatprep.subr.mxu0 0.0
    %1971 = vmatpush1.msra.mxu0 %v1929
    %1972 = vmatprep.subr.mxu0 0.0
    %1973 = vmatpush1.msra.mxu0 %v1930
    %1974 = vmatprep.subr.mxu0 0.0
    %1975 = vmatpush1.msra.mxu0 %v1931
    %1976 = vmatprep.subr.mxu0 0.0
    %1977 = vmatpush1.msra.mxu0 %v1932
    %1978 = vmatprep.subr.mxu0 0.0
    %1979 = vmatpush1.msra.mxu0 %v1933
    %1980 = vmatprep.subr.mxu0 0.0
    %1981 = vmatpush1.msra.mxu0 %v1934
    %1982 = vmatprep.subr.mxu0 0.0
    %1983 = vmatpush1.msra.mxu0 %v1935
    %1984 = vmatprep.subr.mxu0 0.0
    %1985 = vmatpush1.msra.mxu0 0.0
    %1986 = vmatprep.subr.mxu0 0.0
    %1987 = vmatpush1.msra.mxu0 0.0
    %1988 = vmatprep.subr.mxu0 0.0
    %1989 = vmatpush1.msra.mxu0 0.0
    %1990 = vmatprep.subr.mxu0 0.0
    %1991 = vmatpush1.msra.mxu0 0.0
    %1992 = vmatprep.subr.mxu0 0.0
    %1993 = vmatpush1.msra.mxu0 0.0
    %1994 = vmatprep.subr.mxu0 0.0
    %1995 = vmatpush1.msra.mxu0 0.0
    %1996 = vmatprep.subr.mxu0 0.0
    %1997 = vmatpush1.msra.mxu0 0.0
    %1998 = vmatprep.subr.mxu0 0.0
    %1999 = vmatpush1.msra.mxu0 0.0
    %2000 = vmatprep.subr.mxu0 0.0
    %2001 = vmatpush1.msra.mxu0 0.0
    %2002 = vmatprep.subr.mxu0 0.0
    %2003 = vmatpush1.msra.mxu0 0.0
    %2004 = vmatprep.subr.mxu0 0.0
    %2005 = vmatpush1.msra.mxu0 0.0
    %2006 = vmatprep.subr.mxu0 0.0
    %2007 = vmatpush1.msra.mxu0 0.0
    %2008 = vmatprep.subr.mxu0 0.0
    %2009 = vmatpush1.msra.mxu0 0.0
    %2010 = vmatprep.subr.mxu0 0.0
    %2011 = vmatpush1.msra.mxu0 0.0
    %2012 = vmatprep.subr.mxu0 0.0
    %2013 = vmatpush1.msra.mxu0 0.0
    %2014 = vmatprep.subr.mxu0 0.0
    %2015 = vmatpush1.msra.mxu0 0.0
    %2016 = vmatprep.subr.mxu0 0.0
    %2017 = vmatpush1.msra.mxu0 0.0
    %2018 = vmatprep.subr.mxu0 0.0
    %2019 = vmatpush1.msra.mxu0 0.0
    %2020 = vmatprep.subr.mxu0 0.0
    %2021 = vmatpush1.msra.mxu0 0.0
    %2022 = vmatprep.subr.mxu0 0.0
    %2023 = vmatpush1.msra.mxu0 0.0
    %2024 = vmatprep.subr.mxu0 0.0
    %2025 = vmatpush1.msra.mxu0 0.0
    %2026 = vmatprep.subr.mxu0 0.0
    %2027 = vmatpush1.msra.mxu0 0.0
    %2028 = vmatprep.subr.mxu0 0.0
    %2029 = vmatpush1.msra.mxu0 0.0
    %2030 = vmatprep.subr.mxu0 0.0
    %2031 = vmatpush1.msra.mxu0 0.0
    %2032 = vmatprep.mubr.f32.mxu0 0.0
    %2033 = vmatmul.mubr.f32.gmra.mrb[0].mxu0 %v1945
    %v2034 = vpop.f32.mrb[0].mxu0
    %v2035 = vadd.f32 %v1941, %v2034
    %v2036 = vpop.f32.mrb[0].mxu0
    %2037 = vmatprep.mubr.f32.mxu0 0.0
    %2038 = vmatmul.mubr.f32.gmra.mrb[0].mxu0 %v1948
    %v2039 = vpop.f32.mrb[0].mxu0
    %v2040 = vadd.f32 %v1941, %v2039
    %v2041 = vpop.f32.mrb[0].mxu0
    %2042 = vmatprep.mubr.f32.mxu0 0.0
    %2043 = vmatmul.mubr.f32.gmra.mrb[0].mxu0 %v1951
    %v2044 = vpop.f32.mrb[0].mxu0
    %v2045 = vadd.f32 %v1941, %v2044
    %v2046 = vpop.f32.mrb[0].mxu0
    %2047 = vmatprep.mubr.f32.mxu0 0.0
    %2048 = vmatmul.mubr.f32.gmra.mrb[0].mxu0 %v1954
    %v2049 = vpop.f32.mrb[0].mxu0
    %v2050 = vadd.f32 %v1941, %v2049
    %v2051 = vpop.f32.mrb[0].mxu0
    %2052 = vmatprep.mubr.f32.mxu0 0.0
    %2053 = vmatmul.mubr.f32.gmra.mrb[0].mxu0 %v1957
    %v2054 = vpop.f32.mrb[0].mxu0
    %v2055 = vadd.f32 %v1941, %v2054
    %v2056 = vpop.f32.mrb[0].mxu0
    %2057 = vmatprep.mubr.f32.mxu0 0.0
    %2058 = vmatmul.mubr.f32.gmra.mrb[0].mxu0 %v1960
    %v2059 = vpop.f32.mrb[0].mxu0
    %v2060 = vadd.f32 %v1941, %v2059
    %v2061 = vpop.f32.mrb[0].mxu0
    %2062 = vmatprep.mubr.f32.mxu0 0.0
    %2063 = vmatmul.mubr.f32.gmra.mrb[0].mxu0 %v1963
    %v2064 = vpop.f32.mrb[0].mxu0
    %v2065 = vadd.f32 %v1941, %v2064
    %v2066 = vpop.f32.mrb[0].mxu0
    %2067 = vmatprep.mubr.f32.mxu0 0.0
    %2068 = vmatmul.mubr.f32.gmra.mrb[0].mxu0 %v1966
    %v2069 = vpop.f32.mrb[0].mxu0
    %v2070 = vadd.f32 %v1941, %v2069
    %v2071 = vpop.f32.mrb[0].mxu0
    %2072 = vdwg.mxu0
    %v2073 = vld [vmem:[%s6] sm:$0xff]
    %v2074 = vld [vmem:[%s6 + $0x8] sm:$0xff]
    %v2075 = vld [vmem:[%s6 + $0x10] sm:$0xff]
    %v2076 = vld [vmem:[%s6 + $0x18] sm:$0xff]
    %v2077 = vld [vmem:[%s6 + $0x20] sm:$0xff]
    %v2078 = vld [vmem:[%s6 + $0x28] sm:$0xff]
    %v2079 = vld [vmem:[%s6 + $0x30] sm:$0xff]
    %v2080 = vld [vmem:[%s6 + $0x38] sm:$0xff]
    %v2081 = vld [vmem:[#allocation7] sm:$0x1]
    %v2083 = vlaneseq
    %v2084 = vshrl.u32 %v2083, 7
    %v2085 = vsub.s32 0, %v2084
    %v2086 = vrot.slane %v2081, %v2085
    %2088 = vmatprep.subr.mxu0 0.0
    %2089 = vmatpush1.msra.mxu0 %v2073
    %2090 = vmatprep.subr.mxu0 0.0
    %2091 = vmatpush1.msra.mxu0 %v2074
    %2092 = vmatprep.subr.mxu0 0.0
    %2093 = vmatpush1.msra.mxu0 %v2075
    %2094 = vmatprep.subr.mxu0 0.0
    %2095 = vmatpush1.msra.mxu0 %v2076
    %2096 = vmatprep.subr.mxu0 0.0
    %2097 = vmatpush1.msra.mxu0 %v2077
    %2098 = vmatprep.subr.mxu0 0.0
    %2099 = vmatpush1.msra.mxu0 %v2078
    %2100 = vmatprep.subr.mxu0 0.0
    %2101 = vmatpush1.msra.mxu0 %v2079
    %2102 = vmatprep.subr.mxu0 0.0
    %2103 = vmatpush1.msra.mxu0 %v2080
    %2104 = vmatprep.subr.mxu0 0.0
    %2105 = vmatpush1.msra.mxu0 0.0
    %2106 = vmatprep.subr.mxu0 0.0
    %2107 = vmatpush1.msra.mxu0 0.0
    %2108 = vmatprep.subr.mxu0 0.0
    %2109 = vmatpush1.msra.mxu0 0.0
    %2110 = vmatprep.subr.mxu0 0.0
    %2111 = vmatpush1.msra.mxu0 0.0
    %2112 = vmatprep.subr.mxu0 0.0
    %2113 = vmatpush1.msra.mxu0 0.0
    %2114 = vmatprep.subr.mxu0 0.0
    %2115 = vmatpush1.msra.mxu0 0.0
    %2116 = vmatprep.subr.mxu0 0.0
    %2117 = vmatpush1.msra.mxu0 0.0
    %2118 = vmatprep.subr.mxu0 0.0
    %2119 = vmatpush1.msra.mxu0 0.0
    %2120 = vmatprep.subr.mxu0 0.0
    %2121 = vmatpush1.msra.mxu0 0.0
    %2122 = vmatprep.subr.mxu0 0.0
    %2123 = vmatpush1.msra.mxu0 0.0
    %2124 = vmatprep.subr.mxu0 0.0
    %2125 = vmatpush1.msra.mxu0 0.0
    %2126 = vmatprep.subr.mxu0 0.0
    %2127 = vmatpush1.msra.mxu0 0.0
    %2128 = vmatprep.subr.mxu0 0.0
    %2129 = vmatpush1.msra.mxu0 0.0
    %2130 = vmatprep.subr.mxu0 0.0
    %2131 = vmatpush1.msra.mxu0 0.0
    %2132 = vmatprep.subr.mxu0 0.0
    %2133 = vmatpush1.msra.mxu0 0.0
    %2134 = vmatprep.subr.mxu0 0.0
    %2135 = vmatpush1.msra.mxu0 0.0
    %2136 = vmatprep.subr.mxu0 0.0
    %2137 = vmatpush1.msra.mxu0 0.0
    %2138 = vmatprep.subr.mxu0 0.0
    %2139 = vmatpush1.msra.mxu0 0.0
    %2140 = vmatprep.subr.mxu0 0.0
    %2141 = vmatpush1.msra.mxu0 0.0
    %2142 = vmatprep.subr.mxu0 0.0
    %2143 = vmatpush1.msra.mxu0 0.0
    %2144 = vmatprep.subr.mxu0 0.0
    %2145 = vmatpush1.msra.mxu0 0.0
    %2146 = vmatprep.subr.mxu0 0.0
    %2147 = vmatpush1.msra.mxu0 0.0
    %2148 = vmatprep.subr.mxu0 0.0
    %2149 = vmatpush1.msra.mxu0 0.0
    %2150 = vmatprep.subr.mxu0 0.0
    %2151 = vmatpush1.msra.mxu0 0.0
    %2152 = vmatprep.mubr.f32.mxu0 0.0
    %2153 = vmatmul.mubr.f32.gmra.mrb[0].mxu0 %v1966
    %v2154 = vpop.f32.mrb[0].mxu0
    %v2155 = vadd.f32 %v2086, %v2154
    %v2156 = vpop.f32.mrb[0].mxu0
    %2157 = vdwg.mxu0
    %v2158 = vld [vmem:[#allocation9] sm:$0xff]
    %v2159 = vld [vmem:[#allocation9 + $0x8] sm:$0xff]
    %v2160 = vld [vmem:[#allocation9 + $0x10] sm:$0xff]
    %v2161 = vld [vmem:[#allocation9 + $0x18] sm:$0xff]
    %2162 = vmatprep.subr.mxu0 0.0
    %2163 = vmatpush1.msra.mxu0 %v2158
    %2164 = vmatprep.subr.mxu0 0.0
    %2165 = vmatpush1.msra.mxu0 %v2159
    %2166 = vmatprep.subr.mxu0 0.0
    %2167 = vmatpush1.msra.mxu0 %v2160
    %2168 = vmatprep.subr.mxu0 0.0
    %2169 = vmatpush1.msra.mxu0 %v2161
    %2170 = vmatprep.subr.mxu0 0.0
    %2171 = vmatpush1.msra.mxu0 0.0
    %2172 = vmatprep.subr.mxu0 0.0
    %2173 = vmatpush1.msra.mxu0 0.0
    %2174 = vmatprep.subr.mxu0 0.0
    %2175 = vmatpush1.msra.mxu0 0.0
    %2176 = vmatprep.subr.mxu0 0.0
    %2177 = vmatpush1.msra.mxu0 0.0
    %2178 = vmatprep.subr.mxu0 0.0
    %2179 = vmatpush1.msra.mxu0 0.0
    %2180 = vmatprep.subr.mxu0 0.0
    %2181 = vmatpush1.msra.mxu0 0.0
    %2182 = vmatprep.subr.mxu0 0.0
    %2183 = vmatpush1.msra.mxu0 0.0
    %2184 = vmatprep.subr.mxu0 0.0
    %2185 = vmatpush1.msra.mxu0 0.0
    %2186 = vmatprep.subr.mxu0 0.0
    %2187 = vmatpush1.msra.mxu0 0.0
    %2188 = vmatprep.subr.mxu0 0.0
    %2189 = vmatpush1.msra.mxu0 0.0
    %2190 = vmatprep.subr.mxu0 0.0
    %2191 = vmatpush1.msra.mxu0 0.0
    %2192 = vmatprep.subr.mxu0 0.0
    %2193 = vmatpush1.msra.mxu0 0.0
    %2194 = vmatprep.subr.mxu0 0.0
    %2195 = vmatpush1.msra.mxu0 0.0
    %2196 = vmatprep.subr.mxu0 0.0
    %2197 = vmatpush1.msra.mxu0 0.0
    %2198 = vmatprep.subr.mxu0 0.0
    %2199 = vmatpush1.msra.mxu0 0.0
    %2200 = vmatprep.subr.mxu0 0.0
    %2201 = vmatpush1.msra.mxu0 0.0
    %2202 = vmatprep.subr.mxu0 0.0
    %2203 = vmatpush1.msra.mxu0 0.0
    %2204 = vmatprep.subr.mxu0 0.0
    %2205 = vmatpush1.msra.mxu0 0.0
    %2206 = vmatprep.subr.mxu0 0.0
    %2207 = vmatpush1.msra.mxu0 0.0
    %2208 = vmatprep.subr.mxu0 0.0
    %2209 = vmatpush1.msra.mxu0 0.0
    %2210 = vmatprep.subr.mxu0 0.0
    %2211 = vmatpush1.msra.mxu0 0.0
    %2212 = vmatprep.subr.mxu0 0.0
    %2213 = vmatpush1.msra.mxu0 0.0
    %2214 = vmatprep.subr.mxu0 0.0
    %2215 = vmatpush1.msra.mxu0 0.0
    %2216 = vmatprep.subr.mxu0 0.0
    %2217 = vmatpush1.msra.mxu0 0.0
    %2218 = vmatprep.subr.mxu0 0.0
    %2219 = vmatpush1.msra.mxu0 0.0
    %2220 = vmatprep.subr.mxu0 0.0
    %2221 = vmatpush1.msra.mxu0 0.0
    %2222 = vmatprep.subr.mxu0 0.0
    %2223 = vmatpush1.msra.mxu0 0.0
    %2224 = vmatprep.subr.mxu0 0.0
    %2225 = vmatpush1.msra.mxu0 0.0
    %2226 = vmatprep.mubr.f32.mxu0 0.0
    %2227 = vmatmul.mubr.f32.gmra.mrb[0].mxu0 %v292
    %v2228 = vpop.f32.mrb[0].mxu0
    %v2229 = vadd.f32 0.0, %v2228
    %v2230 = vpop.f32.mrb[0].mxu0
    %2231 = vdwg.mxu0
    %v2232 = vadd.f32 %v2035, %v2229
    %v2233 = vxor.u32 %v2232, 2147483648
    %v2234 = vmul.f32 %v2233, 1.442695
    %v2235 = vpow.pop %v2234
    %v2236 = vadd.f32 %v2235, 1.0
    %v2237 = vrcp.pop %v2236
    %v2238 = vmul.f32 1.0, %v2237
    %v2239 = vtanh.pop %v2232
    %v2240 = vmul.f32 %v2238, 0.0
    %2242 = vrot.lane.b32.xlu0 %v2239, 32
    %v2243 = vpop.permute.xlu0 %2242
    %v2245 = vmul.f32 %v2238, %v2243
    %2247 = vrot.lane.b32.xlu0 %v2245, 32
    %v2248 = vpop.permute.xlu0 %2247
    %v2250 = vadd.f32 %v2240, %v2248
    %v2251 = vtanh.pop %v2250
    %2253 = vrot.lane.b32.xlu0 %v2251, 32
    %v2254 = vpop.permute.xlu0 %2253
    %v2256 = vmul.f32 %v2238, %v2254
    %2258 = vrot.lane.b32.xlu0 %v2256, 64
    %v2259 = vpop.permute.xlu0 %2258
    %v2260 = vsel %vm145, %v2259, 0
    %2262 = vmatprep.subr.mxu0 0.0
    %2263 = vmatpush1.msra.mxu0 %v2158
    %2264 = vmatprep.subr.mxu0 0.0
    %2265 = vmatpush1.msra.mxu0 %v2159
    %2266 = vmatprep.subr.mxu0 0.0
    %2267 = vmatpush1.msra.mxu0 %v2160
    %2268 = vmatprep.subr.mxu0 0.0
    %2269 = vmatpush1.msra.mxu0 %v2161
    %2270 = vmatprep.subr.mxu0 0.0
    %2271 = vmatpush1.msra.mxu0 0.0
    %2272 = vmatprep.subr.mxu0 0.0
    %2273 = vmatpush1.msra.mxu0 0.0
    %2274 = vmatprep.subr.mxu0 0.0
    %2275 = vmatpush1.msra.mxu0 0.0
    %2276 = vmatprep.subr.mxu0 0.0
    %2277 = vmatpush1.msra.mxu0 0.0
    %2278 = vmatprep.subr.mxu0 0.0
    %2279 = vmatpush1.msra.mxu0 0.0
    %2280 = vmatprep.subr.mxu0 0.0
    %2281 = vmatpush1.msra.mxu0 0.0
    %2282 = vmatprep.subr.mxu0 0.0
    %2283 = vmatpush1.msra.mxu0 0.0
    %2284 = vmatprep.subr.mxu0 0.0
    %2285 = vmatpush1.msra.mxu0 0.0
    %2286 = vmatprep.subr.mxu0 0.0
    %2287 = vmatpush1.msra.mxu0 0.0
    %2288 = vmatprep.subr.mxu0 0.0
    %2289 = vmatpush1.msra.mxu0 0.0
    %2290 = vmatprep.subr.mxu0 0.0
    %2291 = vmatpush1.msra.mxu0 0.0
    %2292 = vmatprep.subr.mxu0 0.0
    %2293 = vmatpush1.msra.mxu0 0.0
    %2294 = vmatprep.subr.mxu0 0.0
    %2295 = vmatpush1.msra.mxu0 0.0
    %2296 = vmatprep.subr.mxu0 0.0
    %2297 = vmatpush1.msra.mxu0 0.0
    %2298 = vmatprep.subr.mxu0 0.0
    %2299 = vmatpush1.msra.mxu0 0.0
    %2300 = vmatprep.subr.mxu0 0.0
    %2301 = vmatpush1.msra.mxu0 0.0
    %2302 = vmatprep.subr.mxu0 0.0
    %2303 = vmatpush1.msra.mxu0 0.0
    %2304 = vmatprep.subr.mxu0 0.0
    %2305 = vmatpush1.msra.mxu0 0.0
    %2306 = vmatprep.subr.mxu0 0.0
    %2307 = vmatpush1.msra.mxu0 0.0
    %2308 = vmatprep.subr.mxu0 0.0
    %2309 = vmatpush1.msra.mxu0 0.0
    %2310 = vmatprep.subr.mxu0 0.0
    %2311 = vmatpush1.msra.mxu0 0.0
    %2312 = vmatprep.subr.mxu0 0.0
    %2313 = vmatpush1.msra.mxu0 0.0
    %2314 = vmatprep.subr.mxu0 0.0
    %2315 = vmatpush1.msra.mxu0 0.0
    %2316 = vmatprep.subr.mxu0 0.0
    %2317 = vmatpush1.msra.mxu0 0.0
    %2318 = vmatprep.subr.mxu0 0.0
    %2319 = vmatpush1.msra.mxu0 0.0
    %2320 = vmatprep.subr.mxu0 0.0
    %2321 = vmatpush1.msra.mxu0 0.0
    %2322 = vmatprep.subr.mxu0 0.0
    %2323 = vmatpush1.msra.mxu0 0.0
    %2324 = vmatprep.subr.mxu0 0.0
    %2325 = vmatpush1.msra.mxu0 0.0
    %2326 = vmatprep.mubr.f32.mxu0 0.0
    %2327 = vmatmul.mubr.f32.gmra.mrb[0].mxu0 %v2260
    %v2328 = vpop.f32.mrb[0].mxu0
    %v2329 = vadd.f32 0.0, %v2328
    %v2330 = vpop.f32.mrb[0].mxu0
    %2331 = vdwg.mxu0
    %v2332 = vadd.f32 %v2040, %v2329
    %v2333 = vxor.u32 %v2332, 2147483648
    %v2334 = vmul.f32 %v2333, 1.442695
    %v2335 = vpow.pop %v2334
    %v2336 = vadd.f32 %v2335, 1.0
    %v2337 = vrcp.pop %v2336
    %v2338 = vmul.f32 1.0, %v2337
    %v2339 = vtanh.pop %v2332
    %v2340 = vmul.f32 %v2338, %v2250
    %2342 = vrot.lane.b32.xlu0 %v2339, 32
    %v2343 = vpop.permute.xlu0 %2342
    %v2345 = vmul.f32 %v2338, %v2343
    %2347 = vrot.lane.b32.xlu0 %v2345, 32
    %v2348 = vpop.permute.xlu0 %2347
    %v2350 = vadd.f32 %v2340, %v2348
    %v2351 = vtanh.pop %v2350
    %2353 = vrot.lane.b32.xlu0 %v2351, 32
    %v2354 = vpop.permute.xlu0 %2353
    %v2356 = vmul.f32 %v2338, %v2354
    %2358 = vrot.lane.b32.xlu0 %v2356, 64
    %v2359 = vpop.permute.xlu0 %2358
    %v2360 = vsel %vm145, %v2359, 0
    %2362 = vmatprep.subr.mxu0 0.0
    %2363 = vmatpush1.msra.mxu0 %v2158
    %2364 = vmatprep.subr.mxu0 0.0
    %2365 = vmatpush1.msra.mxu0 %v2159
    %2366 = vmatprep.subr.mxu0 0.0
    %2367 = vmatpush1.msra.mxu0 %v2160
    %2368 = vmatprep.subr.mxu0 0.0
    %2369 = vmatpush1.msra.mxu0 %v2161
    %2370 = vmatprep.subr.mxu0 0.0
    %2371 = vmatpush1.msra.mxu0 0.0
    %2372 = vmatprep.subr.mxu0 0.0
    %2373 = vmatpush1.msra.mxu0 0.0
    %2374 = vmatprep.subr.mxu0 0.0
    %2375 = vmatpush1.msra.mxu0 0.0
    %2376 = vmatprep.subr.mxu0 0.0
    %2377 = vmatpush1.msra.mxu0 0.0
    %2378 = vmatprep.subr.mxu0 0.0
    %2379 = vmatpush1.msra.mxu0 0.0
    %2380 = vmatprep.subr.mxu0 0.0
    %2381 = vmatpush1.msra.mxu0 0.0
    %2382 = vmatprep.subr.mxu0 0.0
    %2383 = vmatpush1.msra.mxu0 0.0
    %2384 = vmatprep.subr.mxu0 0.0
    %2385 = vmatpush1.msra.mxu0 0.0
    %2386 = vmatprep.subr.mxu0 0.0
    %2387 = vmatpush1.msra.mxu0 0.0
    %2388 = vmatprep.subr.mxu0 0.0
    %2389 = vmatpush1.msra.mxu0 0.0
    %2390 = vmatprep.subr.mxu0 0.0
    %2391 = vmatpush1.msra.mxu0 0.0
    %2392 = vmatprep.subr.mxu0 0.0
    %2393 = vmatpush1.msra.mxu0 0.0
    %2394 = vmatprep.subr.mxu0 0.0
    %2395 = vmatpush1.msra.mxu0 0.0
    %2396 = vmatprep.subr.mxu0 0.0
    %2397 = vmatpush1.msra.mxu0 0.0
    %2398 = vmatprep.subr.mxu0 0.0
    %2399 = vmatpush1.msra.mxu0 0.0
    %2400 = vmatprep.subr.mxu0 0.0
    %2401 = vmatpush1.msra.mxu0 0.0
    %2402 = vmatprep.subr.mxu0 0.0
    %2403 = vmatpush1.msra.mxu0 0.0
    %2404 = vmatprep.subr.mxu0 0.0
    %2405 = vmatpush1.msra.mxu0 0.0
    %2406 = vmatprep.subr.mxu0 0.0
    %2407 = vmatpush1.msra.mxu0 0.0
    %2408 = vmatprep.subr.mxu0 0.0
    %2409 = vmatpush1.msra.mxu0 0.0
    %2410 = vmatprep.subr.mxu0 0.0
    %2411 = vmatpush1.msra.mxu0 0.0
    %2412 = vmatprep.subr.mxu0 0.0
    %2413 = vmatpush1.msra.mxu0 0.0
    %2414 = vmatprep.subr.mxu0 0.0
    %2415 = vmatpush1.msra.mxu0 0.0
    %2416 = vmatprep.subr.mxu0 0.0
    %2417 = vmatpush1.msra.mxu0 0.0
    %2418 = vmatprep.subr.mxu0 0.0
    %2419 = vmatpush1.msra.mxu0 0.0
    %2420 = vmatprep.subr.mxu0 0.0
    %2421 = vmatpush1.msra.mxu0 0.0
    %2422 = vmatprep.subr.mxu0 0.0
    %2423 = vmatpush1.msra.mxu0 0.0
    %2424 = vmatprep.subr.mxu0 0.0
    %2425 = vmatpush1.msra.mxu0 0.0
    %2426 = vmatprep.mubr.f32.mxu0 0.0
    %2427 = vmatmul.mubr.f32.gmra.mrb[0].mxu0 %v2360
    %v2428 = vpop.f32.mrb[0].mxu0
    %v2429 = vadd.f32 0.0, %v2428
    %v2430 = vpop.f32.mrb[0].mxu0
    %2431 = vdwg.mxu0
    %v2432 = vadd.f32 %v2045, %v2429
    %v2433 = vxor.u32 %v2432, 2147483648
    %v2434 = vmul.f32 %v2433, 1.442695
    %v2435 = vpow.pop %v2434
    %v2436 = vadd.f32 %v2435, 1.0
    %v2437 = vrcp.pop %v2436
    %v2438 = vmul.f32 1.0, %v2437
    %v2439 = vtanh.pop %v2432
    %v2440 = vmul.f32 %v2438, %v2350
    %2442 = vrot.lane.b32.xlu0 %v2439, 32
    %v2443 = vpop.permute.xlu0 %2442
    %v2445 = vmul.f32 %v2438, %v2443
    %2447 = vrot.lane.b32.xlu0 %v2445, 32
    %v2448 = vpop.permute.xlu0 %2447
    %v2450 = vadd.f32 %v2440, %v2448
    %v2451 = vtanh.pop %v2450
    %2453 = vrot.lane.b32.xlu0 %v2451, 32
    %v2454 = vpop.permute.xlu0 %2453
    %v2456 = vmul.f32 %v2438, %v2454
    %2458 = vrot.lane.b32.xlu0 %v2456, 64
    %v2459 = vpop.permute.xlu0 %2458
    %v2460 = vsel %vm145, %v2459, 0
    %2462 = vmatprep.subr.mxu0 0.0
    %2463 = vmatpush1.msra.mxu0 %v2158
    %2464 = vmatprep.subr.mxu0 0.0
    %2465 = vmatpush1.msra.mxu0 %v2159
    %2466 = vmatprep.subr.mxu0 0.0
    %2467 = vmatpush1.msra.mxu0 %v2160
    %2468 = vmatprep.subr.mxu0 0.0
    %2469 = vmatpush1.msra.mxu0 %v2161
    %2470 = vmatprep.subr.mxu0 0.0
    %2471 = vmatpush1.msra.mxu0 0.0
    %2472 = vmatprep.subr.mxu0 0.0
    %2473 = vmatpush1.msra.mxu0 0.0
    %2474 = vmatprep.subr.mxu0 0.0
    %2475 = vmatpush1.msra.mxu0 0.0
    %2476 = vmatprep.subr.mxu0 0.0
    %2477 = vmatpush1.msra.mxu0 0.0
    %2478 = vmatprep.subr.mxu0 0.0
    %2479 = vmatpush1.msra.mxu0 0.0
    %2480 = vmatprep.subr.mxu0 0.0
    %2481 = vmatpush1.msra.mxu0 0.0
    %2482 = vmatprep.subr.mxu0 0.0
    %2483 = vmatpush1.msra.mxu0 0.0
    %2484 = vmatprep.subr.mxu0 0.0
    %2485 = vmatpush1.msra.mxu0 0.0
    %2486 = vmatprep.subr.mxu0 0.0
    %2487 = vmatpush1.msra.mxu0 0.0
    %2488 = vmatprep.subr.mxu0 0.0
    %2489 = vmatpush1.msra.mxu0 0.0
    %2490 = vmatprep.subr.mxu0 0.0
    %2491 = vmatpush1.msra.mxu0 0.0
    %2492 = vmatprep.subr.mxu0 0.0
    %2493 = vmatpush1.msra.mxu0 0.0
    %2494 = vmatprep.subr.mxu0 0.0
    %2495 = vmatpush1.msra.mxu0 0.0
    %2496 = vmatprep.subr.mxu0 0.0
    %2497 = vmatpush1.msra.mxu0 0.0
    %2498 = vmatprep.subr.mxu0 0.0
    %2499 = vmatpush1.msra.mxu0 0.0
    %2500 = vmatprep.subr.mxu0 0.0
    %2501 = vmatpush1.msra.mxu0 0.0
    %2502 = vmatprep.subr.mxu0 0.0
    %2503 = vmatpush1.msra.mxu0 0.0
    %2504 = vmatprep.subr.mxu0 0.0
    %2505 = vmatpush1.msra.mxu0 0.0
    %2506 = vmatprep.subr.mxu0 0.0
    %2507 = vmatpush1.msra.mxu0 0.0
    %2508 = vmatprep.subr.mxu0 0.0
    %2509 = vmatpush1.msra.mxu0 0.0
    %2510 = vmatprep.subr.mxu0 0.0
    %2511 = vmatpush1.msra.mxu0 0.0
    %2512 = vmatprep.subr.mxu0 0.0
    %2513 = vmatpush1.msra.mxu0 0.0
    %2514 = vmatprep.subr.mxu0 0.0
    %2515 = vmatpush1.msra.mxu0 0.0
    %2516 = vmatprep.subr.mxu0 0.0
    %2517 = vmatpush1.msra.mxu0 0.0
    %2518 = vmatprep.subr.mxu0 0.0
    %2519 = vmatpush1.msra.mxu0 0.0
    %2520 = vmatprep.subr.mxu0 0.0
    %2521 = vmatpush1.msra.mxu0 0.0
    %2522 = vmatprep.subr.mxu0 0.0
    %2523 = vmatpush1.msra.mxu0 0.0
    %2524 = vmatprep.subr.mxu0 0.0
    %2525 = vmatpush1.msra.mxu0 0.0
    %2526 = vmatprep.mubr.f32.mxu0 0.0
    %2527 = vmatmul.mubr.f32.gmra.mrb[0].mxu0 %v2460
    %v2528 = vpop.f32.mrb[0].mxu0
    %v2529 = vadd.f32 0.0, %v2528
    %v2530 = vpop.f32.mrb[0].mxu0
    %2531 = vdwg.mxu0
    %v2532 = vadd.f32 %v2050, %v2529
    %v2533 = vxor.u32 %v2532, 2147483648
    %v2534 = vmul.f32 %v2533, 1.442695
    %v2535 = vpow.pop %v2534
    %v2536 = vadd.f32 %v2535, 1.0
    %v2537 = vrcp.pop %v2536
    %v2538 = vmul.f32 1.0, %v2537
    %v2539 = vtanh.pop %v2532
    %v2540 = vmul.f32 %v2538, %v2450
    %2542 = vrot.lane.b32.xlu0 %v2539, 32
    %v2543 = vpop.permute.xlu0 %2542
    %v2545 = vmul.f32 %v2538, %v2543
    %2547 = vrot.lane.b32.xlu0 %v2545, 32
    %v2548 = vpop.permute.xlu0 %2547
    %v2550 = vadd.f32 %v2540, %v2548
    %v2551 = vtanh.pop %v2550
    %2553 = vrot.lane.b32.xlu0 %v2551, 32
    %v2554 = vpop.permute.xlu0 %2553
    %v2556 = vmul.f32 %v2538, %v2554
    %2558 = vrot.lane.b32.xlu0 %v2556, 64
    %v2559 = vpop.permute.xlu0 %2558
    %v2560 = vsel %vm145, %v2559, 0
    %2562 = vmatprep.subr.mxu0 0.0
    %2563 = vmatpush1.msra.mxu0 %v2158
    %2564 = vmatprep.subr.mxu0 0.0
    %2565 = vmatpush1.msra.mxu0 %v2159
    %2566 = vmatprep.subr.mxu0 0.0
    %2567 = vmatpush1.msra.mxu0 %v2160
    %2568 = vmatprep.subr.mxu0 0.0
    %2569 = vmatpush1.msra.mxu0 %v2161
    %2570 = vmatprep.subr.mxu0 0.0
    %2571 = vmatpush1.msra.mxu0 0.0
    %2572 = vmatprep.subr.mxu0 0.0
    %2573 = vmatpush1.msra.mxu0 0.0
    %2574 = vmatprep.subr.mxu0 0.0
    %2575 = vmatpush1.msra.mxu0 0.0
    %2576 = vmatprep.subr.mxu0 0.0
    %2577 = vmatpush1.msra.mxu0 0.0
    %2578 = vmatprep.subr.mxu0 0.0
    %2579 = vmatpush1.msra.mxu0 0.0
    %2580 = vmatprep.subr.mxu0 0.0
    %2581 = vmatpush1.msra.mxu0 0.0
    %2582 = vmatprep.subr.mxu0 0.0
    %2583 = vmatpush1.msra.mxu0 0.0
    %2584 = vmatprep.subr.mxu0 0.0
    %2585 = vmatpush1.msra.mxu0 0.0
    %2586 = vmatprep.subr.mxu0 0.0
    %2587 = vmatpush1.msra.mxu0 0.0
    %2588 = vmatprep.subr.mxu0 0.0
    %2589 = vmatpush1.msra.mxu0 0.0
    %2590 = vmatprep.subr.mxu0 0.0
    %2591 = vmatpush1.msra.mxu0 0.0
    %2592 = vmatprep.subr.mxu0 0.0
    %2593 = vmatpush1.msra.mxu0 0.0
    %2594 = vmatprep.subr.mxu0 0.0
    %2595 = vmatpush1.msra.mxu0 0.0
    %2596 = vmatprep.subr.mxu0 0.0
    %2597 = vmatpush1.msra.mxu0 0.0
    %2598 = vmatprep.subr.mxu0 0.0
    %2599 = vmatpush1.msra.mxu0 0.0
    %2600 = vmatprep.subr.mxu0 0.0
    %2601 = vmatpush1.msra.mxu0 0.0
    %2602 = vmatprep.subr.mxu0 0.0
    %2603 = vmatpush1.msra.mxu0 0.0
    %2604 = vmatprep.subr.mxu0 0.0
    %2605 = vmatpush1.msra.mxu0 0.0
    %2606 = vmatprep.subr.mxu0 0.0
    %2607 = vmatpush1.msra.mxu0 0.0
    %2608 = vmatprep.subr.mxu0 0.0
    %2609 = vmatpush1.msra.mxu0 0.0
    %2610 = vmatprep.subr.mxu0 0.0
    %2611 = vmatpush1.msra.mxu0 0.0
    %2612 = vmatprep.subr.mxu0 0.0
    %2613 = vmatpush1.msra.mxu0 0.0
    %2614 = vmatprep.subr.mxu0 0.0
    %2615 = vmatpush1.msra.mxu0 0.0
    %2616 = vmatprep.subr.mxu0 0.0
    %2617 = vmatpush1.msra.mxu0 0.0
    %2618 = vmatprep.subr.mxu0 0.0
    %2619 = vmatpush1.msra.mxu0 0.0
    %2620 = vmatprep.subr.mxu0 0.0
    %2621 = vmatpush1.msra.mxu0 0.0
    %2622 = vmatprep.subr.mxu0 0.0
    %2623 = vmatpush1.msra.mxu0 0.0
    %2624 = vmatprep.subr.mxu0 0.0
    %2625 = vmatpush1.msra.mxu0 0.0
    %2626 = vmatprep.mubr.f32.mxu0 0.0
    %2627 = vmatmul.mubr.f32.gmra.mrb[0].mxu0 %v2560
    %v2628 = vpop.f32.mrb[0].mxu0
    %v2629 = vadd.f32 0.0, %v2628
    %v2630 = vpop.f32.mrb[0].mxu0
    %2631 = vdwg.mxu0
    %v2632 = vadd.f32 %v2055, %v2629
    %v2633 = vxor.u32 %v2632, 2147483648
    %v2634 = vmul.f32 %v2633, 1.442695
    %v2635 = vpow.pop %v2634
    %v2636 = vadd.f32 %v2635, 1.0
    %v2637 = vrcp.pop %v2636
    %v2638 = vmul.f32 1.0, %v2637
    %v2639 = vtanh.pop %v2632
    %v2640 = vmul.f32 %v2638, %v2550
    %2642 = vrot.lane.b32.xlu0 %v2639, 32
    %v2643 = vpop.permute.xlu0 %2642
    %v2645 = vmul.f32 %v2638, %v2643
    %2647 = vrot.lane.b32.xlu0 %v2645, 32
    %v2648 = vpop.permute.xlu0 %2647
    %v2650 = vadd.f32 %v2640, %v2648
    %v2651 = vtanh.pop %v2650
    %2653 = vrot.lane.b32.xlu0 %v2651, 32
    %v2654 = vpop.permute.xlu0 %2653
    %v2656 = vmul.f32 %v2638, %v2654
    %2658 = vrot.lane.b32.xlu0 %v2656, 64
    %v2659 = vpop.permute.xlu0 %2658
    %v2660 = vsel %vm145, %v2659, 0
    %2662 = vmatprep.subr.mxu0 0.0
    %2663 = vmatpush1.msra.mxu0 %v2158
    %2664 = vmatprep.subr.mxu0 0.0
    %2665 = vmatpush1.msra.mxu0 %v2159
    %2666 = vmatprep.subr.mxu0 0.0
    %2667 = vmatpush1.msra.mxu0 %v2160
    %2668 = vmatprep.subr.mxu0 0.0
    %2669 = vmatpush1.msra.mxu0 %v2161
    %2670 = vmatprep.subr.mxu0 0.0
    %2671 = vmatpush1.msra.mxu0 0.0
    %2672 = vmatprep.subr.mxu0 0.0
    %2673 = vmatpush1.msra.mxu0 0.0
    %2674 = vmatprep.subr.mxu0 0.0
    %2675 = vmatpush1.msra.mxu0 0.0
    %2676 = vmatprep.subr.mxu0 0.0
    %2677 = vmatpush1.msra.mxu0 0.0
    %2678 = vmatprep.subr.mxu0 0.0
    %2679 = vmatpush1.msra.mxu0 0.0
    %2680 = vmatprep.subr.mxu0 0.0
    %2681 = vmatpush1.msra.mxu0 0.0
    %2682 = vmatprep.subr.mxu0 0.0
    %2683 = vmatpush1.msra.mxu0 0.0
    %2684 = vmatprep.subr.mxu0 0.0
    %2685 = vmatpush1.msra.mxu0 0.0
    %2686 = vmatprep.subr.mxu0 0.0
    %2687 = vmatpush1.msra.mxu0 0.0
    %2688 = vmatprep.subr.mxu0 0.0
    %2689 = vmatpush1.msra.mxu0 0.0
    %2690 = vmatprep.subr.mxu0 0.0
    %2691 = vmatpush1.msra.mxu0 0.0
    %2692 = vmatprep.subr.mxu0 0.0
    %2693 = vmatpush1.msra.mxu0 0.0
    %2694 = vmatprep.subr.mxu0 0.0
    %2695 = vmatpush1.msra.mxu0 0.0
    %2696 = vmatprep.subr.mxu0 0.0
    %2697 = vmatpush1.msra.mxu0 0.0
    %2698 = vmatprep.subr.mxu0 0.0
    %2699 = vmatpush1.msra.mxu0 0.0
    %2700 = vmatprep.subr.mxu0 0.0
    %2701 = vmatpush1.msra.mxu0 0.0
    %2702 = vmatprep.subr.mxu0 0.0
    %2703 = vmatpush1.msra.mxu0 0.0
    %2704 = vmatprep.subr.mxu0 0.0
    %2705 = vmatpush1.msra.mxu0 0.0
    %2706 = vmatprep.subr.mxu0 0.0
    %2707 = vmatpush1.msra.mxu0 0.0
    %2708 = vmatprep.subr.mxu0 0.0
    %2709 = vmatpush1.msra.mxu0 0.0
    %2710 = vmatprep.subr.mxu0 0.0
    %2711 = vmatpush1.msra.mxu0 0.0
    %2712 = vmatprep.subr.mxu0 0.0
    %2713 = vmatpush1.msra.mxu0 0.0
    %2714 = vmatprep.subr.mxu0 0.0
    %2715 = vmatpush1.msra.mxu0 0.0
    %2716 = vmatprep.subr.mxu0 0.0
    %2717 = vmatpush1.msra.mxu0 0.0
    %2718 = vmatprep.subr.mxu0 0.0
    %2719 = vmatpush1.msra.mxu0 0.0
    %2720 = vmatprep.subr.mxu0 0.0
    %2721 = vmatpush1.msra.mxu0 0.0
    %2722 = vmatprep.subr.mxu0 0.0
    %2723 = vmatpush1.msra.mxu0 0.0
    %2724 = vmatprep.subr.mxu0 0.0
    %2725 = vmatpush1.msra.mxu0 0.0
    %2726 = vmatprep.mubr.f32.mxu0 0.0
    %2727 = vmatmul.mubr.f32.gmra.mrb[0].mxu0 %v2660
    %v2728 = vpop.f32.mrb[0].mxu0
    %v2729 = vadd.f32 0.0, %v2728
    %v2730 = vpop.f32.mrb[0].mxu0
    %2731 = vdwg.mxu0
    %v2732 = vadd.f32 %v2060, %v2729
    %v2733 = vxor.u32 %v2732, 2147483648
    %v2734 = vmul.f32 %v2733, 1.442695
    %v2735 = vpow.pop %v2734
    %v2736 = vadd.f32 %v2735, 1.0
    %v2737 = vrcp.pop %v2736
    %v2738 = vmul.f32 1.0, %v2737
    %v2739 = vtanh.pop %v2732
    %v2740 = vmul.f32 %v2738, %v2650
    %2742 = vrot.lane.b32.xlu0 %v2739, 32
    %v2743 = vpop.permute.xlu0 %2742
    %v2745 = vmul.f32 %v2738, %v2743
    %2747 = vrot.lane.b32.xlu0 %v2745, 32
    %v2748 = vpop.permute.xlu0 %2747
    %v2750 = vadd.f32 %v2740, %v2748
    %v2751 = vtanh.pop %v2750
    %2753 = vrot.lane.b32.xlu0 %v2751, 32
    %v2754 = vpop.permute.xlu0 %2753
    %v2756 = vmul.f32 %v2738, %v2754
    %2758 = vrot.lane.b32.xlu0 %v2756, 64
    %v2759 = vpop.permute.xlu0 %2758
    %v2760 = vsel %vm145, %v2759, 0
    %2762 = vmatprep.subr.mxu0 0.0
    %2763 = vmatpush1.msra.mxu0 %v2158
    %2764 = vmatprep.subr.mxu0 0.0
    %2765 = vmatpush1.msra.mxu0 %v2159
    %2766 = vmatprep.subr.mxu0 0.0
    %2767 = vmatpush1.msra.mxu0 %v2160
    %2768 = vmatprep.subr.mxu0 0.0
    %2769 = vmatpush1.msra.mxu0 %v2161
    %2770 = vmatprep.subr.mxu0 0.0
    %2771 = vmatpush1.msra.mxu0 0.0
    %2772 = vmatprep.subr.mxu0 0.0
    %2773 = vmatpush1.msra.mxu0 0.0
    %2774 = vmatprep.subr.mxu0 0.0
    %2775 = vmatpush1.msra.mxu0 0.0
    %2776 = vmatprep.subr.mxu0 0.0
    %2777 = vmatpush1.msra.mxu0 0.0
    %2778 = vmatprep.subr.mxu0 0.0
    %2779 = vmatpush1.msra.mxu0 0.0
    %2780 = vmatprep.subr.mxu0 0.0
    %2781 = vmatpush1.msra.mxu0 0.0
    %2782 = vmatprep.subr.mxu0 0.0
    %2783 = vmatpush1.msra.mxu0 0.0
    %2784 = vmatprep.subr.mxu0 0.0
    %2785 = vmatpush1.msra.mxu0 0.0
    %2786 = vmatprep.subr.mxu0 0.0
    %2787 = vmatpush1.msra.mxu0 0.0
    %2788 = vmatprep.subr.mxu0 0.0
    %2789 = vmatpush1.msra.mxu0 0.0
    %2790 = vmatprep.subr.mxu0 0.0
    %2791 = vmatpush1.msra.mxu0 0.0
    %2792 = vmatprep.subr.mxu0 0.0
    %2793 = vmatpush1.msra.mxu0 0.0
    %2794 = vmatprep.subr.mxu0 0.0
    %2795 = vmatpush1.msra.mxu0 0.0
    %2796 = vmatprep.subr.mxu0 0.0
    %2797 = vmatpush1.msra.mxu0 0.0
    %2798 = vmatprep.subr.mxu0 0.0
    %2799 = vmatpush1.msra.mxu0 0.0
    %2800 = vmatprep.subr.mxu0 0.0
    %2801 = vmatpush1.msra.mxu0 0.0
    %2802 = vmatprep.subr.mxu0 0.0
    %2803 = vmatpush1.msra.mxu0 0.0
    %2804 = vmatprep.subr.mxu0 0.0
    %2805 = vmatpush1.msra.mxu0 0.0
    %2806 = vmatprep.subr.mxu0 0.0
    %2807 = vmatpush1.msra.mxu0 0.0
    %2808 = vmatprep.subr.mxu0 0.0
    %2809 = vmatpush1.msra.mxu0 0.0
    %2810 = vmatprep.subr.mxu0 0.0
    %2811 = vmatpush1.msra.mxu0 0.0
    %2812 = vmatprep.subr.mxu0 0.0
    %2813 = vmatpush1.msra.mxu0 0.0
    %2814 = vmatprep.subr.mxu0 0.0
    %2815 = vmatpush1.msra.mxu0 0.0
    %2816 = vmatprep.subr.mxu0 0.0
    %2817 = vmatpush1.msra.mxu0 0.0
    %2818 = vmatprep.subr.mxu0 0.0
    %2819 = vmatpush1.msra.mxu0 0.0
    %2820 = vmatprep.subr.mxu0 0.0
    %2821 = vmatpush1.msra.mxu0 0.0
    %2822 = vmatprep.subr.mxu0 0.0
    %2823 = vmatpush1.msra.mxu0 0.0
    %2824 = vmatprep.subr.mxu0 0.0
    %2825 = vmatpush1.msra.mxu0 0.0
    %2826 = vmatprep.mubr.f32.mxu0 0.0
    %2827 = vmatmul.mubr.f32.gmra.mrb[0].mxu0 %v2760
    %v2828 = vpop.f32.mrb[0].mxu0
    %v2829 = vadd.f32 0.0, %v2828
    %v2830 = vpop.f32.mrb[0].mxu0
    %2831 = vdwg.mxu0
    %v2832 = vadd.f32 %v2065, %v2829
    %v2833 = vxor.u32 %v2832, 2147483648
    %v2834 = vmul.f32 %v2833, 1.442695
    %v2835 = vpow.pop %v2834
    %v2836 = vadd.f32 %v2835, 1.0
    %v2837 = vrcp.pop %v2836
    %v2838 = vmul.f32 1.0, %v2837
    %v2839 = vtanh.pop %v2832
    %v2840 = vmul.f32 %v2838, %v2750
    %2842 = vrot.lane.b32.xlu0 %v2839, 32
    %v2843 = vpop.permute.xlu0 %2842
    %v2845 = vmul.f32 %v2838, %v2843
    %2847 = vrot.lane.b32.xlu0 %v2845, 32
    %v2848 = vpop.permute.xlu0 %2847
    %v2850 = vadd.f32 %v2840, %v2848
    %v2851 = vtanh.pop %v2850
    %2853 = vrot.lane.b32.xlu0 %v2851, 32
    %v2854 = vpop.permute.xlu0 %2853
    %v2856 = vmul.f32 %v2838, %v2854
    %2858 = vrot.lane.b32.xlu0 %v2856, 64
    %v2859 = vpop.permute.xlu0 %2858
    %v2860 = vsel %vm145, %v2859, 0
    %2862 = vmatprep.subr.mxu0 0.0
    %2863 = vmatpush1.msra.mxu0 %v2158
    %2864 = vmatprep.subr.mxu0 0.0
    %2865 = vmatpush1.msra.mxu0 %v2159
    %2866 = vmatprep.subr.mxu0 0.0
    %2867 = vmatpush1.msra.mxu0 %v2160
    %2868 = vmatprep.subr.mxu0 0.0
    %2869 = vmatpush1.msra.mxu0 %v2161
    %2870 = vmatprep.subr.mxu0 0.0
    %2871 = vmatpush1.msra.mxu0 0.0
    %2872 = vmatprep.subr.mxu0 0.0
    %2873 = vmatpush1.msra.mxu0 0.0
    %2874 = vmatprep.subr.mxu0 0.0
    %2875 = vmatpush1.msra.mxu0 0.0
    %2876 = vmatprep.subr.mxu0 0.0
    %2877 = vmatpush1.msra.mxu0 0.0
    %2878 = vmatprep.subr.mxu0 0.0
    %2879 = vmatpush1.msra.mxu0 0.0
    %2880 = vmatprep.subr.mxu0 0.0
    %2881 = vmatpush1.msra.mxu0 0.0
    %2882 = vmatprep.subr.mxu0 0.0
    %2883 = vmatpush1.msra.mxu0 0.0
    %2884 = vmatprep.subr.mxu0 0.0
    %2885 = vmatpush1.msra.mxu0 0.0
    %2886 = vmatprep.subr.mxu0 0.0
    %2887 = vmatpush1.msra.mxu0 0.0
    %2888 = vmatprep.subr.mxu0 0.0
    %2889 = vmatpush1.msra.mxu0 0.0
    %2890 = vmatprep.subr.mxu0 0.0
    %2891 = vmatpush1.msra.mxu0 0.0
    %2892 = vmatprep.subr.mxu0 0.0
    %2893 = vmatpush1.msra.mxu0 0.0
    %2894 = vmatprep.subr.mxu0 0.0
    %2895 = vmatpush1.msra.mxu0 0.0
    %2896 = vmatprep.subr.mxu0 0.0
    %2897 = vmatpush1.msra.mxu0 0.0
    %2898 = vmatprep.subr.mxu0 0.0
    %2899 = vmatpush1.msra.mxu0 0.0
    %2900 = vmatprep.subr.mxu0 0.0
    %2901 = vmatpush1.msra.mxu0 0.0
    %2902 = vmatprep.subr.mxu0 0.0
    %2903 = vmatpush1.msra.mxu0 0.0
    %2904 = vmatprep.subr.mxu0 0.0
    %2905 = vmatpush1.msra.mxu0 0.0
    %2906 = vmatprep.subr.mxu0 0.0
    %2907 = vmatpush1.msra.mxu0 0.0
    %2908 = vmatprep.subr.mxu0 0.0
    %2909 = vmatpush1.msra.mxu0 0.0
    %2910 = vmatprep.subr.mxu0 0.0
    %2911 = vmatpush1.msra.mxu0 0.0
    %2912 = vmatprep.subr.mxu0 0.0
    %2913 = vmatpush1.msra.mxu0 0.0
    %2914 = vmatprep.subr.mxu0 0.0
    %2915 = vmatpush1.msra.mxu0 0.0
    %2916 = vmatprep.subr.mxu0 0.0
    %2917 = vmatpush1.msra.mxu0 0.0
    %2918 = vmatprep.subr.mxu0 0.0
    %2919 = vmatpush1.msra.mxu0 0.0
    %2920 = vmatprep.subr.mxu0 0.0
    %2921 = vmatpush1.msra.mxu0 0.0
    %2922 = vmatprep.subr.mxu0 0.0
    %2923 = vmatpush1.msra.mxu0 0.0
    %2924 = vmatprep.subr.mxu0 0.0
    %2925 = vmatpush1.msra.mxu0 0.0
    %2926 = vmatprep.mubr.f32.mxu0 0.0
    %2927 = vmatmul.mubr.f32.gmra.mrb[0].mxu0 %v2860
    %v2928 = vpop.f32.mrb[0].mxu0
    %v2929 = vadd.f32 0.0, %v2928
    %v2930 = vpop.f32.mrb[0].mxu0
    %2931 = vdwg.mxu0
    %v2932 = vadd.f32 %v2070, %v2929
    %v2933 = vxor.u32 %v2932, 2147483648
    %v2934 = vmul.f32 %v2933, 1.442695
    %v2935 = vpow.pop %v2934
    %v2936 = vadd.f32 %v2935, 1.0
    %v2937 = vrcp.pop %v2936
    %v2938 = vmul.f32 1.0, %v2937
    %v2939 = vtanh.pop %v2932
    %v2940 = vmul.f32 %v2938, %v2850
    %2942 = vrot.lane.b32.xlu0 %v2939, 32
    %v2943 = vpop.permute.xlu0 %2942
    %v2945 = vmul.f32 %v2938, %v2943
    %2947 = vrot.lane.b32.xlu0 %v2945, 32
    %v2948 = vpop.permute.xlu0 %2947
    %v2950 = vadd.f32 %v2940, %v2948
    %v2951 = vtanh.pop %v2950
    %2953 = vrot.lane.b32.xlu0 %v2951, 32
    %v2954 = vpop.permute.xlu0 %2953
    %v2956 = vmul.f32 %v2938, %v2954
    %v2957 = vxor.u32 %v2155, 2147483648
    %v2958 = vmul.f32 %v2957, 1.442695
    %v2959 = vpow.pop %v2958
    %v2960 = vadd.f32 %v2959, 1.0
    %v2961 = vrcp.pop %v2960
    %v2962 = vmul.f32 1.0, %v2961
    %v2963 = vtanh.pop %v2155
    %v2964 = vmul.f32 %v2962, 0.0
    %2966 = vrot.lane.b32.xlu0 %v2963, 32
    %v2967 = vpop.permute.xlu0 %2966
    %v2969 = vmul.f32 %v2962, %v2967
    %2971 = vrot.lane.b32.xlu0 %v2969, 32
    %v2972 = vpop.permute.xlu0 %2971
    %v2974 = vadd.f32 %v2964, %v2972
    %v2975 = vtanh.pop %v2974
    %2977 = vrot.lane.b32.xlu0 %v2975, 32
    %v2978 = vpop.permute.xlu0 %2977
    %v2980 = vmul.f32 %v2962, %v2978
    %2982 = vrot.lane.b32.xlu0 %v2956, 64
    %v2983 = vpop.permute.xlu0 %2982
    %2986 = vrot.lane.b32.xlu0 %v2980, 96
    %v2987 = vpop.permute.xlu0 %2986
    %v2989 = vsel %vm145, %v2983, %v2987
    %v2990 = vld [vmem:[%s10] sm:$0xff]
    %v2991 = vld [vmem:[%s10 + $0x8] sm:$0xff]
    %v2992 = vld [vmem:[%s10 + $0x10] sm:$0xff]
    %v2993 = vld [vmem:[%s10 + $0x18] sm:$0xff]
    %v2994 = vld [vmem:[%s10 + $0x20] sm:$0xff]
    %v2995 = vld [vmem:[%s10 + $0x28] sm:$0xff]
    %v2996 = vld [vmem:[%s10 + $0x30] sm:$0xff]
    %v2997 = vld [vmem:[%s10 + $0x38] sm:$0xff]
    %v2998 = vld [vmem:[#allocation10] sm:$0x1]
    %v3000 = vlaneseq
    %v3001 = vshrl.u32 %v3000, 7
    %v3002 = vsub.s32 0, %v3001
    %v3003 = vrot.slane %v2998, %v3002
    %v3006 = vsel %vm1943, %v2989, 0
    %3008 = vmatprep.subr.mxu0 0.0
    %3009 = vmatpush1.msra.mxu0 %v2990
    %3010 = vmatprep.subr.mxu0 0.0
    %3011 = vmatpush1.msra.mxu0 %v2991
    %3012 = vmatprep.subr.mxu0 0.0
    %3013 = vmatpush1.msra.mxu0 %v2992
    %3014 = vmatprep.subr.mxu0 0.0
    %3015 = vmatpush1.msra.mxu0 %v2993
    %3016 = vmatprep.subr.mxu0 0.0
    %3017 = vmatpush1.msra.mxu0 %v2994
    %3018 = vmatprep.subr.mxu0 0.0
    %3019 = vmatpush1.msra.mxu0 %v2995
    %3020 = vmatprep.subr.mxu0 0.0
    %3021 = vmatpush1.msra.mxu0 %v2996
    %3022 = vmatprep.subr.mxu0 0.0
    %3023 = vmatpush1.msra.mxu0 %v2997
    %3024 = vmatprep.subr.mxu0 0.0
    %3025 = vmatpush1.msra.mxu0 0.0
    %3026 = vmatprep.subr.mxu0 0.0
    %3027 = vmatpush1.msra.mxu0 0.0
    %3028 = vmatprep.subr.mxu0 0.0
    %3029 = vmatpush1.msra.mxu0 0.0
    %3030 = vmatprep.subr.mxu0 0.0
    %3031 = vmatpush1.msra.mxu0 0.0
    %3032 = vmatprep.subr.mxu0 0.0
    %3033 = vmatpush1.msra.mxu0 0.0
    %3034 = vmatprep.subr.mxu0 0.0
    %3035 = vmatpush1.msra.mxu0 0.0
    %3036 = vmatprep.subr.mxu0 0.0
    %3037 = vmatpush1.msra.mxu0 0.0
    %3038 = vmatprep.subr.mxu0 0.0
    %3039 = vmatpush1.msra.mxu0 0.0
    %3040 = vmatprep.subr.mxu0 0.0
    %3041 = vmatpush1.msra.mxu0 0.0
    %3042 = vmatprep.subr.mxu0 0.0
    %3043 = vmatpush1.msra.mxu0 0.0
    %3044 = vmatprep.subr.mxu0 0.0
    %3045 = vmatpush1.msra.mxu0 0.0
    %3046 = vmatprep.subr.mxu0 0.0
    %3047 = vmatpush1.msra.mxu0 0.0
    %3048 = vmatprep.subr.mxu0 0.0
    %3049 = vmatpush1.msra.mxu0 0.0
    %3050 = vmatprep.subr.mxu0 0.0
    %3051 = vmatpush1.msra.mxu0 0.0
    %3052 = vmatprep.subr.mxu0 0.0
    %3053 = vmatpush1.msra.mxu0 0.0
    %3054 = vmatprep.subr.mxu0 0.0
    %3055 = vmatpush1.msra.mxu0 0.0
    %3056 = vmatprep.subr.mxu0 0.0
    %3057 = vmatpush1.msra.mxu0 0.0
    %3058 = vmatprep.subr.mxu0 0.0
    %3059 = vmatpush1.msra.mxu0 0.0
    %3060 = vmatprep.subr.mxu0 0.0
    %3061 = vmatpush1.msra.mxu0 0.0
    %3062 = vmatprep.subr.mxu0 0.0
    %3063 = vmatpush1.msra.mxu0 0.0
    %3064 = vmatprep.subr.mxu0 0.0
    %3065 = vmatpush1.msra.mxu0 0.0
    %3066 = vmatprep.subr.mxu0 0.0
    %3067 = vmatpush1.msra.mxu0 0.0
    %3068 = vmatprep.subr.mxu0 0.0
    %3069 = vmatpush1.msra.mxu0 0.0
    %3070 = vmatprep.subr.mxu0 0.0
    %3071 = vmatpush1.msra.mxu0 0.0
    %3072 = vmatprep.mubr.f32.mxu0 0.0
    %3073 = vmatmul.mubr.f32.gmra.mrb[0].mxu0 %v3006
    %v3074 = vpop.f32.mrb[0].mxu0
    %v3075 = vadd.f32 %v3003, %v3074
    %v3076 = vpop.f32.mrb[0].mxu0
    %3077 = vdwg.mxu0
    %3078 = vst.msk [vmem:[%s12] sm:$0xff] %vm145, %v3075
    // Predicated region
    $region74: #{temporal_analysis_forward.1} parent=1 // pred_check
      _
    $region75: #{temporal_analysis_forward.1} parent=1 // pred_check_branch
      %3080 = sbr.rel (0) target = $region77
    $region76: #{temporal_analysis_forward.1} parent=1 // pred_region
      _
    $region77: #{temporal_analysis_forward.1} parent=1 // pred_fallthru
      _
    // Predicated region
    $region78: #{temporal_analysis_forward.1} parent=1 // pred_check
      _
    $region79: #{temporal_analysis_forward.1} parent=1 // pred_check_branch
      %3082 = sbr.rel (0) target = $region81
    $region80: #{temporal_analysis_forward.1} parent=1 // pred_region
      _
    $region81: #{temporal_analysis_forward.1} parent=1 // pred_fallthru
      _
    %3083 = vsyncpa [#allocation3], 1
    %3084 = vsyncpa [#allocation5], 1
    %3085 = vsyncpa [#allocation8], 1
    %3086 = vsyncpa [#allocation11], 1

</llo_original>
